<compile_context>
chip_gen: v7x
topology: tpu7x:2x2x1
jax: 0.10.0
libtpu: 0.0.40
codegen_flags: <defaults>
</compile_context>

<pallas_src>
import functools

import jax
import jax.numpy as jnp
from jax.experimental import pallas as pl
from jax.experimental.pallas import tpu as pltpu

EPS = 1e-5
LANES = 128
VMEM_LIMIT = 48 * 1024 * 1024  # above 16/32 MiB scoped defaults, below v7x physical


def _round_up(x, m):
    return (x + m - 1) // m * m


def _pick_tile_h(h, w, target_rows=512):
    """Largest divisor of h whose row block (tile_h * w rows) stays <= target."""
    best = 1
    for d in range(1, h + 1):
        if h % d == 0 and d * w <= target_rows:
            best = d
    return best


def _pack_weights(w, cin_pad, cout_pad):
    """(3, 3, Cin, Cout) -> (9*cin_pad, cout_pad) bf16, rows tap-major then Cin."""
    kh, kw, cin, cout = w.shape
    wp = jnp.pad(w, ((0, 0), (0, 0), (0, cin_pad - cin), (0, cout_pad - cout)))
    return wp.reshape(kh * kw * cin_pad, cout_pad).astype(jnp.bfloat16)


# ---------------------------------------------------------------------------
# Pass A: 3x3 conv as 9 shifted matmuls + per-channel sum / sumsq accumulation.
# ---------------------------------------------------------------------------
def conv_stats_kernel(xp_ref, w_ref, y_ref, stat_ref, *, tile_h, width):
    # xp_ref  : (H+2, W+2, C)  padded image of batch n (resident across hb axis)
    # w_ref   : (9*C, Cp)      packed 3x3 weights (resident for whole grid)
    # y_ref   : (TILE_M, Cp)   pre-BN conv output tile
    # stat_ref: (2, Cp)        [sum, sumsq] accumulator (constant block index)
    n = pl.program_id(0)
    hb = pl.program_id(1)

    @pl.when(jnp.logical_and(n == 0, hb == 0))
    def _():
        stat_ref[...] = jnp.zeros_like(stat_ref)

    cin = w_ref.shape[0] // 9
    cp = w_ref.shape[1]
    tile_m = tile_h * width
    h0 = hb * tile_h

    acc = jnp.zeros((tile_m, cp), jnp.float32)
    for t in range(9):                                   # unrolled: 9 shifted taps
        ky, kx = divmod(t, 3)
        xt = xp_ref[pl.ds(h0 + ky, tile_h), kx:kx + width, :]   # (tile_h, W, C)
        xt = xt.reshape(tile_m, cin)                            # layout-trivial merge
        acc = acc + jnp.dot(xt, w_ref[t * cin:(t + 1) * cin, :],
                            preferred_element_type=jnp.float32)

    y_ref[...] = acc.astype(y_ref.dtype)
    part = jnp.concatenate(
        [jnp.sum(acc, axis=0, keepdims=True),
         jnp.sum(acc * acc, axis=0, keepdims=True)], axis=0)    # (2, Cp)
    stat_ref[...] = stat_ref[...] + part


def _conv_stats_pass(xp, w_mat, *, tile_h):
    n, hp2, wp2, _ = xp.shape
    h, w = hp2 - 2, wp2 - 2
    n_hblk = h // tile_h
    tile_m = tile_h * w
    m = n * h * w
    cp = w_mat.shape[1]

    kernel = functools.partial(conv_stats_kernel, tile_h=tile_h, width=w)
    return pl.pallas_call(
        kernel,
        out_shape=(jax.ShapeDtypeStruct((m, cp), jnp.bfloat16),
                   jax.ShapeDtypeStruct((2, cp), jnp.float32)),
        grid_spec=pltpu.PrefetchScalarGridSpec(
            num_scalar_prefetch=0,
            grid=(n, n_hblk),
            in_specs=[
                # Padded image per batch element; block index constant along the
                # inner row-block axis -> fetched once per n, stays resident.
                pl.BlockSpec((None, hp2, wp2, xp.shape[-1]),
                             lambda i, j: (i, 0, 0, 0)),
                # Weights resident for the whole grid.
                pl.BlockSpec(w_mat.shape, lambda i, j: (0, 0)),
            ],
            out_specs=(
                pl.BlockSpec((tile_m, cp), lambda i, j: (i * n_hblk + j, 0)),
                # Constant block index -> (2, Cp) accumulator stays in VMEM and
                # is written back only once at the end of the grid.
                pl.BlockSpec((2, cp), lambda i, j: (0, 0)),
            ),
        ),
        compiler_params=pltpu.CompilerParams(
            # Statistics accumulate over the whole grid -> keep axes serial.
            dimension_semantics=("arbitrary", "arbitrary"),
            vmem_limit_bytes=VMEM_LIMIT,
        ),
    )(xp, w_mat)


# ---------------------------------------------------------------------------
# Pass B: finalize batch statistics, normalize, scale/shift, ReLU.
# ---------------------------------------------------------------------------
def bn_relu_kernel(stat_ref, g_ref, b_ref, y_ref, o_ref, *, m_total):
    inv_m = 1.0 / float(m_total)
    mean = stat_ref[0:1, :] * inv_m                              # (1, Cp)
    var = jnp.maximum(stat_ref[1:2, :] * inv_m - mean * mean, 0.0)
    scale = g_ref[...] * jax.lax.rsqrt(var + EPS)                # (1, Cp)
    shift = b_ref[...] - mean * scale
    y = y_ref[...].astype(jnp.float32)
    o_ref[...] = jnp.maximum(y * scale + shift, 0.0).astype(o_ref.dtype)


def _bn_relu_pass(y, stats, gamma, beta, *, tile_m, out_dtype):
    m, cp = y.shape
    kernel = functools.partial(bn_relu_kernel, m_total=m)
    return pl.pallas_call(
        kernel,
        out_shape=jax.ShapeDtypeStruct((m, cp), out_dtype),
        grid_spec=pltpu.PrefetchScalarGridSpec(
            num_scalar_prefetch=0,
            grid=(m // tile_m,),
            in_specs=[
                pl.BlockSpec((2, cp), lambda i: (0, 0)),
                pl.BlockSpec((1, cp), lambda i: (0, 0)),
                pl.BlockSpec((1, cp), lambda i: (0, 0)),
                pl.BlockSpec((tile_m, cp), lambda i: (i, 0)),
            ],
            out_specs=pl.BlockSpec((tile_m, cp), lambda i: (i, 0)),
        ),
        compiler_params=pltpu.CompilerParams(
            dimension_semantics=("parallel",),   # megacore-shardable (v7x)
            vmem_limit_bytes=VMEM_LIMIT,
        ),
    )(stats, gamma.reshape(1, cp), beta.reshape(1, cp), y)


def _conv_bn_relu_stage(x_nhwc, w_mat, gamma_p, beta_p, *, out_dtype):
    n, h, w, _ = x_nhwc.shape
    xp = jnp.pad(x_nhwc, ((0, 0), (1, 1), (1, 1), (0, 0))).astype(jnp.bfloat16)
    tile_h = _pick_tile_h(h, w)
    y2d, stats = _conv_stats_pass(xp, w_mat, tile_h=tile_h)
    out2d = _bn_relu_pass(y2d, stats, gamma_p, beta_p,
                          tile_m=tile_h * w, out_dtype=out_dtype)
    return out2d.reshape(n, h, w, w_mat.shape[1])


def vgg_block(x_nchw, params):
    """Forward pass matching VGGBlock.forward (training-mode BN); NCHW in/out."""
    w1, b1, g1, be1, w2, b2, g2, be2 = params
    del b1, b2  # conv bias cancels exactly under training-mode BatchNorm
    n, cin, h, w = x_nchw.shape
    cout = w1.shape[-1]
    cin_p = _round_up(cin, LANES)
    cp = _round_up(cout, LANES)

    x = jnp.transpose(x_nchw, (0, 2, 3, 1))                      # NCHW -> NHWC
    x = jnp.pad(x, ((0, 0), (0, 0), (0, 0), (0, cin_p - cin)))   # lane-pad C

    w1m = _pack_weights(w1, cin_p, cp)
    w2m = _pack_weights(w2, cp, cp)
    pad_c = lambda v: jnp.pad(v, (0, cp - v.shape[0]))

    y1 = _conv_bn_relu_stage(x, w1m, pad_c(g1), pad_c(be1), out_dtype=jnp.bfloat16)
    y2 = _conv_bn_relu_stage(y1, w2m, pad_c(g2), pad_c(be2), out_dtype=jnp.float32)

    return jnp.transpose(y2[..., :cout], (0, 3, 1, 2))           # NHWC -> NCHW


def init_params(key, in_channels, out_channels):
    """Deterministic synthetic parameters (shapes match the PyTorch module)."""
    k1, k2, k3, k4, k5, k6 = jax.random.split(key, 6)
    w1 = 0.1 * jax.random.normal(k1, (3, 3, in_channels, out_channels), jnp.float32)
    b1 = 0.1 * jax.random.normal(k2, (out_channels,), jnp.float32)
    g1 = 1.0 + 0.1 * jax.random.normal(k3, (out_channels,), jnp.float32)
    be1 = jnp.zeros((out_channels,), jnp.float32)
    w2 = 0.1 * jax.random.normal(k4, (3, 3, out_channels, out_channels), jnp.float32)
    b2 = 0.1 * jax.random.normal(k5, (out_channels,), jnp.float32)
    g2 = 1.0 + 0.1 * jax.random.normal(k6, (out_channels,), jnp.float32)
    be2 = jnp.zeros((out_channels,), jnp.float32)
    return (w1, b1, g1, be1, w2, b2, g2, be2)


def reference(x_nchw, params):
    """Pure-JAX f32 reference (lax conv + bias + training-mode BN + ReLU)."""
    w1, b1, g1, be1, w2, b2, g2, be2 = params

    def conv(x, w, b):  # w: (3, 3, Cin, Cout) -> OIHW
        wt = jnp.transpose(w, (3, 2, 0, 1))
        y = jax.lax.conv_general_dilated(
            x, wt, window_strides=(1, 1), padding=((1, 1), (1, 1)),
            dimension_numbers=("NCHW", "OIHW", "NCHW"))
        return y + b.reshape(1, -1, 1, 1)

    def bn_relu(x, g, be):
        mean = jnp.mean(x, axis=(0, 2, 3), keepdims=True)
        var = jnp.mean((x - mean) ** 2, axis=(0, 2, 3), keepdims=True)
        y = (x - mean) * jax.lax.rsqrt(var + EPS)
        return jnp.maximum(y * g.reshape(1, -1, 1, 1) + be.reshape(1, -1, 1, 1), 0.0)

    y = bn_relu(conv(x_nchw, w1, b1), g1, be1)
    return bn_relu(conv(y, w2, b2), g2, be2)


if __name__ == "__main__":
    key = jax.random.PRNGKey(0)
    kx, kp = jax.random.split(key)

    N, CIN, COUT, H, W = 2, 4, 8, 16, 16
    x = jax.random.normal(kx, (N, CIN, H, W), jnp.float32)
    params = init_params(kp, CIN, COUT)

    out = jax.block_until_ready(jax.jit(vgg_block)(x, params))
    ref = jax.block_until_ready(reference(x, params))

    assert out.shape == (N, COUT, H, W), out.shape
    err = float(jnp.max(jnp.abs(out - ref)))
    # Tolerance reflects bf16 matmul operands / activations (f32 accumulation,
    # f32 BN statistics); structural errors would be O(1).
    assert jnp.allclose(out, ref, atol=5e-2, rtol=5e-2), err
    print("KERNEL_OK")
</pallas_src>

<mosaic_0001>
module attributes {stable_mosaic.version = 11 : i64} {
  func.func @conv_stats_kernel(%arg0: i32, %arg1: i32, %arg2: memref<1x18x18x128xbf16, #tpu.memory_space<vmem>>, %arg3: memref<1152x128xbf16, #tpu.memory_space<vmem>>, %arg4: memref<256x128xbf16, #tpu.memory_space<vmem>>, %arg5: memref<2x128xf32, #tpu.memory_space<vmem>>) attributes {dimension_semantics = [#tpu.dimension_semantics<arbitrary>, #tpu.dimension_semantics<arbitrary>], iteration_bounds = array<i64: 2, 1>, scalar_prefetch = 0 : i64, scratch_operands = 0 : i64, tpu.core_type = #tpu.core_type<tc>, window_params = [{transform_indices = @transform_0, window_bounds = array<i64: 1, 18, 18, 128>}, {pipeline_mode = #tpu.pipeline_mode<synchronous>, transform_indices = @transform_1, window_bounds = array<i64: 1152, 128>}, {transform_indices = @transform_2, window_bounds = array<i64: 256, 128>}, {pipeline_mode = #tpu.pipeline_mode<synchronous>, transform_indices = @transform_3, window_bounds = array<i64: 2, 128>}]} {
    %c0_i32 = arith.constant 0 : i32
    %0 = arith.cmpi eq, %arg0, %c0_i32 : i32
    %c0_i32_0 = arith.constant 0 : i32
    %1 = arith.cmpi eq, %arg1, %c0_i32_0 : i32
    %2 = arith.andi %0, %1 : i1
    %3 = arith.extui %2 : i1 to i32
    %c0_i32_1 = arith.constant 0 : i32
    %4 = arith.cmpi ne, %3, %c0_i32_1 : i32
    scf.if %4 {
      %cst_60 = arith.constant 0.000000e+00 : f32
      %90 = vector.broadcast %cst_60 : f32 to vector<2x128xf32>
      %c0_61 = arith.constant 0 : index
      %c0_62 = arith.constant 0 : index
      %91 = vector.load %arg5[%c0_61, %c0_62] : memref<2x128xf32, #tpu.memory_space<vmem>>, vector<2x128xf32>
      tpu.vector_store %arg5[%c0_61, %c0_62], %90 {strides = array<i32>} : memref<2x128xf32, #tpu.memory_space<vmem>>, vector<2x128xf32>,
    } else {
    }
    %c16_i32 = arith.constant 16 : i32
    %5 = arith.muli %arg1, %c16_i32 : i32
    %cst = arith.constant 0.000000e+00 : f32
    %6 = vector.broadcast %cst : f32 to vector<256x128xf32>
    %c0_i32_2 = arith.constant 0 : i32
    %7 = arith.addi %5, %c0_i32_2 : i32
    %c0 = arith.constant 0 : index
    %8 = arith.index_cast %7 : i32 to index
    %c0_3 = arith.constant 0 : index
    %c0_4 = arith.constant 0 : index
    %9 = vector.load %arg2[%c0, %8, %c0_3, %c0_4] : memref<1x18x18x128xbf16, #tpu.memory_space<vmem>>, vector<1x16x16x128xbf16>
    %10 = vector.shape_cast %9 : vector<1x16x16x128xbf16> to vector<16x16x128xbf16>
    %11 = vector.shape_cast %10 : vector<16x16x128xbf16> to vector<256x128xbf16>
    %c0_5 = arith.constant 0 : index
    %c0_6 = arith.constant 0 : index
    %12 = vector.load %arg3[%c0_5, %c0_6] : memref<1152x128xbf16, #tpu.memory_space<vmem>>, vector<128x128xbf16>
    %cst_7 = arith.constant dense<0.000000e+00> : vector<256x128xf32>
    %13 = tpu.matmul %11, %12, %cst_7 {dimension_numbers = #tpu.dot_dimension_numbers<[1], [0], [0], [1], [0, 0, 1, 1], [], []>} : vector<256x128xbf16>, vector<128x128xbf16>, vector<256x128xf32> -> vector<256x128xf32>
    %14 = arith.addf %6, %13 : vector<256x128xf32>
    %c0_i32_8 = arith.constant 0 : i32
    %15 = arith.addi %5, %c0_i32_8 : i32
    %c0_9 = arith.constant 0 : index
    %16 = arith.index_cast %15 : i32 to index
    %c1 = arith.constant 1 : index
    %c0_10 = arith.constant 0 : index
    %17 = vector.load %arg2[%c0_9, %16, %c1, %c0_10] : memref<1x18x18x128xbf16, #tpu.memory_space<vmem>>, vector<1x16x16x128xbf16>
    %18 = vector.shape_cast %17 : vector<1x16x16x128xbf16> to vector<16x16x128xbf16>
    %19 = vector.shape_cast %18 : vector<16x16x128xbf16> to vector<256x128xbf16>
    %c128 = arith.constant 128 : index
    %c0_11 = arith.constant 0 : index
    %20 = vector.load %arg3[%c128, %c0_11] : memref<1152x128xbf16, #tpu.memory_space<vmem>>, vector<128x128xbf16>
    %cst_12 = arith.constant dense<0.000000e+00> : vector<256x128xf32>
    %21 = tpu.matmul %19, %20, %cst_12 {dimension_numbers = #tpu.dot_dimension_numbers<[1], [0], [0], [1], [0, 0, 1, 1], [], []>} : vector<256x128xbf16>, vector<128x128xbf16>, vector<256x128xf32> -> vector<256x128xf32>
    %22 = arith.addf %14, %21 : vector<256x128xf32>
    %c0_i32_13 = arith.constant 0 : i32
    %23 = arith.addi %5, %c0_i32_13 : i32
    %c0_14 = arith.constant 0 : index
    %24 = arith.index_cast %23 : i32 to index
    %c2 = arith.constant 2 : index
    %c0_15 = arith.constant 0 : index
    %25 = vector.load %arg2[%c0_14, %24, %c2, %c0_15] : memref<1x18x18x128xbf16, #tpu.memory_space<vmem>>, vector<1x16x16x128xbf16>
    %26 = vector.shape_cast %25 : vector<1x16x16x128xbf16> to vector<16x16x128xbf16>
    %27 = vector.shape_cast %26 : vector<16x16x128xbf16> to vector<256x128xbf16>
    %c256 = arith.constant 256 : index
    %c0_16 = arith.constant 0 : index
    %28 = vector.load %arg3[%c256, %c0_16] : memref<1152x128xbf16, #tpu.memory_space<vmem>>, vector<128x128xbf16>
    %cst_17 = arith.constant dense<0.000000e+00> : vector<256x128xf32>
    %29 = tpu.matmul %27, %28, %cst_17 {dimension_numbers = #tpu.dot_dimension_numbers<[1], [0], [0], [1], [0, 0, 1, 1], [], []>} : vector<256x128xbf16>, vector<128x128xbf16>, vector<256x128xf32> -> vector<256x128xf32>
    %30 = arith.addf %22, %29 : vector<256x128xf32>
    %c1_i32 = arith.constant 1 : i32
    %31 = arith.addi %5, %c1_i32 : i32
    %c0_18 = arith.constant 0 : index
    %32 = arith.index_cast %31 : i32 to index
    %c0_19 = arith.constant 0 : index
    %c0_20 = arith.constant 0 : index
    %33 = vector.load %arg2[%c0_18, %32, %c0_19, %c0_20] : memref<1x18x18x128xbf16, #tpu.memory_space<vmem>>, vector<1x16x16x128xbf16>
    %34 = vector.shape_cast %33 : vector<1x16x16x128xbf16> to vector<16x16x128xbf16>
    %35 = vector.shape_cast %34 : vector<16x16x128xbf16> to vector<256x128xbf16>
    %c384 = arith.constant 384 : index
    %c0_21 = arith.constant 0 : index
    %36 = vector.load %arg3[%c384, %c0_21] : memref<1152x128xbf16, #tpu.memory_space<vmem>>, vector<128x128xbf16>
    %cst_22 = arith.constant dense<0.000000e+00> : vector<256x128xf32>
    %37 = tpu.matmul %35, %36, %cst_22 {dimension_numbers = #tpu.dot_dimension_numbers<[1], [0], [0], [1], [0, 0, 1, 1], [], []>} : vector<256x128xbf16>, vector<128x128xbf16>, vector<256x128xf32> -> vector<256x128xf32>
    %38 = arith.addf %30, %37 : vector<256x128xf32>
    %c1_i32_23 = arith.constant 1 : i32
    %39 = arith.addi %5, %c1_i32_23 : i32
    %c0_24 = arith.constant 0 : index
    %40 = arith.index_cast %39 : i32 to index
    %c1_25 = arith.constant 1 : index
    %c0_26 = arith.constant 0 : index
    %41 = vector.load %arg2[%c0_24, %40, %c1_25, %c0_26] : memref<1x18x18x128xbf16, #tpu.memory_space<vmem>>, vector<1x16x16x128xbf16>
    %42 = vector.shape_cast %41 : vector<1x16x16x128xbf16> to vector<16x16x128xbf16>
    %43 = vector.shape_cast %42 : vector<16x16x128xbf16> to vector<256x128xbf16>
    %c512 = arith.constant 512 : index
    %c0_27 = arith.constant 0 : index
    %44 = vector.load %arg3[%c512, %c0_27] : memref<1152x128xbf16, #tpu.memory_space<vmem>>, vector<128x128xbf16>
    %cst_28 = arith.constant dense<0.000000e+00> : vector<256x128xf32>
    %45 = tpu.matmul %43, %44, %cst_28 {dimension_numbers = #tpu.dot_dimension_numbers<[1], [0], [0], [1], [0, 0, 1, 1], [], []>} : vector<256x128xbf16>, vector<128x128xbf16>, vector<256x128xf32> -> vector<256x128xf32>
    %46 = arith.addf %38, %45 : vector<256x128xf32>
    %c1_i32_29 = arith.constant 1 : i32
    %47 = arith.addi %5, %c1_i32_29 : i32
    %c0_30 = arith.constant 0 : index
    %48 = arith.index_cast %47 : i32 to index
    %c2_31 = arith.constant 2 : index
    %c0_32 = arith.constant 0 : index
    %49 = vector.load %arg2[%c0_30, %48, %c2_31, %c0_32] : memref<1x18x18x128xbf16, #tpu.memory_space<vmem>>, vector<1x16x16x128xbf16>
    %50 = vector.shape_cast %49 : vector<1x16x16x128xbf16> to vector<16x16x128xbf16>
    %51 = vector.shape_cast %50 : vector<16x16x128xbf16> to vector<256x128xbf16>
    %c640 = arith.constant 640 : index
    %c0_33 = arith.constant 0 : index
    %52 = vector.load %arg3[%c640, %c0_33] : memref<1152x128xbf16, #tpu.memory_space<vmem>>, vector<128x128xbf16>
    %cst_34 = arith.constant dense<0.000000e+00> : vector<256x128xf32>
    %53 = tpu.matmul %51, %52, %cst_34 {dimension_numbers = #tpu.dot_dimension_numbers<[1], [0], [0], [1], [0, 0, 1, 1], [], []>} : vector<256x128xbf16>, vector<128x128xbf16>, vector<256x128xf32> -> vector<256x128xf32>
    %54 = arith.addf %46, %53 : vector<256x128xf32>
    %c2_i32 = arith.constant 2 : i32
    %55 = arith.addi %5, %c2_i32 : i32
    %c0_35 = arith.constant 0 : index
    %56 = arith.index_cast %55 : i32 to index
    %c0_36 = arith.constant 0 : index
    %c0_37 = arith.constant 0 : index
    %57 = vector.load %arg2[%c0_35, %56, %c0_36, %c0_37] : memref<1x18x18x128xbf16, #tpu.memory_space<vmem>>, vector<1x16x16x128xbf16>
    %58 = vector.shape_cast %57 : vector<1x16x16x128xbf16> to vector<16x16x128xbf16>
    %59 = vector.shape_cast %58 : vector<16x16x128xbf16> to vector<256x128xbf16>
    %c768 = arith.constant 768 : index
    %c0_38 = arith.constant 0 : index
    %60 = vector.load %arg3[%c768, %c0_38] : memref<1152x128xbf16, #tpu.memory_space<vmem>>, vector<128x128xbf16>
    %cst_39 = arith.constant dense<0.000000e+00> : vector<256x128xf32>
    %61 = tpu.matmul %59, %60, %cst_39 {dimension_numbers = #tpu.dot_dimension_numbers<[1], [0], [0], [1], [0, 0, 1, 1], [], []>} : vector<256x128xbf16>, vector<128x128xbf16>, vector<256x128xf32> -> vector<256x128xf32>
    %62 = arith.addf %54, %61 : vector<256x128xf32>
    %c2_i32_40 = arith.constant 2 : i32
    %63 = arith.addi %5, %c2_i32_40 : i32
    %c0_41 = arith.constant 0 : index
    %64 = arith.index_cast %63 : i32 to index
    %c1_42 = arith.constant 1 : index
    %c0_43 = arith.constant 0 : index
    %65 = vector.load %arg2[%c0_41, %64, %c1_42, %c0_43] : memref<1x18x18x128xbf16, #tpu.memory_space<vmem>>, vector<1x16x16x128xbf16>
    %66 = vector.shape_cast %65 : vector<1x16x16x128xbf16> to vector<16x16x128xbf16>
    %67 = vector.shape_cast %66 : vector<16x16x128xbf16> to vector<256x128xbf16>
    %c896 = arith.constant 896 : index
    %c0_44 = arith.constant 0 : index
    %68 = vector.load %arg3[%c896, %c0_44] : memref<1152x128xbf16, #tpu.memory_space<vmem>>, vector<128x128xbf16>
    %cst_45 = arith.constant dense<0.000000e+00> : vector<256x128xf32>
    %69 = tpu.matmul %67, %68, %cst_45 {dimension_numbers = #tpu.dot_dimension_numbers<[1], [0], [0], [1], [0, 0, 1, 1], [], []>} : vector<256x128xbf16>, vector<128x128xbf16>, vector<256x128xf32> -> vector<256x128xf32>
    %70 = arith.addf %62, %69 : vector<256x128xf32>
    %c2_i32_46 = arith.constant 2 : i32
    %71 = arith.addi %5, %c2_i32_46 : i32
    %c0_47 = arith.constant 0 : index
    %72 = arith.index_cast %71 : i32 to index
    %c2_48 = arith.constant 2 : index
    %c0_49 = arith.constant 0 : index
    %73 = vector.load %arg2[%c0_47, %72, %c2_48, %c0_49] : memref<1x18x18x128xbf16, #tpu.memory_space<vmem>>, vector<1x16x16x128xbf16>
    %74 = vector.shape_cast %73 : vector<1x16x16x128xbf16> to vector<16x16x128xbf16>
    %75 = vector.shape_cast %74 : vector<16x16x128xbf16> to vector<256x128xbf16>
    %c1024 = arith.constant 1024 : index
    %c0_50 = arith.constant 0 : index
    %76 = vector.load %arg3[%c1024, %c0_50] : memref<1152x128xbf16, #tpu.memory_space<vmem>>, vector<128x128xbf16>
    %cst_51 = arith.constant dense<0.000000e+00> : vector<256x128xf32>
    %77 = tpu.matmul %75, %76, %cst_51 {dimension_numbers = #tpu.dot_dimension_numbers<[1], [0], [0], [1], [0, 0, 1, 1], [], []>} : vector<256x128xbf16>, vector<128x128xbf16>, vector<256x128xf32> -> vector<256x128xf32>
    %78 = arith.addf %70, %77 : vector<256x128xf32>
    %79 = arith.truncf %78 : vector<256x128xf32> to vector<256x128xbf16>
    %c0_52 = arith.constant 0 : index
    %c0_53 = arith.constant 0 : index
    %80 = vector.load %arg4[%c0_52, %c0_53] : memref<256x128xbf16, #tpu.memory_space<vmem>>, vector<256x128xbf16>
    tpu.vector_store %arg4[%c0_52, %c0_53], %79 {strides = array<i32>} : memref<256x128xbf16, #tpu.memory_space<vmem>>, vector<256x128xbf16>,
    %cst_54 = arith.constant dense<0.000000e+00> : vector<128xf32>
    %81 = vector.multi_reduction <add>, %78, %cst_54 [0] : vector<256x128xf32> to vector<128xf32>
    %82 = vector.shape_cast %81 : vector<128xf32> to vector<1x128xf32>
    %83 = arith.mulf %78, %78 : vector<256x128xf32>
    %cst_55 = arith.constant dense<0.000000e+00> : vector<128xf32>
    %84 = vector.multi_reduction <add>, %83, %cst_55 [0] : vector<256x128xf32> to vector<128xf32>
    %85 = vector.shape_cast %84 : vector<128xf32> to vector<1x128xf32>
    %86 = tpu.concatenate %82, %85 in 0 : vector<1x128xf32>, vector<1x128xf32> -> vector<2x128xf32>
    %c0_56 = arith.constant 0 : index
    %c0_57 = arith.constant 0 : index
    %87 = vector.load %arg5[%c0_56, %c0_57] : memref<2x128xf32, #tpu.memory_space<vmem>>, vector<2x128xf32>
    %88 = arith.addf %87, %86 : vector<2x128xf32>
    %c0_58 = arith.constant 0 : index
    %c0_59 = arith.constant 0 : index
    %89 = vector.load %arg5[%c0_58, %c0_59] : memref<2x128xf32, #tpu.memory_space<vmem>>, vector<2x128xf32>
    tpu.vector_store %arg5[%c0_58, %c0_59], %88 {strides = array<i32>} : memref<2x128xf32, #tpu.memory_space<vmem>>, vector<2x128xf32>,
    return
  }
  func.func @transform_0(%arg0: i32, %arg1: i32) -> (i32, i32, i32, i32) {
    %c0_i32 = arith.constant 0 : i32
    %c0_i32_0 = arith.constant 0 : i32
    %c0_i32_1 = arith.constant 0 : i32
    %c0_i32_2 = arith.constant 0 : i32
    return %arg0, %c0_i32, %c0_i32_0, %c0_i32_1 : i32, i32, i32, i32
  }
  func.func @transform_1(%arg0: i32, %arg1: i32) -> (i32, i32) {
    %c0_i32 = arith.constant 0 : i32
    %c0_i32_0 = arith.constant 0 : i32
    %c0_i32_1 = arith.constant 0 : i32
    return %c0_i32, %c0_i32_0 : i32, i32
  }
  func.func @transform_2(%arg0: i32, %arg1: i32) -> (i32, i32) {
    %c1_i32 = arith.constant 1 : i32
    %0 = arith.muli %arg0, %c1_i32 : i32
    %1 = arith.addi %0, %arg1 : i32
    %c0_i32 = arith.constant 0 : i32
    %c0_i32_0 = arith.constant 0 : i32
    return %1, %c0_i32 : i32, i32
  }
  func.func @transform_3(%arg0: i32, %arg1: i32) -> (i32, i32) {
    %c0_i32 = arith.constant 0 : i32
    %c0_i32_0 = arith.constant 0 : i32
    %c0_i32_1 = arith.constant 0 : i32
    return %c0_i32, %c0_i32_0 : i32, i32
  }
}

module attributes {stable_mosaic.version = 11 : i64} {
  func.func @bn_relu_kernel(%arg0: i32, %arg1: memref<2x128xf32, #tpu.memory_space<vmem>>, %arg2: memref<1x128xf32, #tpu.memory_space<vmem>>, %arg3: memref<1x128xf32, #tpu.memory_space<vmem>>, %arg4: memref<256x128xbf16, #tpu.memory_space<vmem>>, %arg5: memref<256x128xbf16, #tpu.memory_space<vmem>>) attributes {dimension_semantics = [#tpu.dimension_semantics<parallel>], iteration_bounds = array<i64: 2>, scalar_prefetch = 0 : i64, scratch_operands = 0 : i64, tpu.core_type = #tpu.core_type<tc>, window_params = [{pipeline_mode = #tpu.pipeline_mode<synchronous>, transform_indices = @transform_0, window_bounds = array<i64: 2, 128>}, {pipeline_mode = #tpu.pipeline_mode<synchronous>, transform_indices = @transform_1, window_bounds = array<i64: 1, 128>}, {pipeline_mode = #tpu.pipeline_mode<synchronous>, transform_indices = @transform_2, window_bounds = array<i64: 1, 128>}, {transform_indices = @transform_3, window_bounds = array<i64: 256, 128>}, {transform_indices = @transform_4, window_bounds = array<i64: 256, 128>}]} {
    %c0 = arith.constant 0 : index
    %c0_0 = arith.constant 0 : index
    %0 = vector.load %arg1[%c0, %c0_0] : memref<2x128xf32, #tpu.memory_space<vmem>>, vector<1x128xf32>
    %cst = arith.constant 0.001953125 : f32
    %1 = vector.broadcast %cst : f32 to vector<1x128xf32>
    %2 = arith.mulf %0, %1 : vector<1x128xf32>
    %c1 = arith.constant 1 : index
    %c0_1 = arith.constant 0 : index
    %3 = vector.load %arg1[%c1, %c0_1] : memref<2x128xf32, #tpu.memory_space<vmem>>, vector<1x128xf32>
    %cst_2 = arith.constant 0.001953125 : f32
    %4 = vector.broadcast %cst_2 : f32 to vector<1x128xf32>
    %5 = arith.mulf %3, %4 : vector<1x128xf32>
    %6 = arith.mulf %2, %2 : vector<1x128xf32>
    %7 = arith.subf %5, %6 : vector<1x128xf32>
    %cst_3 = arith.constant 0.000000e+00 : f32
    %8 = vector.broadcast %cst_3 : f32 to vector<1x128xf32>
    %9 = arith.maximumf %7, %8 : vector<1x128xf32>
    %c0_4 = arith.constant 0 : index
    %c0_5 = arith.constant 0 : index
    %10 = vector.load %arg2[%c0_4, %c0_5] : memref<1x128xf32, #tpu.memory_space<vmem>>, vector<1x128xf32>
    %cst_6 = arith.constant 9.99999974E-6 : f32
    %11 = vector.broadcast %cst_6 : f32 to vector<1x128xf32>
    %12 = arith.addf %9, %11 : vector<1x128xf32>
    %13 = math.rsqrt %12 : vector<1x128xf32>
    %14 = arith.mulf %10, %13 : vector<1x128xf32>
    %c0_7 = arith.constant 0 : index
    %c0_8 = arith.constant 0 : index
    %15 = vector.load %arg3[%c0_7, %c0_8] : memref<1x128xf32, #tpu.memory_space<vmem>>, vector<1x128xf32>
    %16 = arith.mulf %2, %14 : vector<1x128xf32>
    %17 = arith.subf %15, %16 : vector<1x128xf32>
    %c0_9 = arith.constant 0 : index
    %c0_10 = arith.constant 0 : index
    %18 = vector.load %arg4[%c0_9, %c0_10] : memref<256x128xbf16, #tpu.memory_space<vmem>>, vector<256x128xbf16>
    %19 = arith.extf %18 : vector<256x128xbf16> to vector<256x128xf32>
    %20 = vector.broadcast %14 : vector<1x128xf32> to vector<256x128xf32>
    %21 = arith.mulf %19, %20 : vector<256x128xf32>
    %22 = vector.broadcast %17 : vector<1x128xf32> to vector<256x128xf32>
    %23 = arith.addf %21, %22 : vector<256x128xf32>
    %cst_11 = arith.constant 0.000000e+00 : f32
    %24 = vector.broadcast %cst_11 : f32 to vector<256x128xf32>
    %25 = arith.maximumf %23, %24 : vector<256x128xf32>
    %26 = arith.truncf %25 : vector<256x128xf32> to vector<256x128xbf16>
    %c0_12 = arith.constant 0 : index
    %c0_13 = arith.constant 0 : index
    %27 = vector.load %arg5[%c0_12, %c0_13] : memref<256x128xbf16, #tpu.memory_space<vmem>>, vector<256x128xbf16>
    tpu.vector_store %arg5[%c0_12, %c0_13], %26 {strides = array<i32>} : memref<256x128xbf16, #tpu.memory_space<vmem>>, vector<256x128xbf16>,
    return
  }
  func.func @transform_0(%arg0: i32) -> (i32, i32) {
    %c0_i32 = arith.constant 0 : i32
    %c0_i32_0 = arith.constant 0 : i32
    %c0_i32_1 = arith.constant 0 : i32
    return %c0_i32, %c0_i32_0 : i32, i32
  }
  func.func @transform_1(%arg0: i32) -> (i32, i32) {
    %c0_i32 = arith.constant 0 : i32
    %c0_i32_0 = arith.constant 0 : i32
    %c0_i32_1 = arith.constant 0 : i32
    return %c0_i32, %c0_i32_0 : i32, i32
  }
  func.func @transform_2(%arg0: i32) -> (i32, i32) {
    %c0_i32 = arith.constant 0 : i32
    %c0_i32_0 = arith.constant 0 : i32
    %c0_i32_1 = arith.constant 0 : i32
    return %c0_i32, %c0_i32_0 : i32, i32
  }
  func.func @transform_3(%arg0: i32) -> (i32, i32) {
    %c0_i32 = arith.constant 0 : i32
    %c0_i32_0 = arith.constant 0 : i32
    return %arg0, %c0_i32 : i32, i32
  }
  func.func @transform_4(%arg0: i32) -> (i32, i32) {
    %c0_i32 = arith.constant 0 : i32
    %c0_i32_0 = arith.constant 0 : i32
    return %arg0, %c0_i32 : i32, i32
  }
}

module attributes {stable_mosaic.version = 11 : i64} {
  func.func @bn_relu_kernel(%arg0: i32, %arg1: memref<2x128xf32, #tpu.memory_space<vmem>>, %arg2: memref<1x128xf32, #tpu.memory_space<vmem>>, %arg3: memref<1x128xf32, #tpu.memory_space<vmem>>, %arg4: memref<256x128xbf16, #tpu.memory_space<vmem>>, %arg5: memref<256x128xf32, #tpu.memory_space<vmem>>) attributes {dimension_semantics = [#tpu.dimension_semantics<parallel>], iteration_bounds = array<i64: 2>, scalar_prefetch = 0 : i64, scratch_operands = 0 : i64, tpu.core_type = #tpu.core_type<tc>, window_params = [{pipeline_mode = #tpu.pipeline_mode<synchronous>, transform_indices = @transform_0, window_bounds = array<i64: 2, 128>}, {pipeline_mode = #tpu.pipeline_mode<synchronous>, transform_indices = @transform_1, window_bounds = array<i64: 1, 128>}, {pipeline_mode = #tpu.pipeline_mode<synchronous>, transform_indices = @transform_2, window_bounds = array<i64: 1, 128>}, {transform_indices = @transform_3, window_bounds = array<i64: 256, 128>}, {transform_indices = @transform_4, window_bounds = array<i64: 256, 128>}]} {
    %c0 = arith.constant 0 : index
    %c0_0 = arith.constant 0 : index
    %0 = vector.load %arg1[%c0, %c0_0] : memref<2x128xf32, #tpu.memory_space<vmem>>, vector<1x128xf32>
    %cst = arith.constant 0.001953125 : f32
    %1 = vector.broadcast %cst : f32 to vector<1x128xf32>
    %2 = arith.mulf %0, %1 : vector<1x128xf32>
    %c1 = arith.constant 1 : index
    %c0_1 = arith.constant 0 : index
    %3 = vector.load %arg1[%c1, %c0_1] : memref<2x128xf32, #tpu.memory_space<vmem>>, vector<1x128xf32>
    %cst_2 = arith.constant 0.001953125 : f32
    %4 = vector.broadcast %cst_2 : f32 to vector<1x128xf32>
    %5 = arith.mulf %3, %4 : vector<1x128xf32>
    %6 = arith.mulf %2, %2 : vector<1x128xf32>
    %7 = arith.subf %5, %6 : vector<1x128xf32>
    %cst_3 = arith.constant 0.000000e+00 : f32
    %8 = vector.broadcast %cst_3 : f32 to vector<1x128xf32>
    %9 = arith.maximumf %7, %8 : vector<1x128xf32>
    %c0_4 = arith.constant 0 : index
    %c0_5 = arith.constant 0 : index
    %10 = vector.load %arg2[%c0_4, %c0_5] : memref<1x128xf32, #tpu.memory_space<vmem>>, vector<1x128xf32>
    %cst_6 = arith.constant 9.99999974E-6 : f32
    %11 = vector.broadcast %cst_6 : f32 to vector<1x128xf32>
    %12 = arith.addf %9, %11 : vector<1x128xf32>
    %13 = math.rsqrt %12 : vector<1x128xf32>
    %14 = arith.mulf %10, %13 : vector<1x128xf32>
    %c0_7 = arith.constant 0 : index
    %c0_8 = arith.constant 0 : index
    %15 = vector.load %arg3[%c0_7, %c0_8] : memref<1x128xf32, #tpu.memory_space<vmem>>, vector<1x128xf32>
    %16 = arith.mulf %2, %14 : vector<1x128xf32>
    %17 = arith.subf %15, %16 : vector<1x128xf32>
    %c0_9 = arith.constant 0 : index
    %c0_10 = arith.constant 0 : index
    %18 = vector.load %arg4[%c0_9, %c0_10] : memref<256x128xbf16, #tpu.memory_space<vmem>>, vector<256x128xbf16>
    %19 = arith.extf %18 : vector<256x128xbf16> to vector<256x128xf32>
    %20 = vector.broadcast %14 : vector<1x128xf32> to vector<256x128xf32>
    %21 = arith.mulf %19, %20 : vector<256x128xf32>
    %22 = vector.broadcast %17 : vector<1x128xf32> to vector<256x128xf32>
    %23 = arith.addf %21, %22 : vector<256x128xf32>
    %cst_11 = arith.constant 0.000000e+00 : f32
    %24 = vector.broadcast %cst_11 : f32 to vector<256x128xf32>
    %25 = arith.maximumf %23, %24 : vector<256x128xf32>
    %c0_12 = arith.constant 0 : index
    %c0_13 = arith.constant 0 : index
    %26 = vector.load %arg5[%c0_12, %c0_13] : memref<256x128xf32, #tpu.memory_space<vmem>>, vector<256x128xf32>
    tpu.vector_store %arg5[%c0_12, %c0_13], %25 {strides = array<i32>} : memref<256x128xf32, #tpu.memory_space<vmem>>, vector<256x128xf32>,
    return
  }
  func.func @transform_0(%arg0: i32) -> (i32, i32) {
    %c0_i32 = arith.constant 0 : i32
    %c0_i32_0 = arith.constant 0 : i32
    %c0_i32_1 = arith.constant 0 : i32
    return %c0_i32, %c0_i32_0 : i32, i32
  }
  func.func @transform_1(%arg0: i32) -> (i32, i32) {
    %c0_i32 = arith.constant 0 : i32
    %c0_i32_0 = arith.constant 0 : i32
    %c0_i32_1 = arith.constant 0 : i32
    return %c0_i32, %c0_i32_0 : i32, i32
  }
  func.func @transform_2(%arg0: i32) -> (i32, i32) {
    %c0_i32 = arith.constant 0 : i32
    %c0_i32_0 = arith.constant 0 : i32
    %c0_i32_1 = arith.constant 0 : i32
    return %c0_i32, %c0_i32_0 : i32, i32
  }
  func.func @transform_3(%arg0: i32) -> (i32, i32) {
    %c0_i32 = arith.constant 0 : i32
    %c0_i32_0 = arith.constant 0 : i32
    return %arg0, %c0_i32 : i32, i32
  }
  func.func @transform_4(%arg0: i32) -> (i32, i32) {
    %c0_i32 = arith.constant 0 : i32
    %c0_i32_0 = arith.constant 0 : i32
    return %arg0, %c0_i32 : i32, i32
  }
}

</mosaic_0001>

<llo_original>
// kernel: vgg_block.7
$region0: #{vgg_block.7}
  #allocation0 [shape = 'u32[]', space=smem, size = 0x4, offset = 0x4, fixed_abs, tag = 'smem constant byte address 0x4 - core index']
  #allocation1 [shape = 'u32[144,128]{1,0:T(1,128)}', space=vmem, size = 0x12000, scoped, tag = 'internal scratch']
  %s0 = inlined_call_operand.vmem [shape: f32[2,128], index: 0, kind: input, shape index: {}]
  %s1 = inlined_call_operand.vmem [shape: f32[1,128], index: 1, kind: input, shape index: {}]
  %s2 = inlined_call_operand.vmem [shape: f32[1,128], index: 2, kind: input, shape index: {}]
  %s3 = inlined_call_operand.vmem [shape: bf16[512,128], index: 3, kind: input, shape index: {}]
  %s4 = inlined_call_operand.vmem [shape: f32[512,128], index: 4, kind: output, shape index: {}]
  %s5 = sld [smem:[#allocation0]]
  $region49: #{vgg_block.7} parent=0
    _
  %s7 = ssub.s32 1, %s5
  %s8 = scalar_select 0, %s7, %s5
  loop: start=0, step=1, limit=4
  $region2: #{vgg_block.7} parent=0 // loop_pre_header
    _
  $region3: #{vgg_block.7} parent=0 // loop_header
    %s10 = sphi 0, %s14
    %p11 = scmp.ge.s32.totalorder %s10, 4
    %s18 = sphi 0, %s18
    %s20 = sphi 0, %s18
    %s21 = sphi 0, %s20
    %s35 = sphi 0, %s21
    %s39 = sphi 0, %s39
    %s41 = sphi 0, %s39
    %s42 = sphi 0, %s41
    %s56 = sphi 0, %s42
    %s60 = sphi 0, %s60
    %s62 = sphi 0, %s60
    %s63 = sphi 0, %s62
    %s77 = sphi 0, %s63
    %s83 = sphi 0, %s85
    %s86 = sphi 0, %s83
    %s87 = sphi 0, %s86
    %s103 = sphi 0, %s87
    %s109 = sphi 0, %s111
    %s112 = sphi 0, %s109
    %s113 = sphi 0, %s112
    %s129 = sphi 0, %s113
  $region4: #{vgg_block.7} parent=0 // loop_header_branch
    %13 = sbr.rel (%p11) target = $region8
  $region5: #{vgg_block.7} parent=0 // loop_body
    %s15 = ssub.s32 %s10, 1
    %s16 = ssub.s32 %s10, 2
    %s17 = sadd.s32 %s10, 1
    %s19 = sadd.s32 %s18, 1
    %p22 = scmp.eq.s32.totalorder %s10, 1
    %p23 = scmp.ne.s32.totalorder %s18, %s20
    %p24 = scmp.eq.s32.totalorder %s10, 0
    %p25 = por %p23, %p24
    %p26 = scmp.ne.s32.totalorder %s18, %s20
    %p27 = scmp.eq.s32.totalorder %s15, 1
    %p28 = por %p26, %p27
    %p29 = scmp.ne.s32.totalorder %s20, %s21
    %p30 = scmp.eq.s32.totalorder %s15, 0
    %p31 = por %p29, %p30
    %p32 = scmp.ne.s32.totalorder %s20, %s21
    %p33 = scmp.eq.s32.totalorder %s16, 1
    %p34 = por %p32, %p33
    %p36 = scmp.ne.s32.totalorder %s21, %s35
    %p37 = scmp.eq.s32.totalorder %s16, 0
    %p38 = por %p36, %p37
    %s40 = sadd.s32 %s39, 1
    %p43 = scmp.eq.s32.totalorder %s10, 1
    %p44 = scmp.ne.s32.totalorder %s39, %s41
    %p45 = scmp.eq.s32.totalorder %s10, 0
    %p46 = por %p44, %p45
    %p47 = scmp.ne.s32.totalorder %s39, %s41
    %p48 = scmp.eq.s32.totalorder %s15, 1
    %p49 = por %p47, %p48
    %p50 = scmp.ne.s32.totalorder %s41, %s42
    %p51 = scmp.eq.s32.totalorder %s15, 0
    %p52 = por %p50, %p51
    %p53 = scmp.ne.s32.totalorder %s41, %s42
    %p54 = scmp.eq.s32.totalorder %s16, 1
    %p55 = por %p53, %p54
    %p57 = scmp.ne.s32.totalorder %s42, %s56
    %p58 = scmp.eq.s32.totalorder %s16, 0
    %p59 = por %p57, %p58
    %s61 = sadd.s32 %s60, 1
    %p64 = scmp.eq.s32.totalorder %s10, 1
    %p65 = scmp.ne.s32.totalorder %s60, %s62
    %p66 = scmp.eq.s32.totalorder %s10, 0
    %p67 = por %p65, %p66
    %p68 = scmp.ne.s32.totalorder %s60, %s62
    %p69 = scmp.eq.s32.totalorder %s15, 1
    %p70 = por %p68, %p69
    %p71 = scmp.ne.s32.totalorder %s62, %s63
    %p72 = scmp.eq.s32.totalorder %s15, 0
    %p73 = por %p71, %p72
    %p74 = scmp.ne.s32.totalorder %s62, %s63
    %p75 = scmp.eq.s32.totalorder %s16, 1
    %p76 = por %p74, %p75
    %p78 = scmp.ne.s32.totalorder %s63, %s77
    %p79 = scmp.eq.s32.totalorder %s16, 0
    %p80 = por %p78, %p79
    %s81 = ssub.s32 %s10, %s17
    %p82 = scmp.eq.s32.totalorder %s81, 0
    %s84 = sadd.s32 %s83, 1
    %s85 = scalar_select %p82, %s83, %s84
    %p88 = pneg %p82
    %p89 = scmp.eq.s32.totalorder %s10, 1
    %p90 = por %p88, %p89
    %p91 = scmp.ne.s32.totalorder %s83, %s86
    %p92 = scmp.eq.s32.totalorder %s10, 0
    %p93 = por %p91, %p92
    %p94 = scmp.ne.s32.totalorder %s83, %s86
    %p95 = scmp.eq.s32.totalorder %s15, 1
    %p96 = por %p94, %p95
    %p97 = scmp.ne.s32.totalorder %s86, %s87
    %p98 = scmp.eq.s32.totalorder %s15, 0
    %p99 = por %p97, %p98
    %p100 = scmp.ne.s32.totalorder %s86, %s87
    %p101 = scmp.eq.s32.totalorder %s16, 1
    %p102 = por %p100, %p101
    %p104 = scmp.ne.s32.totalorder %s87, %s103
    %p105 = scmp.eq.s32.totalorder %s16, 0
    %p106 = por %p104, %p105
    %s107 = ssub.s32 %s10, %s17
    %p108 = scmp.eq.s32.totalorder %s107, 0
    %s110 = sadd.s32 %s109, 1
    %s111 = scalar_select %p108, %s109, %s110
    %p114 = pneg %p108
    %p115 = scmp.eq.s32.totalorder %s10, 1
    %p116 = por %p114, %p115
    %p117 = scmp.ne.s32.totalorder %s109, %s112
    %p118 = scmp.eq.s32.totalorder %s10, 0
    %p119 = por %p117, %p118
    %p120 = scmp.ne.s32.totalorder %s109, %s112
    %p121 = scmp.eq.s32.totalorder %s15, 1
    %p122 = por %p120, %p121
    %p123 = scmp.ne.s32.totalorder %s112, %s113
    %p124 = scmp.eq.s32.totalorder %s15, 0
    %p125 = por %p123, %p124
    %p126 = scmp.ne.s32.totalorder %s112, %s113
    %p127 = scmp.eq.s32.totalorder %s16, 1
    %p128 = por %p126, %p127
    %p130 = scmp.ne.s32.totalorder %s113, %s129
    %p131 = scmp.eq.s32.totalorder %s16, 0
    %p132 = por %p130, %p131
    %p133 = scmp.le.s32.totalorder 1, %s10
    %p134 = scmp.lt.s32.totalorder %s10, 3
    %p135 = pnand %p133, %p134
    %p136 = pneg %p135
    // Predicated region
    $region9: #{vgg_block.7} parent=5 // pred_check
      _
    $region10: #{vgg_block.7} parent=5 // pred_check_branch
      %138 = sbr.rel (%p135) target = $region12
    $region11: #{vgg_block.7} parent=5 // pred_region
      %s139 = ssub.s32 %s10, 1
      // Predicated region
      $region13: #{vgg_block.7} parent=11 // pred_check
        %p140 = pneg %p31
      $region14: #{vgg_block.7} parent=11 // pred_check_branch
        %142 = sbr.rel (%p140) target = $region16
      $region15: #{vgg_block.7} parent=11 // pred_region
        _
      $region16: #{vgg_block.7} parent=11 // pred_fallthru
        _
      // Predicated region
      $region17: #{vgg_block.7} parent=11 // pred_check
        %p143 = pneg %p52
      $region18: #{vgg_block.7} parent=11 // pred_check_branch
        %145 = sbr.rel (%p143) target = $region20
      $region19: #{vgg_block.7} parent=11 // pred_region
        _
      $region20: #{vgg_block.7} parent=11 // pred_fallthru
        _
      // Predicated region
      $region21: #{vgg_block.7} parent=11 // pred_check
        %p146 = pneg %p73
      $region22: #{vgg_block.7} parent=11 // pred_check_branch
        %148 = sbr.rel (%p146) target = $region24
      $region23: #{vgg_block.7} parent=11 // pred_region
        _
      $region24: #{vgg_block.7} parent=11 // pred_fallthru
        _
    $region12: #{vgg_block.7} parent=5 // pred_fallthru
      _
    %p149 = scmp.lt.s32.totalorder %s10, 2
    // Predicated region
    $region25: #{vgg_block.7} parent=5 // pred_check
      %p150 = pneg %p149
    $region26: #{vgg_block.7} parent=5 // pred_check_branch
      %152 = sbr.rel (%p150) target = $region28
    $region27: #{vgg_block.7} parent=5 // pred_region
      // Predicated region
      $region29: #{vgg_block.7} parent=27 // pred_check
        %p153 = pneg %p93
      $region30: #{vgg_block.7} parent=27 // pred_check_branch
        %155 = sbr.rel (%p153) target = $region32
      $region31: #{vgg_block.7} parent=27 // pred_region
        %s156 = smul.u32 32, %s10
        %p157 = scmp.lt.s32.totalorder %s156, 63
        %s158 = scalar_select %p157, %s156, 63
        %s159 = smul.addr %s158, 4
        %s160 = scalar_lea.vmem %s3, %s159
        %s161 = smul.u32 32, %s10
      $region32: #{vgg_block.7} parent=27 // pred_fallthru
        _
    $region28: #{vgg_block.7} parent=5 // pred_fallthru
      _
    %p162 = scmp.le.s32.totalorder 1, %s10
    %p163 = scmp.lt.s32.totalorder %s10, 3
    %p164 = pnand %p162, %p163
    %p165 = pneg %p164
    // Predicated region
    $region33: #{vgg_block.7} parent=5 // pred_check
      _
    $region34: #{vgg_block.7} parent=5 // pred_check_branch
      %167 = sbr.rel (%p164) target = $region36
    $region35: #{vgg_block.7} parent=5 // pred_region
      %s168 = ssub.s32 %s10, 1
      %p169 = pneg %p31
      %p170 = pneg %p28
      %p171 = pneg %p52
      %p172 = pneg %p49
      %p173 = pneg %p73
      %p174 = pneg %p70
      %s175 = smul.u32 32, %s15
      %p176 = scmp.lt.s32.totalorder %s175, 63
      %s177 = scalar_select %p176, %s175, 63
      %s178 = smul.addr %s177, 4
      %s179 = scalar_lea.vmem %s3, %s178
      %p180 = pneg %p99
      %p181 = pneg %p96
      %p182 = pneg %p125
      %p183 = pneg %p122
      %s184 = smul.u32 32, %s15
      %p185 = scmp.lt.s32.totalorder %s184, 63
      %s186 = scalar_select %p185, %s184, 63
      %s187 = smul.addr %s186, 8
      %s188 = scalar_lea.vmem %s4, %s187
      %s189 = smul.u32 32, %s15
      %p190 = scmp.lt.s32.totalorder %s189, 63
      %s191 = scalar_select %p190, %s189, 63
      %s192 = smul.addr %s191, 4
      %s193 = scalar_lea.vmem %s3, %s192
      %s194 = smul.u32 32, %s15
      %s195 = smul.u32 32, %s15
      %p196 = scmp.lt.s32.totalorder %s195, 63
      %s197 = scalar_select %p196, %s195, 63
      %s198 = smul.addr %s197, 8
      %s199 = scalar_lea.vmem %s4, %s198
      %s200 = smul.u32 32, %s15
      %v201 = vld [vmem:[%s0] sm:$0x1]
      %v202 = vmul.f32 %v201, 0.001953125
      %v203 = vld [vmem:[%s0 + $0x1] sm:$0x1]
      %v204 = vmul.f32 %v203, 0.001953125
      %v205 = vmul.f32 %v202, %v202
      %v206 = vsub.f32 %v204, %v205
      %v207 = vmax.f32 %v206, 0.0
      %v208 = vld [vmem:[%s1] sm:$0x1]
      %v209 = vadd.f32 %v207, 1e-05
      %v210 = vrsqrt.pop %v209
      %v211 = vmul.f32 %v208, %v210
      %v212 = vld [vmem:[%s2] sm:$0x1]
      %v213 = vmul.f32 %v202, %v211
      %v214 = vsub.f32 %v212, %v213
      %v215 = vld [vmem:[%s193] sm:$0xf]
      %v216 = vld [vmem:[%s193 + $0x4] sm:$0xf]
      %v217 = vld [vmem:[%s193 + $0x8] sm:$0xf]
      %v218 = vld [vmem:[%s193 + $0xc] sm:$0xf]
      %v219 = vld [vmem:[%s193 + $0x10] sm:$0xf]
      %v220 = vld [vmem:[%s193 + $0x14] sm:$0xf]
      %v221 = vld [vmem:[%s193 + $0x18] sm:$0xf]
      %v222 = vld [vmem:[%s193 + $0x1c] sm:$0xf]
      %v223 = vld [vmem:[%s193 + $0x20] sm:$0xf]
      %v224 = vld [vmem:[%s193 + $0x24] sm:$0xf]
      %v225 = vld [vmem:[%s193 + $0x28] sm:$0xf]
      %v226 = vld [vmem:[%s193 + $0x2c] sm:$0xf]
      %v227 = vld [vmem:[%s193 + $0x30] sm:$0xf]
      %v228 = vld [vmem:[%s193 + $0x34] sm:$0xf]
      %v229 = vld [vmem:[%s193 + $0x38] sm:$0xf]
      %v230 = vld [vmem:[%s193 + $0x3c] sm:$0xf]
      %v231 = vld [vmem:[%s193 + $0x40] sm:$0xf]
      %v232 = vld [vmem:[%s193 + $0x44] sm:$0xf]
      %v233 = vld [vmem:[%s193 + $0x48] sm:$0xf]
      %v234 = vld [vmem:[%s193 + $0x4c] sm:$0xf]
      %v235 = vld [vmem:[%s193 + $0x50] sm:$0xf]
      %v236 = vld [vmem:[%s193 + $0x54] sm:$0xf]
      %v237 = vld [vmem:[%s193 + $0x58] sm:$0xf]
      %v238 = vld [vmem:[%s193 + $0x5c] sm:$0xf]
      %v239 = vld [vmem:[%s193 + $0x60] sm:$0xf]
      %v240 = vld [vmem:[%s193 + $0x64] sm:$0xf]
      %v241 = vld [vmem:[%s193 + $0x68] sm:$0xf]
      %v242 = vld [vmem:[%s193 + $0x6c] sm:$0xf]
      %v243 = vld [vmem:[%s193 + $0x70] sm:$0xf]
      %v244 = vld [vmem:[%s193 + $0x74] sm:$0xf]
      %v245 = vld [vmem:[%s193 + $0x78] sm:$0xf]
      %v246 = vld [vmem:[%s193 + $0x7c] sm:$0xf]
      %v247 = vunpack.c.l.bf16 %v215
      %v248 = vunpack.c.l.bf16 %v216
      %v249 = vunpack.c.l.bf16 %v217
      %v250 = vunpack.c.l.bf16 %v218
      %v251 = vunpack.c.l.bf16 %v219
      %v252 = vunpack.c.l.bf16 %v220
      %v253 = vunpack.c.l.bf16 %v221
      %v254 = vunpack.c.l.bf16 %v222
      %v255 = vunpack.c.l.bf16 %v223
      %v256 = vunpack.c.l.bf16 %v224
      %v257 = vunpack.c.l.bf16 %v225
      %v258 = vunpack.c.l.bf16 %v226
      %v259 = vunpack.c.l.bf16 %v227
      %v260 = vunpack.c.l.bf16 %v228
      %v261 = vunpack.c.l.bf16 %v229
      %v262 = vunpack.c.l.bf16 %v230
      %v263 = vunpack.c.l.bf16 %v231
      %v264 = vunpack.c.l.bf16 %v232
      %v265 = vunpack.c.l.bf16 %v233
      %v266 = vunpack.c.l.bf16 %v234
      %v267 = vunpack.c.l.bf16 %v235
      %v268 = vunpack.c.l.bf16 %v236
      %v269 = vunpack.c.l.bf16 %v237
      %v270 = vunpack.c.l.bf16 %v238
      %v271 = vunpack.c.l.bf16 %v239
      %v272 = vunpack.c.l.bf16 %v240
      %v273 = vunpack.c.l.bf16 %v241
      %v274 = vunpack.c.l.bf16 %v242
      %v275 = vunpack.c.l.bf16 %v243
      %v276 = vunpack.c.l.bf16 %v244
      %v277 = vunpack.c.l.bf16 %v245
      %v278 = vunpack.c.l.bf16 %v246
      %v280 = vlaneseq
      %v281 = vshrl.u32 %v280, 7
      %v282 = vsub.s32 0, %v281
      %v283 = vrot.slane %v211, %v282
      %v285 = vmul.f32 %v247, %v283
      %v286 = vmul.f32 %v248, %v283
      %v287 = vmul.f32 %v249, %v283
      %v288 = vmul.f32 %v250, %v283
      %v289 = vmul.f32 %v251, %v283
      %v290 = vmul.f32 %v252, %v283
      %v291 = vmul.f32 %v253, %v283
      %v292 = vmul.f32 %v254, %v283
      %v293 = vmul.f32 %v255, %v283
      %v294 = vmul.f32 %v256, %v283
      %v295 = vmul.f32 %v257, %v283
      %v296 = vmul.f32 %v258, %v283
      %v297 = vmul.f32 %v259, %v283
      %v298 = vmul.f32 %v260, %v283
      %v299 = vmul.f32 %v261, %v283
      %v300 = vmul.f32 %v262, %v283
      %v301 = vmul.f32 %v263, %v283
      %v302 = vmul.f32 %v264, %v283
      %v303 = vmul.f32 %v265, %v283
      %v304 = vmul.f32 %v266, %v283
      %v305 = vmul.f32 %v267, %v283
      %v306 = vmul.f32 %v268, %v283
      %v307 = vmul.f32 %v269, %v283
      %v308 = vmul.f32 %v270, %v283
      %v309 = vmul.f32 %v271, %v283
      %v310 = vmul.f32 %v272, %v283
      %v311 = vmul.f32 %v273, %v283
      %v312 = vmul.f32 %v274, %v283
      %v313 = vmul.f32 %v275, %v283
      %v314 = vmul.f32 %v276, %v283
      %v315 = vmul.f32 %v277, %v283
      %v316 = vmul.f32 %v278, %v283
      %v318 = vlaneseq
      %v319 = vshrl.u32 %v318, 7
      %v320 = vsub.s32 0, %v319
      %v321 = vrot.slane %v214, %v320
      %v323 = vadd.f32 %v285, %v321
      %v324 = vadd.f32 %v286, %v321
      %v325 = vadd.f32 %v287, %v321
      %v326 = vadd.f32 %v288, %v321
      %v327 = vadd.f32 %v289, %v321
      %v328 = vadd.f32 %v290, %v321
      %v329 = vadd.f32 %v291, %v321
      %v330 = vadd.f32 %v292, %v321
      %v331 = vadd.f32 %v293, %v321
      %v332 = vadd.f32 %v294, %v321
      %v333 = vadd.f32 %v295, %v321
      %v334 = vadd.f32 %v296, %v321
      %v335 = vadd.f32 %v297, %v321
      %v336 = vadd.f32 %v298, %v321
      %v337 = vadd.f32 %v299, %v321
      %v338 = vadd.f32 %v300, %v321
      %v339 = vadd.f32 %v301, %v321
      %v340 = vadd.f32 %v302, %v321
      %v341 = vadd.f32 %v303, %v321
      %v342 = vadd.f32 %v304, %v321
      %v343 = vadd.f32 %v305, %v321
      %v344 = vadd.f32 %v306, %v321
      %v345 = vadd.f32 %v307, %v321
      %v346 = vadd.f32 %v308, %v321
      %v347 = vadd.f32 %v309, %v321
      %v348 = vadd.f32 %v310, %v321
      %v349 = vadd.f32 %v311, %v321
      %v350 = vadd.f32 %v312, %v321
      %v351 = vadd.f32 %v313, %v321
      %v352 = vadd.f32 %v314, %v321
      %v353 = vadd.f32 %v315, %v321
      %v354 = vadd.f32 %v316, %v321
      %v355 = vmax.f32 %v323, 0.0
      %v356 = vmax.f32 %v324, 0.0
      %v357 = vmax.f32 %v325, 0.0
      %v358 = vmax.f32 %v326, 0.0
      %v359 = vmax.f32 %v327, 0.0
      %v360 = vmax.f32 %v328, 0.0
      %v361 = vmax.f32 %v329, 0.0
      %v362 = vmax.f32 %v330, 0.0
      %v363 = vmax.f32 %v331, 0.0
      %v364 = vmax.f32 %v332, 0.0
      %v365 = vmax.f32 %v333, 0.0
      %v366 = vmax.f32 %v334, 0.0
      %v367 = vmax.f32 %v335, 0.0
      %v368 = vmax.f32 %v336, 0.0
      %v369 = vmax.f32 %v337, 0.0
      %v370 = vmax.f32 %v338, 0.0
      %v371 = vmax.f32 %v339, 0.0
      %v372 = vmax.f32 %v340, 0.0
      %v373 = vmax.f32 %v341, 0.0
      %v374 = vmax.f32 %v342, 0.0
      %v375 = vmax.f32 %v343, 0.0
      %v376 = vmax.f32 %v344, 0.0
      %v377 = vmax.f32 %v345, 0.0
      %v378 = vmax.f32 %v346, 0.0
      %v379 = vmax.f32 %v347, 0.0
      %v380 = vmax.f32 %v348, 0.0
      %v381 = vmax.f32 %v349, 0.0
      %v382 = vmax.f32 %v350, 0.0
      %v383 = vmax.f32 %v351, 0.0
      %v384 = vmax.f32 %v352, 0.0
      %v385 = vmax.f32 %v353, 0.0
      %v386 = vmax.f32 %v354, 0.0
      %387 = vst [vmem:[%s199] sm:$0xff] %v355
      %388 = vst [vmem:[%s199 + $0x8] sm:$0xff] %v356
      %389 = vst [vmem:[%s199 + $0x10] sm:$0xff] %v357
      %390 = vst [vmem:[%s199 + $0x18] sm:$0xff] %v358
      %391 = vst [vmem:[%s199 + $0x20] sm:$0xff] %v359
      %392 = vst [vmem:[%s199 + $0x28] sm:$0xff] %v360
      %393 = vst [vmem:[%s199 + $0x30] sm:$0xff] %v361
      %394 = vst [vmem:[%s199 + $0x38] sm:$0xff] %v362
      %395 = vst [vmem:[%s199 + $0x40] sm:$0xff] %v363
      %396 = vst [vmem:[%s199 + $0x48] sm:$0xff] %v364
      %397 = vst [vmem:[%s199 + $0x50] sm:$0xff] %v365
      %398 = vst [vmem:[%s199 + $0x58] sm:$0xff] %v366
      %399 = vst [vmem:[%s199 + $0x60] sm:$0xff] %v367
      %400 = vst [vmem:[%s199 + $0x68] sm:$0xff] %v368
      %401 = vst [vmem:[%s199 + $0x70] sm:$0xff] %v369
      %402 = vst [vmem:[%s199 + $0x78] sm:$0xff] %v370
      %403 = vst [vmem:[%s199 + $0x80] sm:$0xff] %v371
      %404 = vst [vmem:[%s199 + $0x88] sm:$0xff] %v372
      %405 = vst [vmem:[%s199 + $0x90] sm:$0xff] %v373
      %406 = vst [vmem:[%s199 + $0x98] sm:$0xff] %v374
      %407 = vst [vmem:[%s199 + $0xa0] sm:$0xff] %v375
      %408 = vst [vmem:[%s199 + $0xa8] sm:$0xff] %v376
      %409 = vst [vmem:[%s199 + $0xb0] sm:$0xff] %v377
      %410 = vst [vmem:[%s199 + $0xb8] sm:$0xff] %v378
      %411 = vst [vmem:[%s199 + $0xc0] sm:$0xff] %v379
      %412 = vst [vmem:[%s199 + $0xc8] sm:$0xff] %v380
      %413 = vst [vmem:[%s199 + $0xd0] sm:$0xff] %v381
      %414 = vst [vmem:[%s199 + $0xd8] sm:$0xff] %v382
      %415 = vst [vmem:[%s199 + $0xe0] sm:$0xff] %v383
      %416 = vst [vmem:[%s199 + $0xe8] sm:$0xff] %v384
      %417 = vst [vmem:[%s199 + $0xf0] sm:$0xff] %v385
      %418 = vst [vmem:[%s199 + $0xf8] sm:$0xff] %v386
      %s419 = smul.u32 32, %s15
      %p420 = scmp.lt.s32.totalorder %s419, 63
      %s421 = scalar_select %p420, %s419, 63
      %s422 = smul.addr %s421, 8
      %s423 = scalar_lea.vmem %s4, %s422
      // Predicated region
      $region37: #{vgg_block.7} parent=35 // pred_check
        %p424 = pneg %p122
      $region38: #{vgg_block.7} parent=35 // pred_check_branch
        %426 = sbr.rel (%p424) target = $region40
      $region39: #{vgg_block.7} parent=35 // pred_region
        %s427 = smul.u32 32, %s15
      $region40: #{vgg_block.7} parent=35 // pred_fallthru
        _
    $region36: #{vgg_block.7} parent=5 // pred_fallthru
      _
    %p428 = scmp.le.s32.totalorder 2, %s10
    // Predicated region
    $region41: #{vgg_block.7} parent=5 // pred_check
      %p429 = pneg %p428
    $region42: #{vgg_block.7} parent=5 // pred_check_branch
      %431 = sbr.rel (%p429) target = $region44
    $region43: #{vgg_block.7} parent=5 // pred_region
      %s432 = ssub.s32 %s10, 2
      // Predicated region
      $region45: #{vgg_block.7} parent=43 // pred_check
        %p433 = pneg %p128
      $region46: #{vgg_block.7} parent=43 // pred_check_branch
        %435 = sbr.rel (%p433) target = $region48
      $region47: #{vgg_block.7} parent=43 // pred_region
        %s436 = smul.u32 32, %s16
        %p437 = scmp.lt.s32.totalorder %s436, 63
        %s438 = scalar_select %p437, %s436, 63
        %s439 = smul.addr %s438, 8
        %s440 = scalar_lea.vmem %s4, %s439
      $region48: #{vgg_block.7} parent=43 // pred_fallthru
        _
    $region44: #{vgg_block.7} parent=5 // pred_fallthru
      _
  $region6: #{vgg_block.7} parent=0 // loop_footer
    %s14 = sadd.s32 1, %s10
  $region7: #{vgg_block.7} parent=0 // loop_footer_branch
    %9 = sbr.rel target = $region3
  $region8: #{vgg_block.7} parent=0 // loop_exit
    _

// kernel: vgg_block.5
$region0: #{vgg_block.5}
  #allocation0 [shape = 'u32[]', space=smem, size = 0x4, offset = 0x4, fixed_abs, tag = 'smem constant byte address 0x4 - core index']
  #allocation1 [shape = 'u32[144,128]{1,0:T(1,128)}', space=vmem, size = 0x12000, scoped, tag = 'internal scratch']
  %s0 = inlined_call_operand.vmem [shape: f32[2,128], index: 0, kind: input, shape index: {}]
  %s1 = inlined_call_operand.vmem [shape: f32[1,128], index: 1, kind: input, shape index: {}]
  %s2 = inlined_call_operand.vmem [shape: f32[1,128], index: 2, kind: input, shape index: {}]
  %s3 = inlined_call_operand.vmem [shape: bf16[512,128], index: 3, kind: input, shape index: {}]
  %s4 = inlined_call_operand.vmem [shape: bf16[512,128], index: 4, kind: output, shape index: {}]
  %s5 = sld [smem:[#allocation0]]
  $region49: #{vgg_block.5} parent=0
    _
  %s7 = ssub.s32 1, %s5
  %s8 = scalar_select 0, %s7, %s5
  loop: start=0, step=1, limit=4
  $region2: #{vgg_block.5} parent=0 // loop_pre_header
    _
  $region3: #{vgg_block.5} parent=0 // loop_header
    %s10 = sphi 0, %s14
    %p11 = scmp.ge.s32.totalorder %s10, 4
    %s18 = sphi 0, %s18
    %s20 = sphi 0, %s18
    %s21 = sphi 0, %s20
    %s35 = sphi 0, %s21
    %s39 = sphi 0, %s39
    %s41 = sphi 0, %s39
    %s42 = sphi 0, %s41
    %s56 = sphi 0, %s42
    %s60 = sphi 0, %s60
    %s62 = sphi 0, %s60
    %s63 = sphi 0, %s62
    %s77 = sphi 0, %s63
    %s83 = sphi 0, %s85
    %s86 = sphi 0, %s83
    %s87 = sphi 0, %s86
    %s103 = sphi 0, %s87
    %s109 = sphi 0, %s111
    %s112 = sphi 0, %s109
    %s113 = sphi 0, %s112
    %s129 = sphi 0, %s113
  $region4: #{vgg_block.5} parent=0 // loop_header_branch
    %13 = sbr.rel (%p11) target = $region8
  $region5: #{vgg_block.5} parent=0 // loop_body
    %s15 = ssub.s32 %s10, 1
    %s16 = ssub.s32 %s10, 2
    %s17 = sadd.s32 %s10, 1
    %s19 = sadd.s32 %s18, 1
    %p22 = scmp.eq.s32.totalorder %s10, 1
    %p23 = scmp.ne.s32.totalorder %s18, %s20
    %p24 = scmp.eq.s32.totalorder %s10, 0
    %p25 = por %p23, %p24
    %p26 = scmp.ne.s32.totalorder %s18, %s20
    %p27 = scmp.eq.s32.totalorder %s15, 1
    %p28 = por %p26, %p27
    %p29 = scmp.ne.s32.totalorder %s20, %s21
    %p30 = scmp.eq.s32.totalorder %s15, 0
    %p31 = por %p29, %p30
    %p32 = scmp.ne.s32.totalorder %s20, %s21
    %p33 = scmp.eq.s32.totalorder %s16, 1
    %p34 = por %p32, %p33
    %p36 = scmp.ne.s32.totalorder %s21, %s35
    %p37 = scmp.eq.s32.totalorder %s16, 0
    %p38 = por %p36, %p37
    %s40 = sadd.s32 %s39, 1
    %p43 = scmp.eq.s32.totalorder %s10, 1
    %p44 = scmp.ne.s32.totalorder %s39, %s41
    %p45 = scmp.eq.s32.totalorder %s10, 0
    %p46 = por %p44, %p45
    %p47 = scmp.ne.s32.totalorder %s39, %s41
    %p48 = scmp.eq.s32.totalorder %s15, 1
    %p49 = por %p47, %p48
    %p50 = scmp.ne.s32.totalorder %s41, %s42
    %p51 = scmp.eq.s32.totalorder %s15, 0
    %p52 = por %p50, %p51
    %p53 = scmp.ne.s32.totalorder %s41, %s42
    %p54 = scmp.eq.s32.totalorder %s16, 1
    %p55 = por %p53, %p54
    %p57 = scmp.ne.s32.totalorder %s42, %s56
    %p58 = scmp.eq.s32.totalorder %s16, 0
    %p59 = por %p57, %p58
    %s61 = sadd.s32 %s60, 1
    %p64 = scmp.eq.s32.totalorder %s10, 1
    %p65 = scmp.ne.s32.totalorder %s60, %s62
    %p66 = scmp.eq.s32.totalorder %s10, 0
    %p67 = por %p65, %p66
    %p68 = scmp.ne.s32.totalorder %s60, %s62
    %p69 = scmp.eq.s32.totalorder %s15, 1
    %p70 = por %p68, %p69
    %p71 = scmp.ne.s32.totalorder %s62, %s63
    %p72 = scmp.eq.s32.totalorder %s15, 0
    %p73 = por %p71, %p72
    %p74 = scmp.ne.s32.totalorder %s62, %s63
    %p75 = scmp.eq.s32.totalorder %s16, 1
    %p76 = por %p74, %p75
    %p78 = scmp.ne.s32.totalorder %s63, %s77
    %p79 = scmp.eq.s32.totalorder %s16, 0
    %p80 = por %p78, %p79
    %s81 = ssub.s32 %s10, %s17
    %p82 = scmp.eq.s32.totalorder %s81, 0
    %s84 = sadd.s32 %s83, 1
    %s85 = scalar_select %p82, %s83, %s84
    %p88 = pneg %p82
    %p89 = scmp.eq.s32.totalorder %s10, 1
    %p90 = por %p88, %p89
    %p91 = scmp.ne.s32.totalorder %s83, %s86
    %p92 = scmp.eq.s32.totalorder %s10, 0
    %p93 = por %p91, %p92
    %p94 = scmp.ne.s32.totalorder %s83, %s86
    %p95 = scmp.eq.s32.totalorder %s15, 1
    %p96 = por %p94, %p95
    %p97 = scmp.ne.s32.totalorder %s86, %s87
    %p98 = scmp.eq.s32.totalorder %s15, 0
    %p99 = por %p97, %p98
    %p100 = scmp.ne.s32.totalorder %s86, %s87
    %p101 = scmp.eq.s32.totalorder %s16, 1
    %p102 = por %p100, %p101
    %p104 = scmp.ne.s32.totalorder %s87, %s103
    %p105 = scmp.eq.s32.totalorder %s16, 0
    %p106 = por %p104, %p105
    %s107 = ssub.s32 %s10, %s17
    %p108 = scmp.eq.s32.totalorder %s107, 0
    %s110 = sadd.s32 %s109, 1
    %s111 = scalar_select %p108, %s109, %s110
    %p114 = pneg %p108
    %p115 = scmp.eq.s32.totalorder %s10, 1
    %p116 = por %p114, %p115
    %p117 = scmp.ne.s32.totalorder %s109, %s112
    %p118 = scmp.eq.s32.totalorder %s10, 0
    %p119 = por %p117, %p118
    %p120 = scmp.ne.s32.totalorder %s109, %s112
    %p121 = scmp.eq.s32.totalorder %s15, 1
    %p122 = por %p120, %p121
    %p123 = scmp.ne.s32.totalorder %s112, %s113
    %p124 = scmp.eq.s32.totalorder %s15, 0
    %p125 = por %p123, %p124
    %p126 = scmp.ne.s32.totalorder %s112, %s113
    %p127 = scmp.eq.s32.totalorder %s16, 1
    %p128 = por %p126, %p127
    %p130 = scmp.ne.s32.totalorder %s113, %s129
    %p131 = scmp.eq.s32.totalorder %s16, 0
    %p132 = por %p130, %p131
    %p133 = scmp.le.s32.totalorder 1, %s10
    %p134 = scmp.lt.s32.totalorder %s10, 3
    %p135 = pnand %p133, %p134
    %p136 = pneg %p135
    // Predicated region
    $region9: #{vgg_block.5} parent=5 // pred_check
      _
    $region10: #{vgg_block.5} parent=5 // pred_check_branch
      %138 = sbr.rel (%p135) target = $region12
    $region11: #{vgg_block.5} parent=5 // pred_region
      %s139 = ssub.s32 %s10, 1
      // Predicated region
      $region13: #{vgg_block.5} parent=11 // pred_check
        %p140 = pneg %p31
      $region14: #{vgg_block.5} parent=11 // pred_check_branch
        %142 = sbr.rel (%p140) target = $region16
      $region15: #{vgg_block.5} parent=11 // pred_region
        _
      $region16: #{vgg_block.5} parent=11 // pred_fallthru
        _
      // Predicated region
      $region17: #{vgg_block.5} parent=11 // pred_check
        %p143 = pneg %p52
      $region18: #{vgg_block.5} parent=11 // pred_check_branch
        %145 = sbr.rel (%p143) target = $region20
      $region19: #{vgg_block.5} parent=11 // pred_region
        _
      $region20: #{vgg_block.5} parent=11 // pred_fallthru
        _
      // Predicated region
      $region21: #{vgg_block.5} parent=11 // pred_check
        %p146 = pneg %p73
      $region22: #{vgg_block.5} parent=11 // pred_check_branch
        %148 = sbr.rel (%p146) target = $region24
      $region23: #{vgg_block.5} parent=11 // pred_region
        _
      $region24: #{vgg_block.5} parent=11 // pred_fallthru
        _
    $region12: #{vgg_block.5} parent=5 // pred_fallthru
      _
    %p149 = scmp.lt.s32.totalorder %s10, 2
    // Predicated region
    $region25: #{vgg_block.5} parent=5 // pred_check
      %p150 = pneg %p149
    $region26: #{vgg_block.5} parent=5 // pred_check_branch
      %152 = sbr.rel (%p150) target = $region28
    $region27: #{vgg_block.5} parent=5 // pred_region
      // Predicated region
      $region29: #{vgg_block.5} parent=27 // pred_check
        %p153 = pneg %p93
      $region30: #{vgg_block.5} parent=27 // pred_check_branch
        %155 = sbr.rel (%p153) target = $region32
      $region31: #{vgg_block.5} parent=27 // pred_region
        %s156 = smul.u32 32, %s10
        %p157 = scmp.lt.s32.totalorder %s156, 63
        %s158 = scalar_select %p157, %s156, 63
        %s159 = smul.addr %s158, 4
        %s160 = scalar_lea.vmem %s3, %s159
        %s161 = smul.u32 32, %s10
      $region32: #{vgg_block.5} parent=27 // pred_fallthru
        _
    $region28: #{vgg_block.5} parent=5 // pred_fallthru
      _
    %p162 = scmp.le.s32.totalorder 1, %s10
    %p163 = scmp.lt.s32.totalorder %s10, 3
    %p164 = pnand %p162, %p163
    %p165 = pneg %p164
    // Predicated region
    $region33: #{vgg_block.5} parent=5 // pred_check
      _
    $region34: #{vgg_block.5} parent=5 // pred_check_branch
      %167 = sbr.rel (%p164) target = $region36
    $region35: #{vgg_block.5} parent=5 // pred_region
      %s168 = ssub.s32 %s10, 1
      %p169 = pneg %p31
      %p170 = pneg %p28
      %p171 = pneg %p52
      %p172 = pneg %p49
      %p173 = pneg %p73
      %p174 = pneg %p70
      %s175 = smul.u32 32, %s15
      %p176 = scmp.lt.s32.totalorder %s175, 63
      %s177 = scalar_select %p176, %s175, 63
      %s178 = smul.addr %s177, 4
      %s179 = scalar_lea.vmem %s3, %s178
      %p180 = pneg %p99
      %p181 = pneg %p96
      %p182 = pneg %p125
      %p183 = pneg %p122
      %s184 = smul.u32 32, %s15
      %p185 = scmp.lt.s32.totalorder %s184, 63
      %s186 = scalar_select %p185, %s184, 63
      %s187 = smul.addr %s186, 4
      %s188 = scalar_lea.vmem %s4, %s187
      %s189 = smul.u32 32, %s15
      %p190 = scmp.lt.s32.totalorder %s189, 63
      %s191 = scalar_select %p190, %s189, 63
      %s192 = smul.addr %s191, 4
      %s193 = scalar_lea.vmem %s3, %s192
      %s194 = smul.u32 32, %s15
      %s195 = smul.u32 32, %s15
      %p196 = scmp.lt.s32.totalorder %s195, 63
      %s197 = scalar_select %p196, %s195, 63
      %s198 = smul.addr %s197, 4
      %s199 = scalar_lea.vmem %s4, %s198
      %s200 = smul.u32 32, %s15
      %v201 = vld [vmem:[%s0] sm:$0x1]
      %v202 = vmul.f32 %v201, 0.001953125
      %v203 = vld [vmem:[%s0 + $0x1] sm:$0x1]
      %v204 = vmul.f32 %v203, 0.001953125
      %v205 = vmul.f32 %v202, %v202
      %v206 = vsub.f32 %v204, %v205
      %v207 = vmax.f32 %v206, 0.0
      %v208 = vld [vmem:[%s1] sm:$0x1]
      %v209 = vadd.f32 %v207, 1e-05
      %v210 = vrsqrt.pop %v209
      %v211 = vmul.f32 %v208, %v210
      %v212 = vld [vmem:[%s2] sm:$0x1]
      %v213 = vmul.f32 %v202, %v211
      %v214 = vsub.f32 %v212, %v213
      %v215 = vld [vmem:[%s193] sm:$0xf]
      %v216 = vld [vmem:[%s193 + $0x4] sm:$0xf]
      %v217 = vld [vmem:[%s193 + $0x8] sm:$0xf]
      %v218 = vld [vmem:[%s193 + $0xc] sm:$0xf]
      %v219 = vld [vmem:[%s193 + $0x10] sm:$0xf]
      %v220 = vld [vmem:[%s193 + $0x14] sm:$0xf]
      %v221 = vld [vmem:[%s193 + $0x18] sm:$0xf]
      %v222 = vld [vmem:[%s193 + $0x1c] sm:$0xf]
      %v223 = vld [vmem:[%s193 + $0x20] sm:$0xf]
      %v224 = vld [vmem:[%s193 + $0x24] sm:$0xf]
      %v225 = vld [vmem:[%s193 + $0x28] sm:$0xf]
      %v226 = vld [vmem:[%s193 + $0x2c] sm:$0xf]
      %v227 = vld [vmem:[%s193 + $0x30] sm:$0xf]
      %v228 = vld [vmem:[%s193 + $0x34] sm:$0xf]
      %v229 = vld [vmem:[%s193 + $0x38] sm:$0xf]
      %v230 = vld [vmem:[%s193 + $0x3c] sm:$0xf]
      %v231 = vld [vmem:[%s193 + $0x40] sm:$0xf]
      %v232 = vld [vmem:[%s193 + $0x44] sm:$0xf]
      %v233 = vld [vmem:[%s193 + $0x48] sm:$0xf]
      %v234 = vld [vmem:[%s193 + $0x4c] sm:$0xf]
      %v235 = vld [vmem:[%s193 + $0x50] sm:$0xf]
      %v236 = vld [vmem:[%s193 + $0x54] sm:$0xf]
      %v237 = vld [vmem:[%s193 + $0x58] sm:$0xf]
      %v238 = vld [vmem:[%s193 + $0x5c] sm:$0xf]
      %v239 = vld [vmem:[%s193 + $0x60] sm:$0xf]
      %v240 = vld [vmem:[%s193 + $0x64] sm:$0xf]
      %v241 = vld [vmem:[%s193 + $0x68] sm:$0xf]
      %v242 = vld [vmem:[%s193 + $0x6c] sm:$0xf]
      %v243 = vld [vmem:[%s193 + $0x70] sm:$0xf]
      %v244 = vld [vmem:[%s193 + $0x74] sm:$0xf]
      %v245 = vld [vmem:[%s193 + $0x78] sm:$0xf]
      %v246 = vld [vmem:[%s193 + $0x7c] sm:$0xf]
      %v247 = vunpack.c.l.bf16 %v215
      %v248 = vunpack.c.l.bf16 %v216
      %v249 = vunpack.c.l.bf16 %v217
      %v250 = vunpack.c.l.bf16 %v218
      %v251 = vunpack.c.l.bf16 %v219
      %v252 = vunpack.c.l.bf16 %v220
      %v253 = vunpack.c.l.bf16 %v221
      %v254 = vunpack.c.l.bf16 %v222
      %v255 = vunpack.c.l.bf16 %v223
      %v256 = vunpack.c.l.bf16 %v224
      %v257 = vunpack.c.l.bf16 %v225
      %v258 = vunpack.c.l.bf16 %v226
      %v259 = vunpack.c.l.bf16 %v227
      %v260 = vunpack.c.l.bf16 %v228
      %v261 = vunpack.c.l.bf16 %v229
      %v262 = vunpack.c.l.bf16 %v230
      %v263 = vunpack.c.l.bf16 %v231
      %v264 = vunpack.c.l.bf16 %v232
      %v265 = vunpack.c.l.bf16 %v233
      %v266 = vunpack.c.l.bf16 %v234
      %v267 = vunpack.c.l.bf16 %v235
      %v268 = vunpack.c.l.bf16 %v236
      %v269 = vunpack.c.l.bf16 %v237
      %v270 = vunpack.c.l.bf16 %v238
      %v271 = vunpack.c.l.bf16 %v239
      %v272 = vunpack.c.l.bf16 %v240
      %v273 = vunpack.c.l.bf16 %v241
      %v274 = vunpack.c.l.bf16 %v242
      %v275 = vunpack.c.l.bf16 %v243
      %v276 = vunpack.c.l.bf16 %v244
      %v277 = vunpack.c.l.bf16 %v245
      %v278 = vunpack.c.l.bf16 %v246
      %v280 = vlaneseq
      %v281 = vshrl.u32 %v280, 7
      %v282 = vsub.s32 0, %v281
      %v283 = vrot.slane %v211, %v282
      %v285 = vmul.f32 %v247, %v283
      %v286 = vmul.f32 %v248, %v283
      %v287 = vmul.f32 %v249, %v283
      %v288 = vmul.f32 %v250, %v283
      %v289 = vmul.f32 %v251, %v283
      %v290 = vmul.f32 %v252, %v283
      %v291 = vmul.f32 %v253, %v283
      %v292 = vmul.f32 %v254, %v283
      %v293 = vmul.f32 %v255, %v283
      %v294 = vmul.f32 %v256, %v283
      %v295 = vmul.f32 %v257, %v283
      %v296 = vmul.f32 %v258, %v283
      %v297 = vmul.f32 %v259, %v283
      %v298 = vmul.f32 %v260, %v283
      %v299 = vmul.f32 %v261, %v283
      %v300 = vmul.f32 %v262, %v283
      %v301 = vmul.f32 %v263, %v283
      %v302 = vmul.f32 %v264, %v283
      %v303 = vmul.f32 %v265, %v283
      %v304 = vmul.f32 %v266, %v283
      %v305 = vmul.f32 %v267, %v283
      %v306 = vmul.f32 %v268, %v283
      %v307 = vmul.f32 %v269, %v283
      %v308 = vmul.f32 %v270, %v283
      %v309 = vmul.f32 %v271, %v283
      %v310 = vmul.f32 %v272, %v283
      %v311 = vmul.f32 %v273, %v283
      %v312 = vmul.f32 %v274, %v283
      %v313 = vmul.f32 %v275, %v283
      %v314 = vmul.f32 %v276, %v283
      %v315 = vmul.f32 %v277, %v283
      %v316 = vmul.f32 %v278, %v283
      %v318 = vlaneseq
      %v319 = vshrl.u32 %v318, 7
      %v320 = vsub.s32 0, %v319
      %v321 = vrot.slane %v214, %v320
      %v323 = vadd.f32 %v285, %v321
      %v324 = vadd.f32 %v286, %v321
      %v325 = vadd.f32 %v287, %v321
      %v326 = vadd.f32 %v288, %v321
      %v327 = vadd.f32 %v289, %v321
      %v328 = vadd.f32 %v290, %v321
      %v329 = vadd.f32 %v291, %v321
      %v330 = vadd.f32 %v292, %v321
      %v331 = vadd.f32 %v293, %v321
      %v332 = vadd.f32 %v294, %v321
      %v333 = vadd.f32 %v295, %v321
      %v334 = vadd.f32 %v296, %v321
      %v335 = vadd.f32 %v297, %v321
      %v336 = vadd.f32 %v298, %v321
      %v337 = vadd.f32 %v299, %v321
      %v338 = vadd.f32 %v300, %v321
      %v339 = vadd.f32 %v301, %v321
      %v340 = vadd.f32 %v302, %v321
      %v341 = vadd.f32 %v303, %v321
      %v342 = vadd.f32 %v304, %v321
      %v343 = vadd.f32 %v305, %v321
      %v344 = vadd.f32 %v306, %v321
      %v345 = vadd.f32 %v307, %v321
      %v346 = vadd.f32 %v308, %v321
      %v347 = vadd.f32 %v309, %v321
      %v348 = vadd.f32 %v310, %v321
      %v349 = vadd.f32 %v311, %v321
      %v350 = vadd.f32 %v312, %v321
      %v351 = vadd.f32 %v313, %v321
      %v352 = vadd.f32 %v314, %v321
      %v353 = vadd.f32 %v315, %v321
      %v354 = vadd.f32 %v316, %v321
      %v355 = vmax.f32 %v323, 0.0
      %v356 = vmax.f32 %v324, 0.0
      %v357 = vmax.f32 %v325, 0.0
      %v358 = vmax.f32 %v326, 0.0
      %v359 = vmax.f32 %v327, 0.0
      %v360 = vmax.f32 %v328, 0.0
      %v361 = vmax.f32 %v329, 0.0
      %v362 = vmax.f32 %v330, 0.0
      %v363 = vmax.f32 %v331, 0.0
      %v364 = vmax.f32 %v332, 0.0
      %v365 = vmax.f32 %v333, 0.0
      %v366 = vmax.f32 %v334, 0.0
      %v367 = vmax.f32 %v335, 0.0
      %v368 = vmax.f32 %v336, 0.0
      %v369 = vmax.f32 %v337, 0.0
      %v370 = vmax.f32 %v338, 0.0
      %v371 = vmax.f32 %v339, 0.0
      %v372 = vmax.f32 %v340, 0.0
      %v373 = vmax.f32 %v341, 0.0
      %v374 = vmax.f32 %v342, 0.0
      %v375 = vmax.f32 %v343, 0.0
      %v376 = vmax.f32 %v344, 0.0
      %v377 = vmax.f32 %v345, 0.0
      %v378 = vmax.f32 %v346, 0.0
      %v379 = vmax.f32 %v347, 0.0
      %v380 = vmax.f32 %v348, 0.0
      %v381 = vmax.f32 %v349, 0.0
      %v382 = vmax.f32 %v350, 0.0
      %v383 = vmax.f32 %v351, 0.0
      %v384 = vmax.f32 %v352, 0.0
      %v385 = vmax.f32 %v353, 0.0
      %v386 = vmax.f32 %v354, 0.0
      %v387 = vpack.c.bf16 %v356, %v355
      %v388 = vpack.c.bf16 %v358, %v357
      %v389 = vpack.c.bf16 %v360, %v359
      %v390 = vpack.c.bf16 %v362, %v361
      %v391 = vpack.c.bf16 %v364, %v363
      %v392 = vpack.c.bf16 %v366, %v365
      %v393 = vpack.c.bf16 %v368, %v367
      %v394 = vpack.c.bf16 %v370, %v369
      %v395 = vpack.c.bf16 %v372, %v371
      %v396 = vpack.c.bf16 %v374, %v373
      %v397 = vpack.c.bf16 %v376, %v375
      %v398 = vpack.c.bf16 %v378, %v377
      %v399 = vpack.c.bf16 %v380, %v379
      %v400 = vpack.c.bf16 %v382, %v381
      %v401 = vpack.c.bf16 %v384, %v383
      %v402 = vpack.c.bf16 %v386, %v385
      %v419 = vunpack.c.l.b16 %v387
      %v420 = vunpack.c.h.b16 %v387
      %v421 = vunpack.c.l.b16 %v388
      %v422 = vunpack.c.h.b16 %v388
      %v423 = vunpack.c.l.b16 %v389
      %v424 = vunpack.c.h.b16 %v389
      %v425 = vunpack.c.l.b16 %v390
      %v426 = vunpack.c.h.b16 %v390
      %v427 = vunpack.c.l.b16 %v391
      %v428 = vunpack.c.h.b16 %v391
      %v429 = vunpack.c.l.b16 %v392
      %v430 = vunpack.c.h.b16 %v392
      %v431 = vunpack.c.l.b16 %v393
      %v432 = vunpack.c.h.b16 %v393
      %v433 = vunpack.c.l.b16 %v394
      %v434 = vunpack.c.h.b16 %v394
      %v435 = vunpack.c.l.b16 %v395
      %v436 = vunpack.c.h.b16 %v395
      %v437 = vunpack.c.l.b16 %v396
      %v438 = vunpack.c.h.b16 %v396
      %v439 = vunpack.c.l.b16 %v397
      %v440 = vunpack.c.h.b16 %v397
      %v441 = vunpack.c.l.b16 %v398
      %v442 = vunpack.c.h.b16 %v398
      %v443 = vunpack.c.l.b16 %v399
      %v444 = vunpack.c.h.b16 %v399
      %v445 = vunpack.c.l.b16 %v400
      %v446 = vunpack.c.h.b16 %v400
      %v447 = vunpack.c.l.b16 %v401
      %v448 = vunpack.c.h.b16 %v401
      %v449 = vunpack.c.l.b16 %v402
      %v450 = vunpack.c.h.b16 %v402
      %v451 = vpack.c.b16 %v419, %v419
      %v452 = vpack.c.b16 %v420, %v420
      %v453 = vpack.c.b16 %v421, %v421
      %v454 = vpack.c.b16 %v422, %v422
      %v455 = vpack.c.b16 %v423, %v423
      %v456 = vpack.c.b16 %v424, %v424
      %v457 = vpack.c.b16 %v425, %v425
      %v458 = vpack.c.b16 %v426, %v426
      %v459 = vpack.c.b16 %v427, %v427
      %v460 = vpack.c.b16 %v428, %v428
      %v461 = vpack.c.b16 %v429, %v429
      %v462 = vpack.c.b16 %v430, %v430
      %v463 = vpack.c.b16 %v431, %v431
      %v464 = vpack.c.b16 %v432, %v432
      %v465 = vpack.c.b16 %v433, %v433
      %v466 = vpack.c.b16 %v434, %v434
      %v467 = vpack.c.b16 %v435, %v435
      %v468 = vpack.c.b16 %v436, %v436
      %v469 = vpack.c.b16 %v437, %v437
      %v470 = vpack.c.b16 %v438, %v438
      %v471 = vpack.c.b16 %v439, %v439
      %v472 = vpack.c.b16 %v440, %v440
      %v473 = vpack.c.b16 %v441, %v441
      %v474 = vpack.c.b16 %v442, %v442
      %v475 = vpack.c.b16 %v443, %v443
      %v476 = vpack.c.b16 %v444, %v444
      %v477 = vpack.c.b16 %v445, %v445
      %v478 = vpack.c.b16 %v446, %v446
      %v479 = vpack.c.b16 %v447, %v447
      %v480 = vpack.c.b16 %v448, %v448
      %v481 = vpack.c.b16 %v449, %v449
      %v482 = vpack.c.b16 %v450, %v450
      %515 = vst [vmem:[%s199] sm:$0xf] %v451
      %516 = vst [vmem:[%s199 + $0x4] sm:$0xf] %v452
      %517 = vst [vmem:[%s199 + $0x8] sm:$0xf] %v453
      %518 = vst [vmem:[%s199 + $0xc] sm:$0xf] %v454
      %519 = vst [vmem:[%s199 + $0x10] sm:$0xf] %v455
      %520 = vst [vmem:[%s199 + $0x14] sm:$0xf] %v456
      %521 = vst [vmem:[%s199 + $0x18] sm:$0xf] %v457
      %522 = vst [vmem:[%s199 + $0x1c] sm:$0xf] %v458
      %523 = vst [vmem:[%s199 + $0x20] sm:$0xf] %v459
      %524 = vst [vmem:[%s199 + $0x24] sm:$0xf] %v460
      %525 = vst [vmem:[%s199 + $0x28] sm:$0xf] %v461
      %526 = vst [vmem:[%s199 + $0x2c] sm:$0xf] %v462
      %527 = vst [vmem:[%s199 + $0x30] sm:$0xf] %v463
      %528 = vst [vmem:[%s199 + $0x34] sm:$0xf] %v464
      %529 = vst [vmem:[%s199 + $0x38] sm:$0xf] %v465
      %530 = vst [vmem:[%s199 + $0x3c] sm:$0xf] %v466
      %531 = vst [vmem:[%s199 + $0x40] sm:$0xf] %v467
      %532 = vst [vmem:[%s199 + $0x44] sm:$0xf] %v468
      %533 = vst [vmem:[%s199 + $0x48] sm:$0xf] %v469
      %534 = vst [vmem:[%s199 + $0x4c] sm:$0xf] %v470
      %535 = vst [vmem:[%s199 + $0x50] sm:$0xf] %v471
      %536 = vst [vmem:[%s199 + $0x54] sm:$0xf] %v472
      %537 = vst [vmem:[%s199 + $0x58] sm:$0xf] %v473
      %538 = vst [vmem:[%s199 + $0x5c] sm:$0xf] %v474
      %539 = vst [vmem:[%s199 + $0x60] sm:$0xf] %v475
      %540 = vst [vmem:[%s199 + $0x64] sm:$0xf] %v476
      %541 = vst [vmem:[%s199 + $0x68] sm:$0xf] %v477
      %542 = vst [vmem:[%s199 + $0x6c] sm:$0xf] %v478
      %543 = vst [vmem:[%s199 + $0x70] sm:$0xf] %v479
      %544 = vst [vmem:[%s199 + $0x74] sm:$0xf] %v480
      %545 = vst [vmem:[%s199 + $0x78] sm:$0xf] %v481
      %546 = vst [vmem:[%s199 + $0x7c] sm:$0xf] %v482
      %s547 = smul.u32 32, %s15
      %p548 = scmp.lt.s32.totalorder %s547, 63
      %s549 = scalar_select %p548, %s547, 63
      %s550 = smul.addr %s549, 4
      %s551 = scalar_lea.vmem %s4, %s550
      // Predicated region
      $region37: #{vgg_block.5} parent=35 // pred_check
        %p552 = pneg %p122
      $region38: #{vgg_block.5} parent=35 // pred_check_branch
        %554 = sbr.rel (%p552) target = $region40
      $region39: #{vgg_block.5} parent=35 // pred_region
        %s555 = smul.u32 32, %s15
      $region40: #{vgg_block.5} parent=35 // pred_fallthru
        _
    $region36: #{vgg_block.5} parent=5 // pred_fallthru
      _
    %p556 = scmp.le.s32.totalorder 2, %s10
    // Predicated region
    $region41: #{vgg_block.5} parent=5 // pred_check
      %p557 = pneg %p556
    $region42: #{vgg_block.5} parent=5 // pred_check_branch
      %559 = sbr.rel (%p557) target = $region44
    $region43: #{vgg_block.5} parent=5 // pred_region
      %s560 = ssub.s32 %s10, 2
      // Predicated region
      $region45: #{vgg_block.5} parent=43 // pred_check
        %p561 = pneg %p128
      $region46: #{vgg_block.5} parent=43 // pred_check_branch
        %563 = sbr.rel (%p561) target = $region48
      $region47: #{vgg_block.5} parent=43 // pred_region
        %s564 = smul.u32 32, %s16
        %p565 = scmp.lt.s32.totalorder %s564, 63
        %s566 = scalar_select %p565, %s564, 63
        %s567 = smul.addr %s566, 4
        %s568 = scalar_lea.vmem %s4, %s567
      $region48: #{vgg_block.5} parent=43 // pred_fallthru
        _
    $region44: #{vgg_block.5} parent=5 // pred_fallthru
      _
  $region6: #{vgg_block.5} parent=0 // loop_footer
    %s14 = sadd.s32 1, %s10
  $region7: #{vgg_block.5} parent=0 // loop_footer_branch
    %9 = sbr.rel target = $region3
  $region8: #{vgg_block.5} parent=0 // loop_exit
    _

// kernel: vgg_block.4
$region0: #{vgg_block.4}
  #allocation0 [shape = 'u32[]', space=smem, size = 0x4, offset = 0x4, fixed_abs, tag = 'smem constant byte address 0x4 - core index']
  #allocation1 [shape = 'u32[144,128]{1,0:T(1,128)}', space=vmem, size = 0x12000, scoped, tag = 'internal scratch']
  %s0 = inlined_call_operand.vmem [shape: bf16[2,18,18,128], index: 0, kind: input, shape index: {}]
  %s1 = inlined_call_operand.vmem [shape: bf16[1152,128], index: 1, kind: input, shape index: {}]
  %s2 = inlined_call_operand.vmem [shape: bf16[512,128], index: 2, kind: output, shape index: {0}]
  %s3 = inlined_call_operand.vmem [shape: f32[2,128], index: 3, kind: output, shape index: {1}]
  %4 = xla_tuple %s2, %s3
  %s5 = sld [smem:[#allocation0]]
  $region53: #{vgg_block.4} parent=0
    _
  %s7 = ssub.s32 1, %s5
  %s8 = scalar_select 0, %s7, %s5
  loop: start=0, step=1, limit=4
  $region2: #{vgg_block.4} parent=0 // loop_pre_header
    _
  $region3: #{vgg_block.4} parent=0 // loop_header
    %s10 = sphi 0, %s14
    %p11 = scmp.ge.s32.totalorder %s10, 4
    %s17 = sphi 0, %s29
    %s18 = sphi 0, %s25
    %s19 = sphi 0, %s17
    %s20 = sphi 0, %s18
    %s21 = sphi 0, %s19
    %s22 = sphi 0, %s20
    %s32 = sphi 0, %s34
    %s35 = sphi 0, %s32
    %s36 = sphi 0, %s35
    %s52 = sphi 0, %s36
    %s56 = sphi 0, %s56
    %s58 = sphi 0, %s56
    %s59 = sphi 0, %s58
    %s73 = sphi 0, %s59
    %s81 = sphi 0, %s83
    %s84 = sphi 0, %s81
    %s85 = sphi 0, %s84
    %s101 = sphi 0, %s85
    %s105 = sphi 0, %s105
    %s107 = sphi 0, %s105
    %s108 = sphi 0, %s107
    %s122 = sphi 0, %s108
  $region4: #{vgg_block.4} parent=0 // loop_header_branch
    %13 = sbr.rel (%p11) target = $region8
  $region5: #{vgg_block.4} parent=0 // loop_body
    %s15 = ssub.s32 %s10, 1
    %s16 = ssub.s32 %s10, 2
    %s23 = sadd.s32 1, %s18
    %p24 = scmp.ge.s32.totalorder %s23, 1
    %s25 = scalar_select %p24, 0, %s23
    %s26 = sadd.s32 1, %s17
    %s27 = scalar_select %p24, %s26, %s17
    %p28 = scmp.ge.s32.totalorder %s27, 2
    %s29 = scalar_select %p28, 0, %s27
    %s30 = ssub.s32 %s17, %s29
    %p31 = scmp.eq.s32.totalorder %s30, 0
    %s33 = sadd.s32 %s32, 1
    %s34 = scalar_select %p31, %s32, %s33
    %p37 = pneg %p31
    %p38 = scmp.eq.s32.totalorder %s10, 1
    %p39 = por %p37, %p38
    %p40 = scmp.ne.s32.totalorder %s32, %s35
    %p41 = scmp.eq.s32.totalorder %s10, 0
    %p42 = por %p40, %p41
    %p43 = scmp.ne.s32.totalorder %s32, %s35
    %p44 = scmp.eq.s32.totalorder %s15, 1
    %p45 = por %p43, %p44
    %p46 = scmp.ne.s32.totalorder %s35, %s36
    %p47 = scmp.eq.s32.totalorder %s15, 0
    %p48 = por %p46, %p47
    %p49 = scmp.ne.s32.totalorder %s35, %s36
    %p50 = scmp.eq.s32.totalorder %s16, 1
    %p51 = por %p49, %p50
    %p53 = scmp.ne.s32.totalorder %s36, %s52
    %p54 = scmp.eq.s32.totalorder %s16, 0
    %p55 = por %p53, %p54
    %s57 = sadd.s32 %s56, 1
    %p60 = scmp.eq.s32.totalorder %s10, 1
    %p61 = scmp.ne.s32.totalorder %s56, %s58
    %p62 = scmp.eq.s32.totalorder %s10, 0
    %p63 = por %p61, %p62
    %p64 = scmp.ne.s32.totalorder %s56, %s58
    %p65 = scmp.eq.s32.totalorder %s15, 1
    %p66 = por %p64, %p65
    %p67 = scmp.ne.s32.totalorder %s58, %s59
    %p68 = scmp.eq.s32.totalorder %s15, 0
    %p69 = por %p67, %p68
    %p70 = scmp.ne.s32.totalorder %s58, %s59
    %p71 = scmp.eq.s32.totalorder %s16, 1
    %p72 = por %p70, %p71
    %p74 = scmp.ne.s32.totalorder %s59, %s73
    %p75 = scmp.eq.s32.totalorder %s16, 0
    %p76 = por %p74, %p75
    %s77 = sadd.s32 %s17, %s18
    %s78 = sadd.s32 %s29, %s25
    %s79 = ssub.s32 %s77, %s78
    %p80 = scmp.eq.s32.totalorder %s79, 0
    %s82 = sadd.s32 %s81, 1
    %s83 = scalar_select %p80, %s81, %s82
    %p86 = pneg %p80
    %p87 = scmp.eq.s32.totalorder %s10, 1
    %p88 = por %p86, %p87
    %p89 = scmp.ne.s32.totalorder %s81, %s84
    %p90 = scmp.eq.s32.totalorder %s10, 0
    %p91 = por %p89, %p90
    %p92 = scmp.ne.s32.totalorder %s81, %s84
    %p93 = scmp.eq.s32.totalorder %s15, 1
    %p94 = por %p92, %p93
    %p95 = scmp.ne.s32.totalorder %s84, %s85
    %p96 = scmp.eq.s32.totalorder %s15, 0
    %p97 = por %p95, %p96
    %p98 = scmp.ne.s32.totalorder %s84, %s85
    %p99 = scmp.eq.s32.totalorder %s16, 1
    %p100 = por %p98, %p99
    %p102 = scmp.ne.s32.totalorder %s85, %s101
    %p103 = scmp.eq.s32.totalorder %s16, 0
    %p104 = por %p102, %p103
    %s106 = sadd.s32 %s105, 1
    %p109 = scmp.eq.s32.totalorder %s10, 1
    %p110 = scmp.ne.s32.totalorder %s105, %s107
    %p111 = scmp.eq.s32.totalorder %s10, 0
    %p112 = por %p110, %p111
    %p113 = scmp.ne.s32.totalorder %s105, %s107
    %p114 = scmp.eq.s32.totalorder %s15, 1
    %p115 = por %p113, %p114
    %p116 = scmp.ne.s32.totalorder %s107, %s108
    %p117 = scmp.eq.s32.totalorder %s15, 0
    %p118 = por %p116, %p117
    %p119 = scmp.ne.s32.totalorder %s107, %s108
    %p120 = scmp.eq.s32.totalorder %s16, 1
    %p121 = por %p119, %p120
    %p123 = scmp.ne.s32.totalorder %s108, %s122
    %p124 = scmp.eq.s32.totalorder %s16, 0
    %p125 = por %p123, %p124
    %p126 = scmp.le.s32.totalorder 1, %s10
    %p127 = scmp.lt.s32.totalorder %s10, 3
    %p128 = pnand %p126, %p127
    %p129 = pneg %p128
    // Predicated region
    $region9: #{vgg_block.4} parent=5 // pred_check
      _
    $region10: #{vgg_block.4} parent=5 // pred_check_branch
      %131 = sbr.rel (%p128) target = $region12
    $region11: #{vgg_block.4} parent=5 // pred_region
      %s132 = ssub.s32 %s10, 1
      // Predicated region
      $region13: #{vgg_block.4} parent=11 // pred_check
        %p133 = pneg %p69
      $region14: #{vgg_block.4} parent=11 // pred_check_branch
        %135 = sbr.rel (%p133) target = $region16
      $region15: #{vgg_block.4} parent=11 // pred_region
        _
      $region16: #{vgg_block.4} parent=11 // pred_fallthru
        _
    $region12: #{vgg_block.4} parent=5 // pred_fallthru
      _
    %p136 = scmp.lt.s32.totalorder %s10, 2
    // Predicated region
    $region17: #{vgg_block.4} parent=5 // pred_check
      %p137 = pneg %p136
    $region18: #{vgg_block.4} parent=5 // pred_check_branch
      %139 = sbr.rel (%p137) target = $region20
    $region19: #{vgg_block.4} parent=5 // pred_region
      // Predicated region
      $region21: #{vgg_block.4} parent=19 // pred_check
        %p140 = pneg %p42
      $region22: #{vgg_block.4} parent=19 // pred_check_branch
        %142 = sbr.rel (%p140) target = $region24
      $region23: #{vgg_block.4} parent=19 // pred_region
        %p143 = scmp.lt.s32.totalorder %s17, 1
        %s144 = scalar_select %p143, %s17, 1
        %s145 = smul.addr %s144, 54
        %s146 = smul.addr %s145, 4
        %s147 = scalar_lea.vmem %s0, %s146
      $region24: #{vgg_block.4} parent=19 // pred_fallthru
        _
    $region20: #{vgg_block.4} parent=5 // pred_fallthru
      _
    %p148 = scmp.le.s32.totalorder 1, %s10
    %p149 = scmp.lt.s32.totalorder %s10, 3
    %p150 = pnand %p148, %p149
    %p151 = pneg %p150
    // Predicated region
    $region25: #{vgg_block.4} parent=5 // pred_check
      _
    $region26: #{vgg_block.4} parent=5 // pred_check_branch
      %153 = sbr.rel (%p150) target = $region28
    $region27: #{vgg_block.4} parent=5 // pred_region
      %s154 = ssub.s32 %s10, 1
      %p155 = scmp.lt.s32.totalorder %s19, 1
      %s156 = scalar_select %p155, %s19, 1
      %s157 = smul.addr %s156, 54
      %s158 = smul.addr %s157, 4
      %s159 = scalar_lea.vmem %s0, %s158
      %p160 = pneg %p48
      %p161 = pneg %p45
      %p162 = pneg %p69
      %p163 = pneg %p66
      %p164 = pneg %p97
      %p165 = pneg %p94
      %s166 = sadd.s32 %s19, %s20
      %s167 = smul.u32 32, %s166
      %p168 = scmp.lt.s32.totalorder %s167, 63
      %s169 = scalar_select %p168, %s167, 63
      %s170 = smul.addr %s169, 4
      %s171 = scalar_lea.vmem %s2, %s170
      %p172 = pneg %p118
      %p173 = pneg %p115
      %p174 = scmp.lt.s32.totalorder %s19, 1
      %s175 = scalar_select %p174, %s19, 1
      %s176 = smul.addr %s175, 54
      %s177 = smul.addr %s176, 4
      %s178 = scalar_lea.vmem %s0, %s177
      %s179 = sadd.s32 %s19, %s20
      %s180 = smul.u32 32, %s179
      %p181 = scmp.lt.s32.totalorder %s180, 63
      %s182 = scalar_select %p181, %s180, 63
      %s183 = smul.addr %s182, 4
      %s184 = scalar_lea.vmem %s2, %s183
      %s185 = sadd.s32 %s19, %s20
      %s186 = smul.u32 32, %s185
      %p188 = scmp.eq.s32.totalorder %s19, 0
      %p189 = scmp.eq.s32.totalorder %s20, 0
      %p190 = pnand %p188, %p189
      %p191 = pneg %p190
      // Predicated region
      $region29: #{vgg_block.4} parent=27 // pred_check
        _
      $region30: #{vgg_block.4} parent=27 // pred_check_branch
        %193 = sbr.rel (%p190) target = $region32
      $region31: #{vgg_block.4} parent=27 // pred_region
        %194 = vst [vmem:[%s3] sm:$0x3] 0.0
      $region32: #{vgg_block.4} parent=27 // pred_fallthru
        _
      %s195 = smul.u32 %s20, 16
      %s196 = smul.u32 %s195, 3
      %s197 = smul.addr %s196, 4
      %s198 = scalar_lea.vmem %s178, %s197
      %v199 = vld [vmem:[%s198] sm:$0xf]
      %v200 = vld [vmem:[%s198 + $0x4] sm:$0xf]
      %v201 = vld [vmem:[%s198 + $0xc] sm:$0xf]
      %v202 = vld [vmem:[%s198 + $0x10] sm:$0xf]
      %v203 = vld [vmem:[%s198 + $0x18] sm:$0xf]
      %v204 = vld [vmem:[%s198 + $0x1c] sm:$0xf]
      %v205 = vld [vmem:[%s198 + $0x24] sm:$0xf]
      %v206 = vld [vmem:[%s198 + $0x28] sm:$0xf]
      %v207 = vld [vmem:[%s198 + $0x30] sm:$0xf]
      %v208 = vld [vmem:[%s198 + $0x34] sm:$0xf]
      %v209 = vld [vmem:[%s198 + $0x3c] sm:$0xf]
      %v210 = vld [vmem:[%s198 + $0x40] sm:$0xf]
      %v211 = vld [vmem:[%s198 + $0x48] sm:$0xf]
      %v212 = vld [vmem:[%s198 + $0x4c] sm:$0xf]
      %v213 = vld [vmem:[%s198 + $0x54] sm:$0xf]
      %v214 = vld [vmem:[%s198 + $0x58] sm:$0xf]
      %v215 = vld [vmem:[%s198 + $0x60] sm:$0xf]
      %v216 = vld [vmem:[%s198 + $0x64] sm:$0xf]
      %v217 = vld [vmem:[%s198 + $0x6c] sm:$0xf]
      %v218 = vld [vmem:[%s198 + $0x70] sm:$0xf]
      %v219 = vld [vmem:[%s198 + $0x78] sm:$0xf]
      %v220 = vld [vmem:[%s198 + $0x7c] sm:$0xf]
      %v221 = vld [vmem:[%s198 + $0x84] sm:$0xf]
      %v222 = vld [vmem:[%s198 + $0x88] sm:$0xf]
      %v223 = vld [vmem:[%s198 + $0x90] sm:$0xf]
      %v224 = vld [vmem:[%s198 + $0x94] sm:$0xf]
      %v225 = vld [vmem:[%s198 + $0x9c] sm:$0xf]
      %v226 = vld [vmem:[%s198 + $0xa0] sm:$0xf]
      %v227 = vld [vmem:[%s198 + $0xa8] sm:$0xf]
      %v228 = vld [vmem:[%s198 + $0xac] sm:$0xf]
      %v229 = vld [vmem:[%s198 + $0xb4] sm:$0xf]
      %v230 = vld [vmem:[%s198 + $0xb8] sm:$0xf]
      %v231 = vld [vmem:[%s1] sm:$0xf]
      %v232 = vld [vmem:[%s1 + $0x4] sm:$0xf]
      %v233 = vld [vmem:[%s1 + $0x8] sm:$0xf]
      %v234 = vld [vmem:[%s1 + $0xc] sm:$0xf]
      %v235 = vld [vmem:[%s1 + $0x10] sm:$0xf]
      %v236 = vld [vmem:[%s1 + $0x14] sm:$0xf]
      %v237 = vld [vmem:[%s1 + $0x18] sm:$0xf]
      %v238 = vld [vmem:[%s1 + $0x1c] sm:$0xf]
      %v239 = vld [vmem:[%s1 + $0x20] sm:$0xf]
      %v240 = vld [vmem:[%s1 + $0x24] sm:$0xf]
      %v241 = vld [vmem:[%s1 + $0x28] sm:$0xf]
      %v242 = vld [vmem:[%s1 + $0x2c] sm:$0xf]
      %v243 = vld [vmem:[%s1 + $0x30] sm:$0xf]
      %v244 = vld [vmem:[%s1 + $0x34] sm:$0xf]
      %v245 = vld [vmem:[%s1 + $0x38] sm:$0xf]
      %v246 = vld [vmem:[%s1 + $0x3c] sm:$0xf]
      %v247 = vld [vmem:[%s198 + $0x8] sm:$0x1]
      %v248 = vld [vmem:[%s198 + $0x14] sm:$0x1]
      %v249 = vld [vmem:[%s198 + $0x20] sm:$0x1]
      %v250 = vld [vmem:[%s198 + $0x2c] sm:$0x1]
      %v251 = vld [vmem:[%s198 + $0x38] sm:$0x1]
      %v252 = vld [vmem:[%s198 + $0x44] sm:$0x1]
      %v253 = vld [vmem:[%s198 + $0x50] sm:$0x1]
      %v254 = vld [vmem:[%s198 + $0x5c] sm:$0x1]
      %v255 = vld [vmem:[%s198 + $0x68] sm:$0x1]
      %v256 = vld [vmem:[%s198 + $0x74] sm:$0x1]
      %v257 = vld [vmem:[%s198 + $0x80] sm:$0x1]
      %v258 = vld [vmem:[%s198 + $0x8c] sm:$0x1]
      %v259 = vld [vmem:[%s198 + $0x98] sm:$0x1]
      %v260 = vld [vmem:[%s198 + $0xa4] sm:$0x1]
      %v261 = vld [vmem:[%s198 + $0xb0] sm:$0x1]
      %v262 = vld [vmem:[%s198 + $0xbc] sm:$0x1]
      %vm263 = vsmask.f32 3328
      %vm264 = vsmask.f32 7440
      %vm265 = vmor %vm263, %vm264
      %v267 = vshrl.u32 %v199, 16
      %v269 = vrot.slane %v267, 4
      %v270 = vshll.u32 %v199, 16
      %v272 = vrot.slane %v270, 5
      %v273 = vor.u32 %v269, %v272
      %v274 = vrot.slane %v273, 4
      %v276 = vshll.u32 %v200, 16
      %v278 = vrot.slane %v276, 5
      %v279 = vsel %vm265, %v274, %v278
      %v280 = vshrl.u32 %v200, 16
      %v282 = vrot.slane %v280, 4
      %v283 = vor.u32 %v282, %v278
      %v284 = vrot.slane %v283, 4
      %v286 = vshll.u32 %v247, 16
      %v288 = vrot.slane %v286, 5
      %v289 = vsel %vm265, %v284, %v288
      %v291 = vshrl.u32 %v201, 16
      %v293 = vrot.slane %v291, 4
      %v294 = vshll.u32 %v201, 16
      %v296 = vrot.slane %v294, 5
      %v297 = vor.u32 %v293, %v296
      %v298 = vrot.slane %v297, 4
      %v300 = vshll.u32 %v202, 16
      %v302 = vrot.slane %v300, 5
      %v303 = vsel %vm265, %v298, %v302
      %v304 = vshrl.u32 %v202, 16
      %v306 = vrot.slane %v304, 4
      %v307 = vor.u32 %v306, %v302
      %v308 = vrot.slane %v307, 4
      %v310 = vshll.u32 %v248, 16
      %v312 = vrot.slane %v310, 5
      %v313 = vsel %vm265, %v308, %v312
      %v315 = vshrl.u32 %v203, 16
      %v317 = vrot.slane %v315, 4
      %v318 = vshll.u32 %v203, 16
      %v320 = vrot.slane %v318, 5
      %v321 = vor.u32 %v317, %v320
      %v322 = vrot.slane %v321, 4
      %v324 = vshll.u32 %v204, 16
      %v326 = vrot.slane %v324, 5
      %v327 = vsel %vm265, %v322, %v326
      %v328 = vshrl.u32 %v204, 16
      %v330 = vrot.slane %v328, 4
      %v331 = vor.u32 %v330, %v326
      %v332 = vrot.slane %v331, 4
      %v334 = vshll.u32 %v249, 16
      %v336 = vrot.slane %v334, 5
      %v337 = vsel %vm265, %v332, %v336
      %v339 = vshrl.u32 %v205, 16
      %v341 = vrot.slane %v339, 4
      %v342 = vshll.u32 %v205, 16
      %v344 = vrot.slane %v342, 5
      %v345 = vor.u32 %v341, %v344
      %v346 = vrot.slane %v345, 4
      %v348 = vshll.u32 %v206, 16
      %v350 = vrot.slane %v348, 5
      %v351 = vsel %vm265, %v346, %v350
      %v352 = vshrl.u32 %v206, 16
      %v354 = vrot.slane %v352, 4
      %v355 = vor.u32 %v354, %v350
      %v356 = vrot.slane %v355, 4
      %v358 = vshll.u32 %v250, 16
      %v360 = vrot.slane %v358, 5
      %v361 = vsel %vm265, %v356, %v360
      %v363 = vshrl.u32 %v207, 16
      %v365 = vrot.slane %v363, 4
      %v366 = vshll.u32 %v207, 16
      %v368 = vrot.slane %v366, 5
      %v369 = vor.u32 %v365, %v368
      %v370 = vrot.slane %v369, 4
      %v372 = vshll.u32 %v208, 16
      %v374 = vrot.slane %v372, 5
      %v375 = vsel %vm265, %v370, %v374
      %v376 = vshrl.u32 %v208, 16
      %v378 = vrot.slane %v376, 4
      %v379 = vor.u32 %v378, %v374
      %v380 = vrot.slane %v379, 4
      %v382 = vshll.u32 %v251, 16
      %v384 = vrot.slane %v382, 5
      %v385 = vsel %vm265, %v380, %v384
      %v387 = vshrl.u32 %v209, 16
      %v389 = vrot.slane %v387, 4
      %v390 = vshll.u32 %v209, 16
      %v392 = vrot.slane %v390, 5
      %v393 = vor.u32 %v389, %v392
      %v394 = vrot.slane %v393, 4
      %v396 = vshll.u32 %v210, 16
      %v398 = vrot.slane %v396, 5
      %v399 = vsel %vm265, %v394, %v398
      %v400 = vshrl.u32 %v210, 16
      %v402 = vrot.slane %v400, 4
      %v403 = vor.u32 %v402, %v398
      %v404 = vrot.slane %v403, 4
      %v406 = vshll.u32 %v252, 16
      %v408 = vrot.slane %v406, 5
      %v409 = vsel %vm265, %v404, %v408
      %v411 = vshrl.u32 %v211, 16
      %v413 = vrot.slane %v411, 4
      %v414 = vshll.u32 %v211, 16
      %v416 = vrot.slane %v414, 5
      %v417 = vor.u32 %v413, %v416
      %v418 = vrot.slane %v417, 4
      %v420 = vshll.u32 %v212, 16
      %v422 = vrot.slane %v420, 5
      %v423 = vsel %vm265, %v418, %v422
      %v424 = vshrl.u32 %v212, 16
      %v426 = vrot.slane %v424, 4
      %v427 = vor.u32 %v426, %v422
      %v428 = vrot.slane %v427, 4
      %v430 = vshll.u32 %v253, 16
      %v432 = vrot.slane %v430, 5
      %v433 = vsel %vm265, %v428, %v432
      %v435 = vshrl.u32 %v213, 16
      %v437 = vrot.slane %v435, 4
      %v438 = vshll.u32 %v213, 16
      %v440 = vrot.slane %v438, 5
      %v441 = vor.u32 %v437, %v440
      %v442 = vrot.slane %v441, 4
      %v444 = vshll.u32 %v214, 16
      %v446 = vrot.slane %v444, 5
      %v447 = vsel %vm265, %v442, %v446
      %v448 = vshrl.u32 %v214, 16
      %v450 = vrot.slane %v448, 4
      %v451 = vor.u32 %v450, %v446
      %v452 = vrot.slane %v451, 4
      %v454 = vshll.u32 %v254, 16
      %v456 = vrot.slane %v454, 5
      %v457 = vsel %vm265, %v452, %v456
      %v459 = vshrl.u32 %v215, 16
      %v461 = vrot.slane %v459, 4
      %v462 = vshll.u32 %v215, 16
      %v464 = vrot.slane %v462, 5
      %v465 = vor.u32 %v461, %v464
      %v466 = vrot.slane %v465, 4
      %v468 = vshll.u32 %v216, 16
      %v470 = vrot.slane %v468, 5
      %v471 = vsel %vm265, %v466, %v470
      %v472 = vshrl.u32 %v216, 16
      %v474 = vrot.slane %v472, 4
      %v475 = vor.u32 %v474, %v470
      %v476 = vrot.slane %v475, 4
      %v478 = vshll.u32 %v255, 16
      %v480 = vrot.slane %v478, 5
      %v481 = vsel %vm265, %v476, %v480
      %v483 = vshrl.u32 %v217, 16
      %v485 = vrot.slane %v483, 4
      %v486 = vshll.u32 %v217, 16
      %v488 = vrot.slane %v486, 5
      %v489 = vor.u32 %v485, %v488
      %v490 = vrot.slane %v489, 4
      %v492 = vshll.u32 %v218, 16
      %v494 = vrot.slane %v492, 5
      %v495 = vsel %vm265, %v490, %v494
      %v496 = vshrl.u32 %v218, 16
      %v498 = vrot.slane %v496, 4
      %v499 = vor.u32 %v498, %v494
      %v500 = vrot.slane %v499, 4
      %v502 = vshll.u32 %v256, 16
      %v504 = vrot.slane %v502, 5
      %v505 = vsel %vm265, %v500, %v504
      %v507 = vshrl.u32 %v219, 16
      %v509 = vrot.slane %v507, 4
      %v510 = vshll.u32 %v219, 16
      %v512 = vrot.slane %v510, 5
      %v513 = vor.u32 %v509, %v512
      %v514 = vrot.slane %v513, 4
      %v516 = vshll.u32 %v220, 16
      %v518 = vrot.slane %v516, 5
      %v519 = vsel %vm265, %v514, %v518
      %v520 = vshrl.u32 %v220, 16
      %v522 = vrot.slane %v520, 4
      %v523 = vor.u32 %v522, %v518
      %v524 = vrot.slane %v523, 4
      %v526 = vshll.u32 %v257, 16
      %v528 = vrot.slane %v526, 5
      %v529 = vsel %vm265, %v524, %v528
      %v531 = vshrl.u32 %v221, 16
      %v533 = vrot.slane %v531, 4
      %v534 = vshll.u32 %v221, 16
      %v536 = vrot.slane %v534, 5
      %v537 = vor.u32 %v533, %v536
      %v538 = vrot.slane %v537, 4
      %v540 = vshll.u32 %v222, 16
      %v542 = vrot.slane %v540, 5
      %v543 = vsel %vm265, %v538, %v542
      %v544 = vshrl.u32 %v222, 16
      %v546 = vrot.slane %v544, 4
      %v547 = vor.u32 %v546, %v542
      %v548 = vrot.slane %v547, 4
      %v550 = vshll.u32 %v258, 16
      %v552 = vrot.slane %v550, 5
      %v553 = vsel %vm265, %v548, %v552
      %v555 = vshrl.u32 %v223, 16
      %v557 = vrot.slane %v555, 4
      %v558 = vshll.u32 %v223, 16
      %v560 = vrot.slane %v558, 5
      %v561 = vor.u32 %v557, %v560
      %v562 = vrot.slane %v561, 4
      %v564 = vshll.u32 %v224, 16
      %v566 = vrot.slane %v564, 5
      %v567 = vsel %vm265, %v562, %v566
      %v568 = vshrl.u32 %v224, 16
      %v570 = vrot.slane %v568, 4
      %v571 = vor.u32 %v570, %v566
      %v572 = vrot.slane %v571, 4
      %v574 = vshll.u32 %v259, 16
      %v576 = vrot.slane %v574, 5
      %v577 = vsel %vm265, %v572, %v576
      %v579 = vshrl.u32 %v225, 16
      %v581 = vrot.slane %v579, 4
      %v582 = vshll.u32 %v225, 16
      %v584 = vrot.slane %v582, 5
      %v585 = vor.u32 %v581, %v584
      %v586 = vrot.slane %v585, 4
      %v588 = vshll.u32 %v226, 16
      %v590 = vrot.slane %v588, 5
      %v591 = vsel %vm265, %v586, %v590
      %v592 = vshrl.u32 %v226, 16
      %v594 = vrot.slane %v592, 4
      %v595 = vor.u32 %v594, %v590
      %v596 = vrot.slane %v595, 4
      %v598 = vshll.u32 %v260, 16
      %v600 = vrot.slane %v598, 5
      %v601 = vsel %vm265, %v596, %v600
      %v603 = vshrl.u32 %v227, 16
      %v605 = vrot.slane %v603, 4
      %v606 = vshll.u32 %v227, 16
      %v608 = vrot.slane %v606, 5
      %v609 = vor.u32 %v605, %v608
      %v610 = vrot.slane %v609, 4
      %v612 = vshll.u32 %v228, 16
      %v614 = vrot.slane %v612, 5
      %v615 = vsel %vm265, %v610, %v614
      %v616 = vshrl.u32 %v228, 16
      %v618 = vrot.slane %v616, 4
      %v619 = vor.u32 %v618, %v614
      %v620 = vrot.slane %v619, 4
      %v622 = vshll.u32 %v261, 16
      %v624 = vrot.slane %v622, 5
      %v625 = vsel %vm265, %v620, %v624
      %v627 = vshrl.u32 %v229, 16
      %v629 = vrot.slane %v627, 4
      %v630 = vshll.u32 %v229, 16
      %v632 = vrot.slane %v630, 5
      %v633 = vor.u32 %v629, %v632
      %v634 = vrot.slane %v633, 4
      %v636 = vshll.u32 %v230, 16
      %v638 = vrot.slane %v636, 5
      %v639 = vsel %vm265, %v634, %v638
      %v640 = vshrl.u32 %v230, 16
      %v642 = vrot.slane %v640, 4
      %v643 = vor.u32 %v642, %v638
      %v644 = vrot.slane %v643, 4
      %v646 = vshll.u32 %v262, 16
      %v648 = vrot.slane %v646, 5
      %v649 = vsel %vm265, %v644, %v648
      %v650 = vld [vmem:[%s1 + $0x40] sm:$0xf]
      %v651 = vld [vmem:[%s1 + $0x44] sm:$0xf]
      %v652 = vld [vmem:[%s1 + $0x48] sm:$0xf]
      %v653 = vld [vmem:[%s1 + $0x4c] sm:$0xf]
      %v654 = vld [vmem:[%s1 + $0x50] sm:$0xf]
      %v655 = vld [vmem:[%s1 + $0x54] sm:$0xf]
      %v656 = vld [vmem:[%s1 + $0x58] sm:$0xf]
      %v657 = vld [vmem:[%s1 + $0x5c] sm:$0xf]
      %v658 = vld [vmem:[%s1 + $0x60] sm:$0xf]
      %v659 = vld [vmem:[%s1 + $0x64] sm:$0xf]
      %v660 = vld [vmem:[%s1 + $0x68] sm:$0xf]
      %v661 = vld [vmem:[%s1 + $0x6c] sm:$0xf]
      %v662 = vld [vmem:[%s1 + $0x70] sm:$0xf]
      %v663 = vld [vmem:[%s1 + $0x74] sm:$0xf]
      %v664 = vld [vmem:[%s1 + $0x78] sm:$0xf]
      %v665 = vld [vmem:[%s1 + $0x7c] sm:$0xf]
      %v666 = vunpack.c.l.b16 %v279
      %v667 = vunpack.c.l.b16 %v289
      %v668 = vunpack.c.l.b16 %v303
      %v669 = vunpack.c.l.b16 %v313
      %v670 = vunpack.c.l.b16 %v327
      %v671 = vunpack.c.l.b16 %v337
      %v672 = vunpack.c.l.b16 %v351
      %v673 = vunpack.c.l.b16 %v361
      %v674 = vunpack.c.l.b16 %v375
      %v675 = vunpack.c.l.b16 %v385
      %v676 = vunpack.c.l.b16 %v399
      %v677 = vunpack.c.l.b16 %v409
      %v678 = vunpack.c.l.b16 %v423
      %v679 = vunpack.c.l.b16 %v433
      %v680 = vunpack.c.l.b16 %v447
      %v681 = vunpack.c.l.b16 %v457
      %v682 = vunpack.c.l.b16 %v471
      %v683 = vunpack.c.l.b16 %v481
      %v684 = vunpack.c.l.b16 %v495
      %v685 = vunpack.c.l.b16 %v505
      %v686 = vunpack.c.l.b16 %v519
      %v687 = vunpack.c.l.b16 %v529
      %v688 = vunpack.c.l.b16 %v543
      %v689 = vunpack.c.l.b16 %v553
      %v690 = vunpack.c.l.b16 %v567
      %v691 = vunpack.c.l.b16 %v577
      %v692 = vunpack.c.l.b16 %v591
      %v693 = vunpack.c.l.b16 %v601
      %v694 = vunpack.c.l.b16 %v615
      %v695 = vunpack.c.l.b16 %v625
      %v696 = vunpack.c.l.b16 %v639
      %v697 = vunpack.c.l.b16 %v649
      %v698 = vpack.c.b16 %v667, %v666
      %v699 = vpack.c.b16 %v669, %v668
      %v700 = vpack.c.b16 %v671, %v670
      %v701 = vpack.c.b16 %v673, %v672
      %v702 = vpack.c.b16 %v675, %v674
      %v703 = vpack.c.b16 %v677, %v676
      %v704 = vpack.c.b16 %v679, %v678
      %v705 = vpack.c.b16 %v681, %v680
      %v706 = vpack.c.b16 %v683, %v682
      %v707 = vpack.c.b16 %v685, %v684
      %v708 = vpack.c.b16 %v687, %v686
      %v709 = vpack.c.b16 %v689, %v688
      %v710 = vpack.c.b16 %v691, %v690
      %v711 = vpack.c.b16 %v693, %v692
      %v712 = vpack.c.b16 %v695, %v694
      %v713 = vpack.c.b16 %v697, %v696
      %v746 = vunpack.c.l.b16 %v650
      %v747 = vunpack.c.l.b16 %v651
      %v748 = vunpack.c.l.b16 %v652
      %v749 = vunpack.c.l.b16 %v653
      %v750 = vunpack.c.l.b16 %v654
      %v751 = vunpack.c.l.b16 %v655
      %v752 = vunpack.c.l.b16 %v656
      %v753 = vunpack.c.l.b16 %v657
      %v754 = vunpack.c.l.b16 %v658
      %v755 = vunpack.c.l.b16 %v659
      %v756 = vunpack.c.l.b16 %v660
      %v757 = vunpack.c.l.b16 %v661
      %v758 = vunpack.c.l.b16 %v662
      %v759 = vunpack.c.l.b16 %v663
      %v760 = vunpack.c.l.b16 %v664
      %v761 = vunpack.c.l.b16 %v665
      %v762 = vpack.c.b16 %v747, %v746
      %v763 = vpack.c.b16 %v749, %v748
      %v764 = vpack.c.b16 %v751, %v750
      %v765 = vpack.c.b16 %v753, %v752
      %v766 = vpack.c.b16 %v755, %v754
      %v767 = vpack.c.b16 %v757, %v756
      %v768 = vpack.c.b16 %v759, %v758
      %v769 = vpack.c.b16 %v761, %v760
      %778 = vmatprep.subr.bf16.mxu0 0
      %779 = vmatpush1.bf16.msra.mxu0 %v762
      %780 = vmatprep.subr.bf16.mxu0 0
      %781 = vmatpush1.bf16.msra.mxu0 %v763
      %782 = vmatprep.subr.bf16.mxu0 0
      %783 = vmatpush1.bf16.msra.mxu0 %v764
      %784 = vmatprep.subr.bf16.mxu0 0
      %785 = vmatpush1.bf16.msra.mxu0 %v765
      %786 = vmatprep.subr.bf16.mxu0 0
      %787 = vmatpush1.bf16.msra.mxu0 %v766
      %788 = vmatprep.subr.bf16.mxu0 0
      %789 = vmatpush1.bf16.msra.mxu0 %v767
      %790 = vmatprep.subr.bf16.mxu0 0
      %791 = vmatpush1.bf16.msra.mxu0 %v768
      %792 = vmatprep.subr.bf16.mxu0 0
      %793 = vmatpush1.bf16.msra.mxu0 %v769
      %794 = vmatprep.subr.bf16.mxu0 0
      %795 = vmatpush1.bf16.msra.mxu0 0
      %796 = vmatprep.subr.bf16.mxu0 0
      %797 = vmatpush1.bf16.msra.mxu0 0
      %798 = vmatprep.subr.bf16.mxu0 0
      %799 = vmatpush1.bf16.msra.mxu0 0
      %800 = vmatprep.subr.bf16.mxu0 0
      %801 = vmatpush1.bf16.msra.mxu0 0
      %802 = vmatprep.subr.bf16.mxu0 0
      %803 = vmatpush1.bf16.msra.mxu0 0
      %804 = vmatprep.subr.bf16.mxu0 0
      %805 = vmatpush1.bf16.msra.mxu0 0
      %806 = vmatprep.subr.bf16.mxu0 0
      %807 = vmatpush1.bf16.msra.mxu0 0
      %808 = vmatprep.subr.bf16.mxu0 0
      %809 = vmatpush1.bf16.msra.mxu0 0
      %810 = vmatprep.mubr.bf16.mxu0 0
      %811 = vmatmul.mubr.bf16.gmra.mrb[0].mxu0 %v698
      %v812 = vpop.f32.mrb[0].mxu0
      %v813 = vadd.f32 0.0, %v812
      %v814 = vpop.f32.mrb[0].mxu0
      %v815 = vpop.f32.mrb[0].mxu0
      %v816 = vadd.f32 0.0, %v815
      %v817 = vpop.f32.mrb[0].mxu0
      %818 = vmatprep.mubr.bf16.mxu0 0
      %819 = vmatmul.mubr.bf16.gmra.mrb[0].mxu0 %v699
      %v820 = vpop.f32.mrb[0].mxu0
      %v821 = vadd.f32 0.0, %v820
      %v822 = vpop.f32.mrb[0].mxu0
      %v823 = vpop.f32.mrb[0].mxu0
      %v824 = vadd.f32 0.0, %v823
      %v825 = vpop.f32.mrb[0].mxu0
      %826 = vmatprep.mubr.bf16.mxu0 0
      %827 = vmatmul.mubr.bf16.gmra.mrb[0].mxu0 %v700
      %v828 = vpop.f32.mrb[0].mxu0
      %v829 = vadd.f32 0.0, %v828
      %v830 = vpop.f32.mrb[0].mxu0
      %v831 = vpop.f32.mrb[0].mxu0
      %v832 = vadd.f32 0.0, %v831
      %v833 = vpop.f32.mrb[0].mxu0
      %834 = vmatprep.mubr.bf16.mxu0 0
      %835 = vmatmul.mubr.bf16.gmra.mrb[0].mxu0 %v701
      %v836 = vpop.f32.mrb[0].mxu0
      %v837 = vadd.f32 0.0, %v836
      %v838 = vpop.f32.mrb[0].mxu0
      %v839 = vpop.f32.mrb[0].mxu0
      %v840 = vadd.f32 0.0, %v839
      %v841 = vpop.f32.mrb[0].mxu0
      %842 = vmatprep.mubr.bf16.mxu0 0
      %843 = vmatmul.mubr.bf16.gmra.mrb[0].mxu0 %v702
      %v844 = vpop.f32.mrb[0].mxu0
      %v845 = vadd.f32 0.0, %v844
      %v846 = vpop.f32.mrb[0].mxu0
      %v847 = vpop.f32.mrb[0].mxu0
      %v848 = vadd.f32 0.0, %v847
      %v849 = vpop.f32.mrb[0].mxu0
      %850 = vmatprep.mubr.bf16.mxu0 0
      %851 = vmatmul.mubr.bf16.gmra.mrb[0].mxu0 %v703
      %v852 = vpop.f32.mrb[0].mxu0
      %v853 = vadd.f32 0.0, %v852
      %v854 = vpop.f32.mrb[0].mxu0
      %v855 = vpop.f32.mrb[0].mxu0
      %v856 = vadd.f32 0.0, %v855
      %v857 = vpop.f32.mrb[0].mxu0
      %858 = vmatprep.mubr.bf16.mxu0 0
      %859 = vmatmul.mubr.bf16.gmra.mrb[0].mxu0 %v704
      %v860 = vpop.f32.mrb[0].mxu0
      %v861 = vadd.f32 0.0, %v860
      %v862 = vpop.f32.mrb[0].mxu0
      %v863 = vpop.f32.mrb[0].mxu0
      %v864 = vadd.f32 0.0, %v863
      %v865 = vpop.f32.mrb[0].mxu0
      %866 = vmatprep.mubr.bf16.mxu0 0
      %867 = vmatmul.mubr.bf16.gmra.mrb[0].mxu0 %v705
      %v868 = vpop.f32.mrb[0].mxu0
      %v869 = vadd.f32 0.0, %v868
      %v870 = vpop.f32.mrb[0].mxu0
      %v871 = vpop.f32.mrb[0].mxu0
      %v872 = vadd.f32 0.0, %v871
      %v873 = vpop.f32.mrb[0].mxu0
      %874 = vmatprep.mubr.bf16.mxu0 0
      %875 = vmatmul.mubr.bf16.gmra.mrb[0].mxu0 %v706
      %v876 = vpop.f32.mrb[0].mxu0
      %v877 = vadd.f32 0.0, %v876
      %v878 = vpop.f32.mrb[0].mxu0
      %v879 = vpop.f32.mrb[0].mxu0
      %v880 = vadd.f32 0.0, %v879
      %v881 = vpop.f32.mrb[0].mxu0
      %882 = vmatprep.mubr.bf16.mxu0 0
      %883 = vmatmul.mubr.bf16.gmra.mrb[0].mxu0 %v707
      %v884 = vpop.f32.mrb[0].mxu0
      %v885 = vadd.f32 0.0, %v884
      %v886 = vpop.f32.mrb[0].mxu0
      %v887 = vpop.f32.mrb[0].mxu0
      %v888 = vadd.f32 0.0, %v887
      %v889 = vpop.f32.mrb[0].mxu0
      %890 = vmatprep.mubr.bf16.mxu0 0
      %891 = vmatmul.mubr.bf16.gmra.mrb[0].mxu0 %v708
      %v892 = vpop.f32.mrb[0].mxu0
      %v893 = vadd.f32 0.0, %v892
      %v894 = vpop.f32.mrb[0].mxu0
      %v895 = vpop.f32.mrb[0].mxu0
      %v896 = vadd.f32 0.0, %v895
      %v897 = vpop.f32.mrb[0].mxu0
      %898 = vmatprep.mubr.bf16.mxu0 0
      %899 = vmatmul.mubr.bf16.gmra.mrb[0].mxu0 %v709
      %v900 = vpop.f32.mrb[0].mxu0
      %v901 = vadd.f32 0.0, %v900
      %v902 = vpop.f32.mrb[0].mxu0
      %v903 = vpop.f32.mrb[0].mxu0
      %v904 = vadd.f32 0.0, %v903
      %v905 = vpop.f32.mrb[0].mxu0
      %906 = vmatprep.mubr.bf16.mxu0 0
      %907 = vmatmul.mubr.bf16.gmra.mrb[0].mxu0 %v710
      %v908 = vpop.f32.mrb[0].mxu0
      %v909 = vadd.f32 0.0, %v908
      %v910 = vpop.f32.mrb[0].mxu0
      %v911 = vpop.f32.mrb[0].mxu0
      %v912 = vadd.f32 0.0, %v911
      %v913 = vpop.f32.mrb[0].mxu0
      %914 = vmatprep.mubr.bf16.mxu0 0
      %915 = vmatmul.mubr.bf16.gmra.mrb[0].mxu0 %v711
      %v916 = vpop.f32.mrb[0].mxu0
      %v917 = vadd.f32 0.0, %v916
      %v918 = vpop.f32.mrb[0].mxu0
      %v919 = vpop.f32.mrb[0].mxu0
      %v920 = vadd.f32 0.0, %v919
      %v921 = vpop.f32.mrb[0].mxu0
      %922 = vmatprep.mubr.bf16.mxu0 0
      %923 = vmatmul.mubr.bf16.gmra.mrb[0].mxu0 %v712
      %v924 = vpop.f32.mrb[0].mxu0
      %v925 = vadd.f32 0.0, %v924
      %v926 = vpop.f32.mrb[0].mxu0
      %v927 = vpop.f32.mrb[0].mxu0
      %v928 = vadd.f32 0.0, %v927
      %v929 = vpop.f32.mrb[0].mxu0
      %930 = vmatprep.mubr.bf16.mxu0 0
      %931 = vmatmul.mubr.bf16.gmra.mrb[0].mxu0 %v713
      %v932 = vpop.f32.mrb[0].mxu0
      %v933 = vadd.f32 0.0, %v932
      %v934 = vpop.f32.mrb[0].mxu0
      %v935 = vpop.f32.mrb[0].mxu0
      %v936 = vadd.f32 0.0, %v935
      %v937 = vpop.f32.mrb[0].mxu0
      %938 = vdwg.mxu0
      %v971 = vunpack.c.l.b16 %v199
      %v972 = vunpack.c.l.b16 %v200
      %v973 = vunpack.c.l.b16 %v201
      %v974 = vunpack.c.l.b16 %v202
      %v975 = vunpack.c.l.b16 %v203
      %v976 = vunpack.c.l.b16 %v204
      %v977 = vunpack.c.l.b16 %v205
      %v978 = vunpack.c.l.b16 %v206
      %v979 = vunpack.c.l.b16 %v207
      %v980 = vunpack.c.l.b16 %v208
      %v981 = vunpack.c.l.b16 %v209
      %v982 = vunpack.c.l.b16 %v210
      %v983 = vunpack.c.l.b16 %v211
      %v984 = vunpack.c.l.b16 %v212
      %v985 = vunpack.c.l.b16 %v213
      %v986 = vunpack.c.l.b16 %v214
      %v987 = vunpack.c.l.b16 %v215
      %v988 = vunpack.c.l.b16 %v216
      %v989 = vunpack.c.l.b16 %v217
      %v990 = vunpack.c.l.b16 %v218
      %v991 = vunpack.c.l.b16 %v219
      %v992 = vunpack.c.l.b16 %v220
      %v993 = vunpack.c.l.b16 %v221
      %v994 = vunpack.c.l.b16 %v222
      %v995 = vunpack.c.l.b16 %v223
      %v996 = vunpack.c.l.b16 %v224
      %v997 = vunpack.c.l.b16 %v225
      %v998 = vunpack.c.l.b16 %v226
      %v999 = vunpack.c.l.b16 %v227
      %v1000 = vunpack.c.l.b16 %v228
      %v1001 = vunpack.c.l.b16 %v229
      %v1002 = vunpack.c.l.b16 %v230
      %v1003 = vpack.c.b16 %v972, %v971
      %v1004 = vpack.c.b16 %v974, %v973
      %v1005 = vpack.c.b16 %v976, %v975
      %v1006 = vpack.c.b16 %v978, %v977
      %v1007 = vpack.c.b16 %v980, %v979
      %v1008 = vpack.c.b16 %v982, %v981
      %v1009 = vpack.c.b16 %v984, %v983
      %v1010 = vpack.c.b16 %v986, %v985
      %v1011 = vpack.c.b16 %v988, %v987
      %v1012 = vpack.c.b16 %v990, %v989
      %v1013 = vpack.c.b16 %v992, %v991
      %v1014 = vpack.c.b16 %v994, %v993
      %v1015 = vpack.c.b16 %v996, %v995
      %v1016 = vpack.c.b16 %v998, %v997
      %v1017 = vpack.c.b16 %v1000, %v999
      %v1018 = vpack.c.b16 %v1002, %v1001
      %v1051 = vunpack.c.l.b16 %v231
      %v1052 = vunpack.c.l.b16 %v232
      %v1053 = vunpack.c.l.b16 %v233
      %v1054 = vunpack.c.l.b16 %v234
      %v1055 = vunpack.c.l.b16 %v235
      %v1056 = vunpack.c.l.b16 %v236
      %v1057 = vunpack.c.l.b16 %v237
      %v1058 = vunpack.c.l.b16 %v238
      %v1059 = vunpack.c.l.b16 %v239
      %v1060 = vunpack.c.l.b16 %v240
      %v1061 = vunpack.c.l.b16 %v241
      %v1062 = vunpack.c.l.b16 %v242
      %v1063 = vunpack.c.l.b16 %v243
      %v1064 = vunpack.c.l.b16 %v244
      %v1065 = vunpack.c.l.b16 %v245
      %v1066 = vunpack.c.l.b16 %v246
      %v1067 = vpack.c.b16 %v1052, %v1051
      %v1068 = vpack.c.b16 %v1054, %v1053
      %v1069 = vpack.c.b16 %v1056, %v1055
      %v1070 = vpack.c.b16 %v1058, %v1057
      %v1071 = vpack.c.b16 %v1060, %v1059
      %v1072 = vpack.c.b16 %v1062, %v1061
      %v1073 = vpack.c.b16 %v1064, %v1063
      %v1074 = vpack.c.b16 %v1066, %v1065
      %1083 = vmatprep.subr.bf16.mxu0 0
      %1084 = vmatpush1.bf16.msra.mxu0 %v1067
      %1085 = vmatprep.subr.bf16.mxu0 0
      %1086 = vmatpush1.bf16.msra.mxu0 %v1068
      %1087 = vmatprep.subr.bf16.mxu0 0
      %1088 = vmatpush1.bf16.msra.mxu0 %v1069
      %1089 = vmatprep.subr.bf16.mxu0 0
      %1090 = vmatpush1.bf16.msra.mxu0 %v1070
      %1091 = vmatprep.subr.bf16.mxu0 0
      %1092 = vmatpush1.bf16.msra.mxu0 %v1071
      %1093 = vmatprep.subr.bf16.mxu0 0
      %1094 = vmatpush1.bf16.msra.mxu0 %v1072
      %1095 = vmatprep.subr.bf16.mxu0 0
      %1096 = vmatpush1.bf16.msra.mxu0 %v1073
      %1097 = vmatprep.subr.bf16.mxu0 0
      %1098 = vmatpush1.bf16.msra.mxu0 %v1074
      %1099 = vmatprep.subr.bf16.mxu0 0
      %1100 = vmatpush1.bf16.msra.mxu0 0
      %1101 = vmatprep.subr.bf16.mxu0 0
      %1102 = vmatpush1.bf16.msra.mxu0 0
      %1103 = vmatprep.subr.bf16.mxu0 0
      %1104 = vmatpush1.bf16.msra.mxu0 0
      %1105 = vmatprep.subr.bf16.mxu0 0
      %1106 = vmatpush1.bf16.msra.mxu0 0
      %1107 = vmatprep.subr.bf16.mxu0 0
      %1108 = vmatpush1.bf16.msra.mxu0 0
      %1109 = vmatprep.subr.bf16.mxu0 0
      %1110 = vmatpush1.bf16.msra.mxu0 0
      %1111 = vmatprep.subr.bf16.mxu0 0
      %1112 = vmatpush1.bf16.msra.mxu0 0
      %1113 = vmatprep.subr.bf16.mxu0 0
      %1114 = vmatpush1.bf16.msra.mxu0 0
      %1115 = vmatprep.mubr.bf16.mxu0 0
      %1116 = vmatmul.mubr.bf16.gmra.mrb[0].mxu0 %v1003
      %v1117 = vpop.f32.mrb[0].mxu0
      %v1118 = vadd.f32 %v813, %v1117
      %v1119 = vpop.f32.mrb[0].mxu0
      %v1120 = vpop.f32.mrb[0].mxu0
      %v1121 = vadd.f32 %v816, %v1120
      %v1122 = vpop.f32.mrb[0].mxu0
      %1123 = vmatprep.mubr.bf16.mxu0 0
      %1124 = vmatmul.mubr.bf16.gmra.mrb[0].mxu0 %v1004
      %v1125 = vpop.f32.mrb[0].mxu0
      %v1126 = vadd.f32 %v821, %v1125
      %v1127 = vpop.f32.mrb[0].mxu0
      %v1128 = vpop.f32.mrb[0].mxu0
      %v1129 = vadd.f32 %v824, %v1128
      %v1130 = vpop.f32.mrb[0].mxu0
      %1131 = vmatprep.mubr.bf16.mxu0 0
      %1132 = vmatmul.mubr.bf16.gmra.mrb[0].mxu0 %v1005
      %v1133 = vpop.f32.mrb[0].mxu0
      %v1134 = vadd.f32 %v829, %v1133
      %v1135 = vpop.f32.mrb[0].mxu0
      %v1136 = vpop.f32.mrb[0].mxu0
      %v1137 = vadd.f32 %v832, %v1136
      %v1138 = vpop.f32.mrb[0].mxu0
      %1139 = vmatprep.mubr.bf16.mxu0 0
      %1140 = vmatmul.mubr.bf16.gmra.mrb[0].mxu0 %v1006
      %v1141 = vpop.f32.mrb[0].mxu0
      %v1142 = vadd.f32 %v837, %v1141
      %v1143 = vpop.f32.mrb[0].mxu0
      %v1144 = vpop.f32.mrb[0].mxu0
      %v1145 = vadd.f32 %v840, %v1144
      %v1146 = vpop.f32.mrb[0].mxu0
      %1147 = vmatprep.mubr.bf16.mxu0 0
      %1148 = vmatmul.mubr.bf16.gmra.mrb[0].mxu0 %v1007
      %v1149 = vpop.f32.mrb[0].mxu0
      %v1150 = vadd.f32 %v845, %v1149
      %v1151 = vpop.f32.mrb[0].mxu0
      %v1152 = vpop.f32.mrb[0].mxu0
      %v1153 = vadd.f32 %v848, %v1152
      %v1154 = vpop.f32.mrb[0].mxu0
      %1155 = vmatprep.mubr.bf16.mxu0 0
      %1156 = vmatmul.mubr.bf16.gmra.mrb[0].mxu0 %v1008
      %v1157 = vpop.f32.mrb[0].mxu0
      %v1158 = vadd.f32 %v853, %v1157
      %v1159 = vpop.f32.mrb[0].mxu0
      %v1160 = vpop.f32.mrb[0].mxu0
      %v1161 = vadd.f32 %v856, %v1160
      %v1162 = vpop.f32.mrb[0].mxu0
      %1163 = vmatprep.mubr.bf16.mxu0 0
      %1164 = vmatmul.mubr.bf16.gmra.mrb[0].mxu0 %v1009
      %v1165 = vpop.f32.mrb[0].mxu0
      %v1166 = vadd.f32 %v861, %v1165
      %v1167 = vpop.f32.mrb[0].mxu0
      %v1168 = vpop.f32.mrb[0].mxu0
      %v1169 = vadd.f32 %v864, %v1168
      %v1170 = vpop.f32.mrb[0].mxu0
      %1171 = vmatprep.mubr.bf16.mxu0 0
      %1172 = vmatmul.mubr.bf16.gmra.mrb[0].mxu0 %v1010
      %v1173 = vpop.f32.mrb[0].mxu0
      %v1174 = vadd.f32 %v869, %v1173
      %v1175 = vpop.f32.mrb[0].mxu0
      %v1176 = vpop.f32.mrb[0].mxu0
      %v1177 = vadd.f32 %v872, %v1176
      %v1178 = vpop.f32.mrb[0].mxu0
      %1179 = vmatprep.mubr.bf16.mxu0 0
      %1180 = vmatmul.mubr.bf16.gmra.mrb[0].mxu0 %v1011
      %v1181 = vpop.f32.mrb[0].mxu0
      %v1182 = vadd.f32 %v877, %v1181
      %v1183 = vpop.f32.mrb[0].mxu0
      %v1184 = vpop.f32.mrb[0].mxu0
      %v1185 = vadd.f32 %v880, %v1184
      %v1186 = vpop.f32.mrb[0].mxu0
      %1187 = vmatprep.mubr.bf16.mxu0 0
      %1188 = vmatmul.mubr.bf16.gmra.mrb[0].mxu0 %v1012
      %v1189 = vpop.f32.mrb[0].mxu0
      %v1190 = vadd.f32 %v885, %v1189
      %v1191 = vpop.f32.mrb[0].mxu0
      %v1192 = vpop.f32.mrb[0].mxu0
      %v1193 = vadd.f32 %v888, %v1192
      %v1194 = vpop.f32.mrb[0].mxu0
      %1195 = vmatprep.mubr.bf16.mxu0 0
      %1196 = vmatmul.mubr.bf16.gmra.mrb[0].mxu0 %v1013
      %v1197 = vpop.f32.mrb[0].mxu0
      %v1198 = vadd.f32 %v893, %v1197
      %v1199 = vpop.f32.mrb[0].mxu0
      %v1200 = vpop.f32.mrb[0].mxu0
      %v1201 = vadd.f32 %v896, %v1200
      %v1202 = vpop.f32.mrb[0].mxu0
      %1203 = vmatprep.mubr.bf16.mxu0 0
      %1204 = vmatmul.mubr.bf16.gmra.mrb[0].mxu0 %v1014
      %v1205 = vpop.f32.mrb[0].mxu0
      %v1206 = vadd.f32 %v901, %v1205
      %v1207 = vpop.f32.mrb[0].mxu0
      %v1208 = vpop.f32.mrb[0].mxu0
      %v1209 = vadd.f32 %v904, %v1208
      %v1210 = vpop.f32.mrb[0].mxu0
      %1211 = vmatprep.mubr.bf16.mxu0 0
      %1212 = vmatmul.mubr.bf16.gmra.mrb[0].mxu0 %v1015
      %v1213 = vpop.f32.mrb[0].mxu0
      %v1214 = vadd.f32 %v909, %v1213
      %v1215 = vpop.f32.mrb[0].mxu0
      %v1216 = vpop.f32.mrb[0].mxu0
      %v1217 = vadd.f32 %v912, %v1216
      %v1218 = vpop.f32.mrb[0].mxu0
      %1219 = vmatprep.mubr.bf16.mxu0 0
      %1220 = vmatmul.mubr.bf16.gmra.mrb[0].mxu0 %v1016
      %v1221 = vpop.f32.mrb[0].mxu0
      %v1222 = vadd.f32 %v917, %v1221
      %v1223 = vpop.f32.mrb[0].mxu0
      %v1224 = vpop.f32.mrb[0].mxu0
      %v1225 = vadd.f32 %v920, %v1224
      %v1226 = vpop.f32.mrb[0].mxu0
      %1227 = vmatprep.mubr.bf16.mxu0 0
      %1228 = vmatmul.mubr.bf16.gmra.mrb[0].mxu0 %v1017
      %v1229 = vpop.f32.mrb[0].mxu0
      %v1230 = vadd.f32 %v925, %v1229
      %v1231 = vpop.f32.mrb[0].mxu0
      %v1232 = vpop.f32.mrb[0].mxu0
      %v1233 = vadd.f32 %v928, %v1232
      %v1234 = vpop.f32.mrb[0].mxu0
      %1235 = vmatprep.mubr.bf16.mxu0 0
      %1236 = vmatmul.mubr.bf16.gmra.mrb[0].mxu0 %v1018
      %v1237 = vpop.f32.mrb[0].mxu0
      %v1238 = vadd.f32 %v933, %v1237
      %v1239 = vpop.f32.mrb[0].mxu0
      %v1240 = vpop.f32.mrb[0].mxu0
      %v1241 = vadd.f32 %v936, %v1240
      %v1242 = vpop.f32.mrb[0].mxu0
      %1243 = vdwg.mxu0
      %v1244 = vld [vmem:[%s198] sm:$0xe]
      %v1245 = vld [vmem:[%s198 + $0xc] sm:$0xe]
      %v1246 = vld [vmem:[%s198 + $0x18] sm:$0xe]
      %v1247 = vld [vmem:[%s198 + $0x24] sm:$0xe]
      %v1248 = vld [vmem:[%s198 + $0x30] sm:$0xe]
      %v1249 = vld [vmem:[%s198 + $0x3c] sm:$0xe]
      %v1250 = vld [vmem:[%s198 + $0x48] sm:$0xe]
      %v1251 = vld [vmem:[%s198 + $0x54] sm:$0xe]
      %v1252 = vld [vmem:[%s198 + $0x60] sm:$0xe]
      %v1253 = vld [vmem:[%s198 + $0x6c] sm:$0xe]
      %v1254 = vld [vmem:[%s198 + $0x78] sm:$0xe]
      %v1255 = vld [vmem:[%s198 + $0x84] sm:$0xe]
      %v1256 = vld [vmem:[%s198 + $0x90] sm:$0xe]
      %v1257 = vld [vmem:[%s198 + $0x9c] sm:$0xe]
      %v1258 = vld [vmem:[%s198 + $0xa8] sm:$0xe]
      %v1259 = vld [vmem:[%s198 + $0xb4] sm:$0xe]
      %vm1292 = vcmask 1042432
      %vm1293 = vcmask 1046532
      %vm1294 = vmor %vm1292, %vm1293
      %v1295 = vrot.slane %v1244, 5
      %v1296 = vrot.slane %v1295, 4
      %v1297 = vrot.slane %v200, 5
      %v1298 = vsel %vm1294, %v1296, %v1297
      %v1299 = vrot.slane %v1297, 4
      %v1300 = vrot.slane %v247, 5
      %v1301 = vsel %vm1294, %v1299, %v1300
      %v1302 = vrot.slane %v1245, 5
      %v1303 = vrot.slane %v1302, 4
      %v1304 = vrot.slane %v202, 5
      %v1305 = vsel %vm1294, %v1303, %v1304
      %v1306 = vrot.slane %v1304, 4
      %v1307 = vrot.slane %v248, 5
      %v1308 = vsel %vm1294, %v1306, %v1307
      %v1309 = vrot.slane %v1246, 5
      %v1310 = vrot.slane %v1309, 4
      %v1311 = vrot.slane %v204, 5
      %v1312 = vsel %vm1294, %v1310, %v1311
      %v1313 = vrot.slane %v1311, 4
      %v1314 = vrot.slane %v249, 5
      %v1315 = vsel %vm1294, %v1313, %v1314
      %v1316 = vrot.slane %v1247, 5
      %v1317 = vrot.slane %v1316, 4
      %v1318 = vrot.slane %v206, 5
      %v1319 = vsel %vm1294, %v1317, %v1318
      %v1320 = vrot.slane %v1318, 4
      %v1321 = vrot.slane %v250, 5
      %v1322 = vsel %vm1294, %v1320, %v1321
      %v1323 = vrot.slane %v1248, 5
      %v1324 = vrot.slane %v1323, 4
      %v1325 = vrot.slane %v208, 5
      %v1326 = vsel %vm1294, %v1324, %v1325
      %v1327 = vrot.slane %v1325, 4
      %v1328 = vrot.slane %v251, 5
      %v1329 = vsel %vm1294, %v1327, %v1328
      %v1330 = vrot.slane %v1249, 5
      %v1331 = vrot.slane %v1330, 4
      %v1332 = vrot.slane %v210, 5
      %v1333 = vsel %vm1294, %v1331, %v1332
      %v1334 = vrot.slane %v1332, 4
      %v1335 = vrot.slane %v252, 5
      %v1336 = vsel %vm1294, %v1334, %v1335
      %v1337 = vrot.slane %v1250, 5
      %v1338 = vrot.slane %v1337, 4
      %v1339 = vrot.slane %v212, 5
      %v1340 = vsel %vm1294, %v1338, %v1339
      %v1341 = vrot.slane %v1339, 4
      %v1342 = vrot.slane %v253, 5
      %v1343 = vsel %vm1294, %v1341, %v1342
      %v1344 = vrot.slane %v1251, 5
      %v1345 = vrot.slane %v1344, 4
      %v1346 = vrot.slane %v214, 5
      %v1347 = vsel %vm1294, %v1345, %v1346
      %v1348 = vrot.slane %v1346, 4
      %v1349 = vrot.slane %v254, 5
      %v1350 = vsel %vm1294, %v1348, %v1349
      %v1351 = vrot.slane %v1252, 5
      %v1352 = vrot.slane %v1351, 4
      %v1353 = vrot.slane %v216, 5
      %v1354 = vsel %vm1294, %v1352, %v1353
      %v1355 = vrot.slane %v1353, 4
      %v1356 = vrot.slane %v255, 5
      %v1357 = vsel %vm1294, %v1355, %v1356
      %v1358 = vrot.slane %v1253, 5
      %v1359 = vrot.slane %v1358, 4
      %v1360 = vrot.slane %v218, 5
      %v1361 = vsel %vm1294, %v1359, %v1360
      %v1362 = vrot.slane %v1360, 4
      %v1363 = vrot.slane %v256, 5
      %v1364 = vsel %vm1294, %v1362, %v1363
      %v1365 = vrot.slane %v1254, 5
      %v1366 = vrot.slane %v1365, 4
      %v1367 = vrot.slane %v220, 5
      %v1368 = vsel %vm1294, %v1366, %v1367
      %v1369 = vrot.slane %v1367, 4
      %v1370 = vrot.slane %v257, 5
      %v1371 = vsel %vm1294, %v1369, %v1370
      %v1372 = vrot.slane %v1255, 5
      %v1373 = vrot.slane %v1372, 4
      %v1374 = vrot.slane %v222, 5
      %v1375 = vsel %vm1294, %v1373, %v1374
      %v1376 = vrot.slane %v1374, 4
      %v1377 = vrot.slane %v258, 5
      %v1378 = vsel %vm1294, %v1376, %v1377
      %v1379 = vrot.slane %v1256, 5
      %v1380 = vrot.slane %v1379, 4
      %v1381 = vrot.slane %v224, 5
      %v1382 = vsel %vm1294, %v1380, %v1381
      %v1383 = vrot.slane %v1381, 4
      %v1384 = vrot.slane %v259, 5
      %v1385 = vsel %vm1294, %v1383, %v1384
      %v1386 = vrot.slane %v1257, 5
      %v1387 = vrot.slane %v1386, 4
      %v1388 = vrot.slane %v226, 5
      %v1389 = vsel %vm1294, %v1387, %v1388
      %v1390 = vrot.slane %v1388, 4
      %v1391 = vrot.slane %v260, 5
      %v1392 = vsel %vm1294, %v1390, %v1391
      %v1393 = vrot.slane %v1258, 5
      %v1394 = vrot.slane %v1393, 4
      %v1395 = vrot.slane %v228, 5
      %v1396 = vsel %vm1294, %v1394, %v1395
      %v1397 = vrot.slane %v1395, 4
      %v1398 = vrot.slane %v261, 5
      %v1399 = vsel %vm1294, %v1397, %v1398
      %v1400 = vrot.slane %v1259, 5
      %v1401 = vrot.slane %v1400, 4
      %v1402 = vrot.slane %v230, 5
      %v1403 = vsel %vm1294, %v1401, %v1402
      %v1404 = vrot.slane %v1402, 4
      %v1405 = vrot.slane %v262, 5
      %v1406 = vsel %vm1294, %v1404, %v1405
      %v1407 = vld [vmem:[%s1 + $0x80] sm:$0xf]
      %v1408 = vld [vmem:[%s1 + $0x84] sm:$0xf]
      %v1409 = vld [vmem:[%s1 + $0x88] sm:$0xf]
      %v1410 = vld [vmem:[%s1 + $0x8c] sm:$0xf]
      %v1411 = vld [vmem:[%s1 + $0x90] sm:$0xf]
      %v1412 = vld [vmem:[%s1 + $0x94] sm:$0xf]
      %v1413 = vld [vmem:[%s1 + $0x98] sm:$0xf]
      %v1414 = vld [vmem:[%s1 + $0x9c] sm:$0xf]
      %v1415 = vld [vmem:[%s1 + $0xa0] sm:$0xf]
      %v1416 = vld [vmem:[%s1 + $0xa4] sm:$0xf]
      %v1417 = vld [vmem:[%s1 + $0xa8] sm:$0xf]
      %v1418 = vld [vmem:[%s1 + $0xac] sm:$0xf]
      %v1419 = vld [vmem:[%s1 + $0xb0] sm:$0xf]
      %v1420 = vld [vmem:[%s1 + $0xb4] sm:$0xf]
      %v1421 = vld [vmem:[%s1 + $0xb8] sm:$0xf]
      %v1422 = vld [vmem:[%s1 + $0xbc] sm:$0xf]
      %v1423 = vunpack.c.l.b16 %v1298
      %v1424 = vunpack.c.l.b16 %v1301
      %v1425 = vunpack.c.l.b16 %v1305
      %v1426 = vunpack.c.l.b16 %v1308
      %v1427 = vunpack.c.l.b16 %v1312
      %v1428 = vunpack.c.l.b16 %v1315
      %v1429 = vunpack.c.l.b16 %v1319
      %v1430 = vunpack.c.l.b16 %v1322
      %v1431 = vunpack.c.l.b16 %v1326
      %v1432 = vunpack.c.l.b16 %v1329
      %v1433 = vunpack.c.l.b16 %v1333
      %v1434 = vunpack.c.l.b16 %v1336
      %v1435 = vunpack.c.l.b16 %v1340
      %v1436 = vunpack.c.l.b16 %v1343
      %v1437 = vunpack.c.l.b16 %v1347
      %v1438 = vunpack.c.l.b16 %v1350
      %v1439 = vunpack.c.l.b16 %v1354
      %v1440 = vunpack.c.l.b16 %v1357
      %v1441 = vunpack.c.l.b16 %v1361
      %v1442 = vunpack.c.l.b16 %v1364
      %v1443 = vunpack.c.l.b16 %v1368
      %v1444 = vunpack.c.l.b16 %v1371
      %v1445 = vunpack.c.l.b16 %v1375
      %v1446 = vunpack.c.l.b16 %v1378
      %v1447 = vunpack.c.l.b16 %v1382
      %v1448 = vunpack.c.l.b16 %v1385
      %v1449 = vunpack.c.l.b16 %v1389
      %v1450 = vunpack.c.l.b16 %v1392
      %v1451 = vunpack.c.l.b16 %v1396
      %v1452 = vunpack.c.l.b16 %v1399
      %v1453 = vunpack.c.l.b16 %v1403
      %v1454 = vunpack.c.l.b16 %v1406
      %v1455 = vpack.c.b16 %v1424, %v1423
      %v1456 = vpack.c.b16 %v1426, %v1425
      %v1457 = vpack.c.b16 %v1428, %v1427
      %v1458 = vpack.c.b16 %v1430, %v1429
      %v1459 = vpack.c.b16 %v1432, %v1431
      %v1460 = vpack.c.b16 %v1434, %v1433
      %v1461 = vpack.c.b16 %v1436, %v1435
      %v1462 = vpack.c.b16 %v1438, %v1437
      %v1463 = vpack.c.b16 %v1440, %v1439
      %v1464 = vpack.c.b16 %v1442, %v1441
      %v1465 = vpack.c.b16 %v1444, %v1443
      %v1466 = vpack.c.b16 %v1446, %v1445
      %v1467 = vpack.c.b16 %v1448, %v1447
      %v1468 = vpack.c.b16 %v1450, %v1449
      %v1469 = vpack.c.b16 %v1452, %v1451
      %v1470 = vpack.c.b16 %v1454, %v1453
      %v1503 = vunpack.c.l.b16 %v1407
      %v1504 = vunpack.c.l.b16 %v1408
      %v1505 = vunpack.c.l.b16 %v1409
      %v1506 = vunpack.c.l.b16 %v1410
      %v1507 = vunpack.c.l.b16 %v1411
      %v1508 = vunpack.c.l.b16 %v1412
      %v1509 = vunpack.c.l.b16 %v1413
      %v1510 = vunpack.c.l.b16 %v1414
      %v1511 = vunpack.c.l.b16 %v1415
      %v1512 = vunpack.c.l.b16 %v1416
      %v1513 = vunpack.c.l.b16 %v1417
      %v1514 = vunpack.c.l.b16 %v1418
      %v1515 = vunpack.c.l.b16 %v1419
      %v1516 = vunpack.c.l.b16 %v1420
      %v1517 = vunpack.c.l.b16 %v1421
      %v1518 = vunpack.c.l.b16 %v1422
      %v1519 = vpack.c.b16 %v1504, %v1503
      %v1520 = vpack.c.b16 %v1506, %v1505
      %v1521 = vpack.c.b16 %v1508, %v1507
      %v1522 = vpack.c.b16 %v1510, %v1509
      %v1523 = vpack.c.b16 %v1512, %v1511
      %v1524 = vpack.c.b16 %v1514, %v1513
      %v1525 = vpack.c.b16 %v1516, %v1515
      %v1526 = vpack.c.b16 %v1518, %v1517
      %1535 = vmatprep.subr.bf16.mxu0 0
      %1536 = vmatpush1.bf16.msra.mxu0 %v1519
      %1537 = vmatprep.subr.bf16.mxu0 0
      %1538 = vmatpush1.bf16.msra.mxu0 %v1520
      %1539 = vmatprep.subr.bf16.mxu0 0
      %1540 = vmatpush1.bf16.msra.mxu0 %v1521
      %1541 = vmatprep.subr.bf16.mxu0 0
      %1542 = vmatpush1.bf16.msra.mxu0 %v1522
      %1543 = vmatprep.subr.bf16.mxu0 0
      %1544 = vmatpush1.bf16.msra.mxu0 %v1523
      %1545 = vmatprep.subr.bf16.mxu0 0
      %1546 = vmatpush1.bf16.msra.mxu0 %v1524
      %1547 = vmatprep.subr.bf16.mxu0 0
      %1548 = vmatpush1.bf16.msra.mxu0 %v1525
      %1549 = vmatprep.subr.bf16.mxu0 0
      %1550 = vmatpush1.bf16.msra.mxu0 %v1526
      %1551 = vmatprep.subr.bf16.mxu0 0
      %1552 = vmatpush1.bf16.msra.mxu0 0
      %1553 = vmatprep.subr.bf16.mxu0 0
      %1554 = vmatpush1.bf16.msra.mxu0 0
      %1555 = vmatprep.subr.bf16.mxu0 0
      %1556 = vmatpush1.bf16.msra.mxu0 0
      %1557 = vmatprep.subr.bf16.mxu0 0
      %1558 = vmatpush1.bf16.msra.mxu0 0
      %1559 = vmatprep.subr.bf16.mxu0 0
      %1560 = vmatpush1.bf16.msra.mxu0 0
      %1561 = vmatprep.subr.bf16.mxu0 0
      %1562 = vmatpush1.bf16.msra.mxu0 0
      %1563 = vmatprep.subr.bf16.mxu0 0
      %1564 = vmatpush1.bf16.msra.mxu0 0
      %1565 = vmatprep.subr.bf16.mxu0 0
      %1566 = vmatpush1.bf16.msra.mxu0 0
      %1567 = vmatprep.mubr.bf16.mxu0 0
      %1568 = vmatmul.mubr.bf16.gmra.mrb[0].mxu0 %v1455
      %v1569 = vpop.f32.mrb[0].mxu0
      %v1570 = vadd.f32 0.0, %v1569
      %v1571 = vpop.f32.mrb[0].mxu0
      %v1572 = vpop.f32.mrb[0].mxu0
      %v1573 = vadd.f32 0.0, %v1572
      %v1574 = vpop.f32.mrb[0].mxu0
      %1575 = vmatprep.mubr.bf16.mxu0 0
      %1576 = vmatmul.mubr.bf16.gmra.mrb[0].mxu0 %v1456
      %v1577 = vpop.f32.mrb[0].mxu0
      %v1578 = vadd.f32 0.0, %v1577
      %v1579 = vpop.f32.mrb[0].mxu0
      %v1580 = vpop.f32.mrb[0].mxu0
      %v1581 = vadd.f32 0.0, %v1580
      %v1582 = vpop.f32.mrb[0].mxu0
      %1583 = vmatprep.mubr.bf16.mxu0 0
      %1584 = vmatmul.mubr.bf16.gmra.mrb[0].mxu0 %v1457
      %v1585 = vpop.f32.mrb[0].mxu0
      %v1586 = vadd.f32 0.0, %v1585
      %v1587 = vpop.f32.mrb[0].mxu0
      %v1588 = vpop.f32.mrb[0].mxu0
      %v1589 = vadd.f32 0.0, %v1588
      %v1590 = vpop.f32.mrb[0].mxu0
      %1591 = vmatprep.mubr.bf16.mxu0 0
      %1592 = vmatmul.mubr.bf16.gmra.mrb[0].mxu0 %v1458
      %v1593 = vpop.f32.mrb[0].mxu0
      %v1594 = vadd.f32 0.0, %v1593
      %v1595 = vpop.f32.mrb[0].mxu0
      %v1596 = vpop.f32.mrb[0].mxu0
      %v1597 = vadd.f32 0.0, %v1596
      %v1598 = vpop.f32.mrb[0].mxu0
      %1599 = vmatprep.mubr.bf16.mxu0 0
      %1600 = vmatmul.mubr.bf16.gmra.mrb[0].mxu0 %v1459
      %v1601 = vpop.f32.mrb[0].mxu0
      %v1602 = vadd.f32 0.0, %v1601
      %v1603 = vpop.f32.mrb[0].mxu0
      %v1604 = vpop.f32.mrb[0].mxu0
      %v1605 = vadd.f32 0.0, %v1604
      %v1606 = vpop.f32.mrb[0].mxu0
      %1607 = vmatprep.mubr.bf16.mxu0 0
      %1608 = vmatmul.mubr.bf16.gmra.mrb[0].mxu0 %v1460
      %v1609 = vpop.f32.mrb[0].mxu0
      %v1610 = vadd.f32 0.0, %v1609
      %v1611 = vpop.f32.mrb[0].mxu0
      %v1612 = vpop.f32.mrb[0].mxu0
      %v1613 = vadd.f32 0.0, %v1612
      %v1614 = vpop.f32.mrb[0].mxu0
      %1615 = vmatprep.mubr.bf16.mxu0 0
      %1616 = vmatmul.mubr.bf16.gmra.mrb[0].mxu0 %v1461
      %v1617 = vpop.f32.mrb[0].mxu0
      %v1618 = vadd.f32 0.0, %v1617
      %v1619 = vpop.f32.mrb[0].mxu0
      %v1620 = vpop.f32.mrb[0].mxu0
      %v1621 = vadd.f32 0.0, %v1620
      %v1622 = vpop.f32.mrb[0].mxu0
      %1623 = vmatprep.mubr.bf16.mxu0 0
      %1624 = vmatmul.mubr.bf16.gmra.mrb[0].mxu0 %v1462
      %v1625 = vpop.f32.mrb[0].mxu0
      %v1626 = vadd.f32 0.0, %v1625
      %v1627 = vpop.f32.mrb[0].mxu0
      %v1628 = vpop.f32.mrb[0].mxu0
      %v1629 = vadd.f32 0.0, %v1628
      %v1630 = vpop.f32.mrb[0].mxu0
      %1631 = vmatprep.mubr.bf16.mxu0 0
      %1632 = vmatmul.mubr.bf16.gmra.mrb[0].mxu0 %v1463
      %v1633 = vpop.f32.mrb[0].mxu0
      %v1634 = vadd.f32 0.0, %v1633
      %v1635 = vpop.f32.mrb[0].mxu0
      %v1636 = vpop.f32.mrb[0].mxu0
      %v1637 = vadd.f32 0.0, %v1636
      %v1638 = vpop.f32.mrb[0].mxu0
      %1639 = vmatprep.mubr.bf16.mxu0 0
      %1640 = vmatmul.mubr.bf16.gmra.mrb[0].mxu0 %v1464
      %v1641 = vpop.f32.mrb[0].mxu0
      %v1642 = vadd.f32 0.0, %v1641
      %v1643 = vpop.f32.mrb[0].mxu0
      %v1644 = vpop.f32.mrb[0].mxu0
      %v1645 = vadd.f32 0.0, %v1644
      %v1646 = vpop.f32.mrb[0].mxu0
      %1647 = vmatprep.mubr.bf16.mxu0 0
      %1648 = vmatmul.mubr.bf16.gmra.mrb[0].mxu0 %v1465
      %v1649 = vpop.f32.mrb[0].mxu0
      %v1650 = vadd.f32 0.0, %v1649
      %v1651 = vpop.f32.mrb[0].mxu0
      %v1652 = vpop.f32.mrb[0].mxu0
      %v1653 = vadd.f32 0.0, %v1652
      %v1654 = vpop.f32.mrb[0].mxu0
      %1655 = vmatprep.mubr.bf16.mxu0 0
      %1656 = vmatmul.mubr.bf16.gmra.mrb[0].mxu0 %v1466
      %v1657 = vpop.f32.mrb[0].mxu0
      %v1658 = vadd.f32 0.0, %v1657
      %v1659 = vpop.f32.mrb[0].mxu0
      %v1660 = vpop.f32.mrb[0].mxu0
      %v1661 = vadd.f32 0.0, %v1660
      %v1662 = vpop.f32.mrb[0].mxu0
      %1663 = vmatprep.mubr.bf16.mxu0 0
      %1664 = vmatmul.mubr.bf16.gmra.mrb[0].mxu0 %v1467
      %v1665 = vpop.f32.mrb[0].mxu0
      %v1666 = vadd.f32 0.0, %v1665
      %v1667 = vpop.f32.mrb[0].mxu0
      %v1668 = vpop.f32.mrb[0].mxu0
      %v1669 = vadd.f32 0.0, %v1668
      %v1670 = vpop.f32.mrb[0].mxu0
      %1671 = vmatprep.mubr.bf16.mxu0 0
      %1672 = vmatmul.mubr.bf16.gmra.mrb[0].mxu0 %v1468
      %v1673 = vpop.f32.mrb[0].mxu0
      %v1674 = vadd.f32 0.0, %v1673
      %v1675 = vpop.f32.mrb[0].mxu0
      %v1676 = vpop.f32.mrb[0].mxu0
      %v1677 = vadd.f32 0.0, %v1676
      %v1678 = vpop.f32.mrb[0].mxu0
      %1679 = vmatprep.mubr.bf16.mxu0 0
      %1680 = vmatmul.mubr.bf16.gmra.mrb[0].mxu0 %v1469
      %v1681 = vpop.f32.mrb[0].mxu0
      %v1682 = vadd.f32 0.0, %v1681
      %v1683 = vpop.f32.mrb[0].mxu0
      %v1684 = vpop.f32.mrb[0].mxu0
      %v1685 = vadd.f32 0.0, %v1684
      %v1686 = vpop.f32.mrb[0].mxu0
      %1687 = vmatprep.mubr.bf16.mxu0 0
      %1688 = vmatmul.mubr.bf16.gmra.mrb[0].mxu0 %v1470
      %v1689 = vpop.f32.mrb[0].mxu0
      %v1690 = vadd.f32 0.0, %v1689
      %v1691 = vpop.f32.mrb[0].mxu0
      %v1692 = vpop.f32.mrb[0].mxu0
      %v1693 = vadd.f32 0.0, %v1692
      %v1694 = vpop.f32.mrb[0].mxu0
      %1695 = vdwg.mxu0
      %v1696 = vadd.f32 %v1118, %v1570
      %v1697 = vadd.f32 %v1121, %v1573
      %v1698 = vadd.f32 %v1126, %v1578
      %v1699 = vadd.f32 %v1129, %v1581
      %v1700 = vadd.f32 %v1134, %v1586
      %v1701 = vadd.f32 %v1137, %v1589
      %v1702 = vadd.f32 %v1142, %v1594
      %v1703 = vadd.f32 %v1145, %v1597
      %v1704 = vadd.f32 %v1150, %v1602
      %v1705 = vadd.f32 %v1153, %v1605
      %v1706 = vadd.f32 %v1158, %v1610
      %v1707 = vadd.f32 %v1161, %v1613
      %v1708 = vadd.f32 %v1166, %v1618
      %v1709 = vadd.f32 %v1169, %v1621
      %v1710 = vadd.f32 %v1174, %v1626
      %v1711 = vadd.f32 %v1177, %v1629
      %v1712 = vadd.f32 %v1182, %v1634
      %v1713 = vadd.f32 %v1185, %v1637
      %v1714 = vadd.f32 %v1190, %v1642
      %v1715 = vadd.f32 %v1193, %v1645
      %v1716 = vadd.f32 %v1198, %v1650
      %v1717 = vadd.f32 %v1201, %v1653
      %v1718 = vadd.f32 %v1206, %v1658
      %v1719 = vadd.f32 %v1209, %v1661
      %v1720 = vadd.f32 %v1214, %v1666
      %v1721 = vadd.f32 %v1217, %v1669
      %v1722 = vadd.f32 %v1222, %v1674
      %v1723 = vadd.f32 %v1225, %v1677
      %v1724 = vadd.f32 %v1230, %v1682
      %v1725 = vadd.f32 %v1233, %v1685
      %v1726 = vadd.f32 %v1238, %v1690
      %v1727 = vadd.f32 %v1241, %v1693
      %s1728 = sadd.s32 %s195, 1
      %s1729 = smul.u32 %s1728, 3
      %s1730 = smul.addr %s1729, 4
      %s1731 = scalar_lea.vmem %s178, %s1730
      %v1732 = vld [vmem:[%s1731] sm:$0xf]
      %v1733 = vld [vmem:[%s1731 + $0x4] sm:$0xf]
      %v1734 = vld [vmem:[%s1731 + $0xc] sm:$0xf]
      %v1735 = vld [vmem:[%s1731 + $0x10] sm:$0xf]
      %v1736 = vld [vmem:[%s1731 + $0x18] sm:$0xf]
      %v1737 = vld [vmem:[%s1731 + $0x1c] sm:$0xf]
      %v1738 = vld [vmem:[%s1731 + $0x24] sm:$0xf]
      %v1739 = vld [vmem:[%s1731 + $0x28] sm:$0xf]
      %v1740 = vld [vmem:[%s1731 + $0x30] sm:$0xf]
      %v1741 = vld [vmem:[%s1731 + $0x34] sm:$0xf]
      %v1742 = vld [vmem:[%s1731 + $0x3c] sm:$0xf]
      %v1743 = vld [vmem:[%s1731 + $0x40] sm:$0xf]
      %v1744 = vld [vmem:[%s1731 + $0x48] sm:$0xf]
      %v1745 = vld [vmem:[%s1731 + $0x4c] sm:$0xf]
      %v1746 = vld [vmem:[%s1731 + $0x54] sm:$0xf]
      %v1747 = vld [vmem:[%s1731 + $0x58] sm:$0xf]
      %v1748 = vld [vmem:[%s1731 + $0x60] sm:$0xf]
      %v1749 = vld [vmem:[%s1731 + $0x64] sm:$0xf]
      %v1750 = vld [vmem:[%s1731 + $0x6c] sm:$0xf]
      %v1751 = vld [vmem:[%s1731 + $0x70] sm:$0xf]
      %v1752 = vld [vmem:[%s1731 + $0x78] sm:$0xf]
      %v1753 = vld [vmem:[%s1731 + $0x7c] sm:$0xf]
      %v1754 = vld [vmem:[%s1731 + $0x84] sm:$0xf]
      %v1755 = vld [vmem:[%s1731 + $0x88] sm:$0xf]
      %v1756 = vld [vmem:[%s1731 + $0x90] sm:$0xf]
      %v1757 = vld [vmem:[%s1731 + $0x94] sm:$0xf]
      %v1758 = vld [vmem:[%s1731 + $0x9c] sm:$0xf]
      %v1759 = vld [vmem:[%s1731 + $0xa0] sm:$0xf]
      %v1760 = vld [vmem:[%s1731 + $0xa8] sm:$0xf]
      %v1761 = vld [vmem:[%s1731 + $0xac] sm:$0xf]
      %v1762 = vld [vmem:[%s1731 + $0xb4] sm:$0xf]
      %v1763 = vld [vmem:[%s1731 + $0xb8] sm:$0xf]
      %v1764 = vld [vmem:[%s1 + $0xc0] sm:$0xf]
      %v1765 = vld [vmem:[%s1 + $0xc4] sm:$0xf]
      %v1766 = vld [vmem:[%s1 + $0xc8] sm:$0xf]
      %v1767 = vld [vmem:[%s1 + $0xcc] sm:$0xf]
      %v1768 = vld [vmem:[%s1 + $0xd0] sm:$0xf]
      %v1769 = vld [vmem:[%s1 + $0xd4] sm:$0xf]
      %v1770 = vld [vmem:[%s1 + $0xd8] sm:$0xf]
      %v1771 = vld [vmem:[%s1 + $0xdc] sm:$0xf]
      %v1772 = vld [vmem:[%s1 + $0xe0] sm:$0xf]
      %v1773 = vld [vmem:[%s1 + $0xe4] sm:$0xf]
      %v1774 = vld [vmem:[%s1 + $0xe8] sm:$0xf]
      %v1775 = vld [vmem:[%s1 + $0xec] sm:$0xf]
      %v1776 = vld [vmem:[%s1 + $0xf0] sm:$0xf]
      %v1777 = vld [vmem:[%s1 + $0xf4] sm:$0xf]
      %v1778 = vld [vmem:[%s1 + $0xf8] sm:$0xf]
      %v1779 = vld [vmem:[%s1 + $0xfc] sm:$0xf]
      %v1812 = vunpack.c.l.b16 %v1732
      %v1813 = vunpack.c.l.b16 %v1733
      %v1814 = vunpack.c.l.b16 %v1734
      %v1815 = vunpack.c.l.b16 %v1735
      %v1816 = vunpack.c.l.b16 %v1736
      %v1817 = vunpack.c.l.b16 %v1737
      %v1818 = vunpack.c.l.b16 %v1738
      %v1819 = vunpack.c.l.b16 %v1739
      %v1820 = vunpack.c.l.b16 %v1740
      %v1821 = vunpack.c.l.b16 %v1741
      %v1822 = vunpack.c.l.b16 %v1742
      %v1823 = vunpack.c.l.b16 %v1743
      %v1824 = vunpack.c.l.b16 %v1744
      %v1825 = vunpack.c.l.b16 %v1745
      %v1826 = vunpack.c.l.b16 %v1746
      %v1827 = vunpack.c.l.b16 %v1747
      %v1828 = vunpack.c.l.b16 %v1748
      %v1829 = vunpack.c.l.b16 %v1749
      %v1830 = vunpack.c.l.b16 %v1750
      %v1831 = vunpack.c.l.b16 %v1751
      %v1832 = vunpack.c.l.b16 %v1752
      %v1833 = vunpack.c.l.b16 %v1753
      %v1834 = vunpack.c.l.b16 %v1754
      %v1835 = vunpack.c.l.b16 %v1755
      %v1836 = vunpack.c.l.b16 %v1756
      %v1837 = vunpack.c.l.b16 %v1757
      %v1838 = vunpack.c.l.b16 %v1758
      %v1839 = vunpack.c.l.b16 %v1759
      %v1840 = vunpack.c.l.b16 %v1760
      %v1841 = vunpack.c.l.b16 %v1761
      %v1842 = vunpack.c.l.b16 %v1762
      %v1843 = vunpack.c.l.b16 %v1763
      %v1844 = vpack.c.b16 %v1813, %v1812
      %v1845 = vpack.c.b16 %v1815, %v1814
      %v1846 = vpack.c.b16 %v1817, %v1816
      %v1847 = vpack.c.b16 %v1819, %v1818
      %v1848 = vpack.c.b16 %v1821, %v1820
      %v1849 = vpack.c.b16 %v1823, %v1822
      %v1850 = vpack.c.b16 %v1825, %v1824
      %v1851 = vpack.c.b16 %v1827, %v1826
      %v1852 = vpack.c.b16 %v1829, %v1828
      %v1853 = vpack.c.b16 %v1831, %v1830
      %v1854 = vpack.c.b16 %v1833, %v1832
      %v1855 = vpack.c.b16 %v1835, %v1834
      %v1856 = vpack.c.b16 %v1837, %v1836
      %v1857 = vpack.c.b16 %v1839, %v1838
      %v1858 = vpack.c.b16 %v1841, %v1840
      %v1859 = vpack.c.b16 %v1843, %v1842
      %v1892 = vunpack.c.l.b16 %v1764
      %v1893 = vunpack.c.l.b16 %v1765
      %v1894 = vunpack.c.l.b16 %v1766
      %v1895 = vunpack.c.l.b16 %v1767
      %v1896 = vunpack.c.l.b16 %v1768
      %v1897 = vunpack.c.l.b16 %v1769
      %v1898 = vunpack.c.l.b16 %v1770
      %v1899 = vunpack.c.l.b16 %v1771
      %v1900 = vunpack.c.l.b16 %v1772
      %v1901 = vunpack.c.l.b16 %v1773
      %v1902 = vunpack.c.l.b16 %v1774
      %v1903 = vunpack.c.l.b16 %v1775
      %v1904 = vunpack.c.l.b16 %v1776
      %v1905 = vunpack.c.l.b16 %v1777
      %v1906 = vunpack.c.l.b16 %v1778
      %v1907 = vunpack.c.l.b16 %v1779
      %v1908 = vpack.c.b16 %v1893, %v1892
      %v1909 = vpack.c.b16 %v1895, %v1894
      %v1910 = vpack.c.b16 %v1897, %v1896
      %v1911 = vpack.c.b16 %v1899, %v1898
      %v1912 = vpack.c.b16 %v1901, %v1900
      %v1913 = vpack.c.b16 %v1903, %v1902
      %v1914 = vpack.c.b16 %v1905, %v1904
      %v1915 = vpack.c.b16 %v1907, %v1906
      %1924 = vmatprep.subr.bf16.mxu0 0
      %1925 = vmatpush1.bf16.msra.mxu0 %v1908
      %1926 = vmatprep.subr.bf16.mxu0 0
      %1927 = vmatpush1.bf16.msra.mxu0 %v1909
      %1928 = vmatprep.subr.bf16.mxu0 0
      %1929 = vmatpush1.bf16.msra.mxu0 %v1910
      %1930 = vmatprep.subr.bf16.mxu0 0
      %1931 = vmatpush1.bf16.msra.mxu0 %v1911
      %1932 = vmatprep.subr.bf16.mxu0 0
      %1933 = vmatpush1.bf16.msra.mxu0 %v1912
      %1934 = vmatprep.subr.bf16.mxu0 0
      %1935 = vmatpush1.bf16.msra.mxu0 %v1913
      %1936 = vmatprep.subr.bf16.mxu0 0
      %1937 = vmatpush1.bf16.msra.mxu0 %v1914
      %1938 = vmatprep.subr.bf16.mxu0 0
      %1939 = vmatpush1.bf16.msra.mxu0 %v1915
      %1940 = vmatprep.subr.bf16.mxu0 0
      %1941 = vmatpush1.bf16.msra.mxu0 0
      %1942 = vmatprep.subr.bf16.mxu0 0
      %1943 = vmatpush1.bf16.msra.mxu0 0
      %1944 = vmatprep.subr.bf16.mxu0 0
      %1945 = vmatpush1.bf16.msra.mxu0 0
      %1946 = vmatprep.subr.bf16.mxu0 0
      %1947 = vmatpush1.bf16.msra.mxu0 0
      %1948 = vmatprep.subr.bf16.mxu0 0
      %1949 = vmatpush1.bf16.msra.mxu0 0
      %1950 = vmatprep.subr.bf16.mxu0 0
      %1951 = vmatpush1.bf16.msra.mxu0 0
      %1952 = vmatprep.subr.bf16.mxu0 0
      %1953 = vmatpush1.bf16.msra.mxu0 0
      %1954 = vmatprep.subr.bf16.mxu0 0
      %1955 = vmatpush1.bf16.msra.mxu0 0
      %1956 = vmatprep.mubr.bf16.mxu0 0
      %1957 = vmatmul.mubr.bf16.gmra.mrb[0].mxu0 %v1844
      %v1958 = vpop.f32.mrb[0].mxu0
      %v1959 = vadd.f32 0.0, %v1958
      %v1960 = vpop.f32.mrb[0].mxu0
      %v1961 = vpop.f32.mrb[0].mxu0
      %v1962 = vadd.f32 0.0, %v1961
      %v1963 = vpop.f32.mrb[0].mxu0
      %1964 = vmatprep.mubr.bf16.mxu0 0
      %1965 = vmatmul.mubr.bf16.gmra.mrb[0].mxu0 %v1845
      %v1966 = vpop.f32.mrb[0].mxu0
      %v1967 = vadd.f32 0.0, %v1966
      %v1968 = vpop.f32.mrb[0].mxu0
      %v1969 = vpop.f32.mrb[0].mxu0
      %v1970 = vadd.f32 0.0, %v1969
      %v1971 = vpop.f32.mrb[0].mxu0
      %1972 = vmatprep.mubr.bf16.mxu0 0
      %1973 = vmatmul.mubr.bf16.gmra.mrb[0].mxu0 %v1846
      %v1974 = vpop.f32.mrb[0].mxu0
      %v1975 = vadd.f32 0.0, %v1974
      %v1976 = vpop.f32.mrb[0].mxu0
      %v1977 = vpop.f32.mrb[0].mxu0
      %v1978 = vadd.f32 0.0, %v1977
      %v1979 = vpop.f32.mrb[0].mxu0
      %1980 = vmatprep.mubr.bf16.mxu0 0
      %1981 = vmatmul.mubr.bf16.gmra.mrb[0].mxu0 %v1847
      %v1982 = vpop.f32.mrb[0].mxu0
      %v1983 = vadd.f32 0.0, %v1982
      %v1984 = vpop.f32.mrb[0].mxu0
      %v1985 = vpop.f32.mrb[0].mxu0
      %v1986 = vadd.f32 0.0, %v1985
      %v1987 = vpop.f32.mrb[0].mxu0
      %1988 = vmatprep.mubr.bf16.mxu0 0
      %1989 = vmatmul.mubr.bf16.gmra.mrb[0].mxu0 %v1848
      %v1990 = vpop.f32.mrb[0].mxu0
      %v1991 = vadd.f32 0.0, %v1990
      %v1992 = vpop.f32.mrb[0].mxu0
      %v1993 = vpop.f32.mrb[0].mxu0
      %v1994 = vadd.f32 0.0, %v1993
      %v1995 = vpop.f32.mrb[0].mxu0
      %1996 = vmatprep.mubr.bf16.mxu0 0
      %1997 = vmatmul.mubr.bf16.gmra.mrb[0].mxu0 %v1849
      %v1998 = vpop.f32.mrb[0].mxu0
      %v1999 = vadd.f32 0.0, %v1998
      %v2000 = vpop.f32.mrb[0].mxu0
      %v2001 = vpop.f32.mrb[0].mxu0
      %v2002 = vadd.f32 0.0, %v2001
      %v2003 = vpop.f32.mrb[0].mxu0
      %2004 = vmatprep.mubr.bf16.mxu0 0
      %2005 = vmatmul.mubr.bf16.gmra.mrb[0].mxu0 %v1850
      %v2006 = vpop.f32.mrb[0].mxu0
      %v2007 = vadd.f32 0.0, %v2006
      %v2008 = vpop.f32.mrb[0].mxu0
      %v2009 = vpop.f32.mrb[0].mxu0
      %v2010 = vadd.f32 0.0, %v2009
      %v2011 = vpop.f32.mrb[0].mxu0
      %2012 = vmatprep.mubr.bf16.mxu0 0
      %2013 = vmatmul.mubr.bf16.gmra.mrb[0].mxu0 %v1851
      %v2014 = vpop.f32.mrb[0].mxu0
      %v2015 = vadd.f32 0.0, %v2014
      %v2016 = vpop.f32.mrb[0].mxu0
      %v2017 = vpop.f32.mrb[0].mxu0
      %v2018 = vadd.f32 0.0, %v2017
      %v2019 = vpop.f32.mrb[0].mxu0
      %2020 = vmatprep.mubr.bf16.mxu0 0
      %2021 = vmatmul.mubr.bf16.gmra.mrb[0].mxu0 %v1852
      %v2022 = vpop.f32.mrb[0].mxu0
      %v2023 = vadd.f32 0.0, %v2022
      %v2024 = vpop.f32.mrb[0].mxu0
      %v2025 = vpop.f32.mrb[0].mxu0
      %v2026 = vadd.f32 0.0, %v2025
      %v2027 = vpop.f32.mrb[0].mxu0
      %2028 = vmatprep.mubr.bf16.mxu0 0
      %2029 = vmatmul.mubr.bf16.gmra.mrb[0].mxu0 %v1853
      %v2030 = vpop.f32.mrb[0].mxu0
      %v2031 = vadd.f32 0.0, %v2030
      %v2032 = vpop.f32.mrb[0].mxu0
      %v2033 = vpop.f32.mrb[0].mxu0
      %v2034 = vadd.f32 0.0, %v2033
      %v2035 = vpop.f32.mrb[0].mxu0
      %2036 = vmatprep.mubr.bf16.mxu0 0
      %2037 = vmatmul.mubr.bf16.gmra.mrb[0].mxu0 %v1854
      %v2038 = vpop.f32.mrb[0].mxu0
      %v2039 = vadd.f32 0.0, %v2038
      %v2040 = vpop.f32.mrb[0].mxu0
      %v2041 = vpop.f32.mrb[0].mxu0
      %v2042 = vadd.f32 0.0, %v2041
      %v2043 = vpop.f32.mrb[0].mxu0
      %2044 = vmatprep.mubr.bf16.mxu0 0
      %2045 = vmatmul.mubr.bf16.gmra.mrb[0].mxu0 %v1855
      %v2046 = vpop.f32.mrb[0].mxu0
      %v2047 = vadd.f32 0.0, %v2046
      %v2048 = vpop.f32.mrb[0].mxu0
      %v2049 = vpop.f32.mrb[0].mxu0
      %v2050 = vadd.f32 0.0, %v2049
      %v2051 = vpop.f32.mrb[0].mxu0
      %2052 = vmatprep.mubr.bf16.mxu0 0
      %2053 = vmatmul.mubr.bf16.gmra.mrb[0].mxu0 %v1856
      %v2054 = vpop.f32.mrb[0].mxu0
      %v2055 = vadd.f32 0.0, %v2054
      %v2056 = vpop.f32.mrb[0].mxu0
      %v2057 = vpop.f32.mrb[0].mxu0
      %v2058 = vadd.f32 0.0, %v2057
      %v2059 = vpop.f32.mrb[0].mxu0
      %2060 = vmatprep.mubr.bf16.mxu0 0
      %2061 = vmatmul.mubr.bf16.gmra.mrb[0].mxu0 %v1857
      %v2062 = vpop.f32.mrb[0].mxu0
      %v2063 = vadd.f32 0.0, %v2062
      %v2064 = vpop.f32.mrb[0].mxu0
      %v2065 = vpop.f32.mrb[0].mxu0
      %v2066 = vadd.f32 0.0, %v2065
      %v2067 = vpop.f32.mrb[0].mxu0
      %2068 = vmatprep.mubr.bf16.mxu0 0
      %2069 = vmatmul.mubr.bf16.gmra.mrb[0].mxu0 %v1858
      %v2070 = vpop.f32.mrb[0].mxu0
      %v2071 = vadd.f32 0.0, %v2070
      %v2072 = vpop.f32.mrb[0].mxu0
      %v2073 = vpop.f32.mrb[0].mxu0
      %v2074 = vadd.f32 0.0, %v2073
      %v2075 = vpop.f32.mrb[0].mxu0
      %2076 = vmatprep.mubr.bf16.mxu0 0
      %2077 = vmatmul.mubr.bf16.gmra.mrb[0].mxu0 %v1859
      %v2078 = vpop.f32.mrb[0].mxu0
      %v2079 = vadd.f32 0.0, %v2078
      %v2080 = vpop.f32.mrb[0].mxu0
      %v2081 = vpop.f32.mrb[0].mxu0
      %v2082 = vadd.f32 0.0, %v2081
      %v2083 = vpop.f32.mrb[0].mxu0
      %2084 = vdwg.mxu0
      %v2085 = vadd.f32 %v1696, %v1959
      %v2086 = vadd.f32 %v1697, %v1962
      %v2087 = vadd.f32 %v1698, %v1967
      %v2088 = vadd.f32 %v1699, %v1970
      %v2089 = vadd.f32 %v1700, %v1975
      %v2090 = vadd.f32 %v1701, %v1978
      %v2091 = vadd.f32 %v1702, %v1983
      %v2092 = vadd.f32 %v1703, %v1986
      %v2093 = vadd.f32 %v1704, %v1991
      %v2094 = vadd.f32 %v1705, %v1994
      %v2095 = vadd.f32 %v1706, %v1999
      %v2096 = vadd.f32 %v1707, %v2002
      %v2097 = vadd.f32 %v1708, %v2007
      %v2098 = vadd.f32 %v1709, %v2010
      %v2099 = vadd.f32 %v1710, %v2015
      %v2100 = vadd.f32 %v1711, %v2018
      %v2101 = vadd.f32 %v1712, %v2023
      %v2102 = vadd.f32 %v1713, %v2026
      %v2103 = vadd.f32 %v1714, %v2031
      %v2104 = vadd.f32 %v1715, %v2034
      %v2105 = vadd.f32 %v1716, %v2039
      %v2106 = vadd.f32 %v1717, %v2042
      %v2107 = vadd.f32 %v1718, %v2047
      %v2108 = vadd.f32 %v1719, %v2050
      %v2109 = vadd.f32 %v1720, %v2055
      %v2110 = vadd.f32 %v1721, %v2058
      %v2111 = vadd.f32 %v1722, %v2063
      %v2112 = vadd.f32 %v1723, %v2066
      %v2113 = vadd.f32 %v1724, %v2071
      %v2114 = vadd.f32 %v1725, %v2074
      %v2115 = vadd.f32 %v1726, %v2079
      %v2116 = vadd.f32 %v1727, %v2082
      %v2117 = vld [vmem:[%s1731] sm:$0xf]
      %v2118 = vld [vmem:[%s1731 + $0x4] sm:$0xf]
      %v2119 = vld [vmem:[%s1731 + $0x8] sm:$0x1]
      %v2120 = vld [vmem:[%s1731 + $0xc] sm:$0xf]
      %v2121 = vld [vmem:[%s1731 + $0x10] sm:$0xf]
      %v2122 = vld [vmem:[%s1731 + $0x14] sm:$0x1]
      %v2123 = vld [vmem:[%s1731 + $0x18] sm:$0xf]
      %v2124 = vld [vmem:[%s1731 + $0x1c] sm:$0xf]
      %v2125 = vld [vmem:[%s1731 + $0x20] sm:$0x1]
      %v2126 = vld [vmem:[%s1731 + $0x24] sm:$0xf]
      %v2127 = vld [vmem:[%s1731 + $0x28] sm:$0xf]
      %v2128 = vld [vmem:[%s1731 + $0x2c] sm:$0x1]
      %v2129 = vld [vmem:[%s1731 + $0x30] sm:$0xf]
      %v2130 = vld [vmem:[%s1731 + $0x34] sm:$0xf]
      %v2131 = vld [vmem:[%s1731 + $0x38] sm:$0x1]
      %v2132 = vld [vmem:[%s1731 + $0x3c] sm:$0xf]
      %v2133 = vld [vmem:[%s1731 + $0x40] sm:$0xf]
      %v2134 = vld [vmem:[%s1731 + $0x44] sm:$0x1]
      %v2135 = vld [vmem:[%s1731 + $0x48] sm:$0xf]
      %v2136 = vld [vmem:[%s1731 + $0x4c] sm:$0xf]
      %v2137 = vld [vmem:[%s1731 + $0x50] sm:$0x1]
      %v2138 = vld [vmem:[%s1731 + $0x54] sm:$0xf]
      %v2139 = vld [vmem:[%s1731 + $0x58] sm:$0xf]
      %v2140 = vld [vmem:[%s1731 + $0x5c] sm:$0x1]
      %v2141 = vld [vmem:[%s1731 + $0x60] sm:$0xf]
      %v2142 = vld [vmem:[%s1731 + $0x64] sm:$0xf]
      %v2143 = vld [vmem:[%s1731 + $0x68] sm:$0x1]
      %v2144 = vld [vmem:[%s1731 + $0x6c] sm:$0xf]
      %v2145 = vld [vmem:[%s1731 + $0x70] sm:$0xf]
      %v2146 = vld [vmem:[%s1731 + $0x74] sm:$0x1]
      %v2147 = vld [vmem:[%s1731 + $0x78] sm:$0xf]
      %v2148 = vld [vmem:[%s1731 + $0x7c] sm:$0xf]
      %v2149 = vld [vmem:[%s1731 + $0x80] sm:$0x1]
      %v2150 = vld [vmem:[%s1731 + $0x84] sm:$0xf]
      %v2151 = vld [vmem:[%s1731 + $0x88] sm:$0xf]
      %v2152 = vld [vmem:[%s1731 + $0x8c] sm:$0x1]
      %v2153 = vld [vmem:[%s1731 + $0x90] sm:$0xf]
      %v2154 = vld [vmem:[%s1731 + $0x94] sm:$0xf]
      %v2155 = vld [vmem:[%s1731 + $0x98] sm:$0x1]
      %v2156 = vld [vmem:[%s1731 + $0x9c] sm:$0xf]
      %v2157 = vld [vmem:[%s1731 + $0xa0] sm:$0xf]
      %v2158 = vld [vmem:[%s1731 + $0xa4] sm:$0x1]
      %v2159 = vld [vmem:[%s1731 + $0xa8] sm:$0xf]
      %v2160 = vld [vmem:[%s1731 + $0xac] sm:$0xf]
      %v2161 = vld [vmem:[%s1731 + $0xb0] sm:$0x1]
      %v2162 = vld [vmem:[%s1731 + $0xb4] sm:$0xf]
      %v2163 = vld [vmem:[%s1731 + $0xb8] sm:$0xf]
      %v2164 = vld [vmem:[%s1731 + $0xbc] sm:$0x1]
      %v2166 = vshrl.u32 %v2117, 16
      %v2168 = vrot.slane %v2166, 4
      %v2169 = vshll.u32 %v2117, 16
      %v2171 = vrot.slane %v2169, 5
      %v2172 = vor.u32 %v2168, %v2171
      %v2173 = vrot.slane %v2172, 4
      %v2175 = vshll.u32 %v2118, 16
      %v2177 = vrot.slane %v2175, 5
      %v2178 = vsel %vm265, %v2173, %v2177
      %v2179 = vshrl.u32 %v2118, 16
      %v2181 = vrot.slane %v2179, 4
      %v2182 = vor.u32 %v2181, %v2177
      %v2183 = vrot.slane %v2182, 4
      %v2185 = vshll.u32 %v2119, 16
      %v2187 = vrot.slane %v2185, 5
      %v2188 = vsel %vm265, %v2183, %v2187
      %v2190 = vshrl.u32 %v2120, 16
      %v2192 = vrot.slane %v2190, 4
      %v2193 = vshll.u32 %v2120, 16
      %v2195 = vrot.slane %v2193, 5
      %v2196 = vor.u32 %v2192, %v2195
      %v2197 = vrot.slane %v2196, 4
      %v2199 = vshll.u32 %v2121, 16
      %v2201 = vrot.slane %v2199, 5
      %v2202 = vsel %vm265, %v2197, %v2201
      %v2203 = vshrl.u32 %v2121, 16
      %v2205 = vrot.slane %v2203, 4
      %v2206 = vor.u32 %v2205, %v2201
      %v2207 = vrot.slane %v2206, 4
      %v2209 = vshll.u32 %v2122, 16
      %v2211 = vrot.slane %v2209, 5
      %v2212 = vsel %vm265, %v2207, %v2211
      %v2214 = vshrl.u32 %v2123, 16
      %v2216 = vrot.slane %v2214, 4
      %v2217 = vshll.u32 %v2123, 16
      %v2219 = vrot.slane %v2217, 5
      %v2220 = vor.u32 %v2216, %v2219
      %v2221 = vrot.slane %v2220, 4
      %v2223 = vshll.u32 %v2124, 16
      %v2225 = vrot.slane %v2223, 5
      %v2226 = vsel %vm265, %v2221, %v2225
      %v2227 = vshrl.u32 %v2124, 16
      %v2229 = vrot.slane %v2227, 4
      %v2230 = vor.u32 %v2229, %v2225
      %v2231 = vrot.slane %v2230, 4
      %v2233 = vshll.u32 %v2125, 16
      %v2235 = vrot.slane %v2233, 5
      %v2236 = vsel %vm265, %v2231, %v2235
      %v2238 = vshrl.u32 %v2126, 16
      %v2240 = vrot.slane %v2238, 4
      %v2241 = vshll.u32 %v2126, 16
      %v2243 = vrot.slane %v2241, 5
      %v2244 = vor.u32 %v2240, %v2243
      %v2245 = vrot.slane %v2244, 4
      %v2247 = vshll.u32 %v2127, 16
      %v2249 = vrot.slane %v2247, 5
      %v2250 = vsel %vm265, %v2245, %v2249
      %v2251 = vshrl.u32 %v2127, 16
      %v2253 = vrot.slane %v2251, 4
      %v2254 = vor.u32 %v2253, %v2249
      %v2255 = vrot.slane %v2254, 4
      %v2257 = vshll.u32 %v2128, 16
      %v2259 = vrot.slane %v2257, 5
      %v2260 = vsel %vm265, %v2255, %v2259
      %v2262 = vshrl.u32 %v2129, 16
      %v2264 = vrot.slane %v2262, 4
      %v2265 = vshll.u32 %v2129, 16
      %v2267 = vrot.slane %v2265, 5
      %v2268 = vor.u32 %v2264, %v2267
      %v2269 = vrot.slane %v2268, 4
      %v2271 = vshll.u32 %v2130, 16
      %v2273 = vrot.slane %v2271, 5
      %v2274 = vsel %vm265, %v2269, %v2273
      %v2275 = vshrl.u32 %v2130, 16
      %v2277 = vrot.slane %v2275, 4
      %v2278 = vor.u32 %v2277, %v2273
      %v2279 = vrot.slane %v2278, 4
      %v2281 = vshll.u32 %v2131, 16
      %v2283 = vrot.slane %v2281, 5
      %v2284 = vsel %vm265, %v2279, %v2283
      %v2286 = vshrl.u32 %v2132, 16
      %v2288 = vrot.slane %v2286, 4
      %v2289 = vshll.u32 %v2132, 16
      %v2291 = vrot.slane %v2289, 5
      %v2292 = vor.u32 %v2288, %v2291
      %v2293 = vrot.slane %v2292, 4
      %v2295 = vshll.u32 %v2133, 16
      %v2297 = vrot.slane %v2295, 5
      %v2298 = vsel %vm265, %v2293, %v2297
      %v2299 = vshrl.u32 %v2133, 16
      %v2301 = vrot.slane %v2299, 4
      %v2302 = vor.u32 %v2301, %v2297
      %v2303 = vrot.slane %v2302, 4
      %v2305 = vshll.u32 %v2134, 16
      %v2307 = vrot.slane %v2305, 5
      %v2308 = vsel %vm265, %v2303, %v2307
      %v2310 = vshrl.u32 %v2135, 16
      %v2312 = vrot.slane %v2310, 4
      %v2313 = vshll.u32 %v2135, 16
      %v2315 = vrot.slane %v2313, 5
      %v2316 = vor.u32 %v2312, %v2315
      %v2317 = vrot.slane %v2316, 4
      %v2319 = vshll.u32 %v2136, 16
      %v2321 = vrot.slane %v2319, 5
      %v2322 = vsel %vm265, %v2317, %v2321
      %v2323 = vshrl.u32 %v2136, 16
      %v2325 = vrot.slane %v2323, 4
      %v2326 = vor.u32 %v2325, %v2321
      %v2327 = vrot.slane %v2326, 4
      %v2329 = vshll.u32 %v2137, 16
      %v2331 = vrot.slane %v2329, 5
      %v2332 = vsel %vm265, %v2327, %v2331
      %v2334 = vshrl.u32 %v2138, 16
      %v2336 = vrot.slane %v2334, 4
      %v2337 = vshll.u32 %v2138, 16
      %v2339 = vrot.slane %v2337, 5
      %v2340 = vor.u32 %v2336, %v2339
      %v2341 = vrot.slane %v2340, 4
      %v2343 = vshll.u32 %v2139, 16
      %v2345 = vrot.slane %v2343, 5
      %v2346 = vsel %vm265, %v2341, %v2345
      %v2347 = vshrl.u32 %v2139, 16
      %v2349 = vrot.slane %v2347, 4
      %v2350 = vor.u32 %v2349, %v2345
      %v2351 = vrot.slane %v2350, 4
      %v2353 = vshll.u32 %v2140, 16
      %v2355 = vrot.slane %v2353, 5
      %v2356 = vsel %vm265, %v2351, %v2355
      %v2358 = vshrl.u32 %v2141, 16
      %v2360 = vrot.slane %v2358, 4
      %v2361 = vshll.u32 %v2141, 16
      %v2363 = vrot.slane %v2361, 5
      %v2364 = vor.u32 %v2360, %v2363
      %v2365 = vrot.slane %v2364, 4
      %v2367 = vshll.u32 %v2142, 16
      %v2369 = vrot.slane %v2367, 5
      %v2370 = vsel %vm265, %v2365, %v2369
      %v2371 = vshrl.u32 %v2142, 16
      %v2373 = vrot.slane %v2371, 4
      %v2374 = vor.u32 %v2373, %v2369
      %v2375 = vrot.slane %v2374, 4
      %v2377 = vshll.u32 %v2143, 16
      %v2379 = vrot.slane %v2377, 5
      %v2380 = vsel %vm265, %v2375, %v2379
      %v2382 = vshrl.u32 %v2144, 16
      %v2384 = vrot.slane %v2382, 4
      %v2385 = vshll.u32 %v2144, 16
      %v2387 = vrot.slane %v2385, 5
      %v2388 = vor.u32 %v2384, %v2387
      %v2389 = vrot.slane %v2388, 4
      %v2391 = vshll.u32 %v2145, 16
      %v2393 = vrot.slane %v2391, 5
      %v2394 = vsel %vm265, %v2389, %v2393
      %v2395 = vshrl.u32 %v2145, 16
      %v2397 = vrot.slane %v2395, 4
      %v2398 = vor.u32 %v2397, %v2393
      %v2399 = vrot.slane %v2398, 4
      %v2401 = vshll.u32 %v2146, 16
      %v2403 = vrot.slane %v2401, 5
      %v2404 = vsel %vm265, %v2399, %v2403
      %v2406 = vshrl.u32 %v2147, 16
      %v2408 = vrot.slane %v2406, 4
      %v2409 = vshll.u32 %v2147, 16
      %v2411 = vrot.slane %v2409, 5
      %v2412 = vor.u32 %v2408, %v2411
      %v2413 = vrot.slane %v2412, 4
      %v2415 = vshll.u32 %v2148, 16
      %v2417 = vrot.slane %v2415, 5
      %v2418 = vsel %vm265, %v2413, %v2417
      %v2419 = vshrl.u32 %v2148, 16
      %v2421 = vrot.slane %v2419, 4
      %v2422 = vor.u32 %v2421, %v2417
      %v2423 = vrot.slane %v2422, 4
      %v2425 = vshll.u32 %v2149, 16
      %v2427 = vrot.slane %v2425, 5
      %v2428 = vsel %vm265, %v2423, %v2427
      %v2430 = vshrl.u32 %v2150, 16
      %v2432 = vrot.slane %v2430, 4
      %v2433 = vshll.u32 %v2150, 16
      %v2435 = vrot.slane %v2433, 5
      %v2436 = vor.u32 %v2432, %v2435
      %v2437 = vrot.slane %v2436, 4
      %v2439 = vshll.u32 %v2151, 16
      %v2441 = vrot.slane %v2439, 5
      %v2442 = vsel %vm265, %v2437, %v2441
      %v2443 = vshrl.u32 %v2151, 16
      %v2445 = vrot.slane %v2443, 4
      %v2446 = vor.u32 %v2445, %v2441
      %v2447 = vrot.slane %v2446, 4
      %v2449 = vshll.u32 %v2152, 16
      %v2451 = vrot.slane %v2449, 5
      %v2452 = vsel %vm265, %v2447, %v2451
      %v2454 = vshrl.u32 %v2153, 16
      %v2456 = vrot.slane %v2454, 4
      %v2457 = vshll.u32 %v2153, 16
      %v2459 = vrot.slane %v2457, 5
      %v2460 = vor.u32 %v2456, %v2459
      %v2461 = vrot.slane %v2460, 4
      %v2463 = vshll.u32 %v2154, 16
      %v2465 = vrot.slane %v2463, 5
      %v2466 = vsel %vm265, %v2461, %v2465
      %v2467 = vshrl.u32 %v2154, 16
      %v2469 = vrot.slane %v2467, 4
      %v2470 = vor.u32 %v2469, %v2465
      %v2471 = vrot.slane %v2470, 4
      %v2473 = vshll.u32 %v2155, 16
      %v2475 = vrot.slane %v2473, 5
      %v2476 = vsel %vm265, %v2471, %v2475
      %v2478 = vshrl.u32 %v2156, 16
      %v2480 = vrot.slane %v2478, 4
      %v2481 = vshll.u32 %v2156, 16
      %v2483 = vrot.slane %v2481, 5
      %v2484 = vor.u32 %v2480, %v2483
      %v2485 = vrot.slane %v2484, 4
      %v2487 = vshll.u32 %v2157, 16
      %v2489 = vrot.slane %v2487, 5
      %v2490 = vsel %vm265, %v2485, %v2489
      %v2491 = vshrl.u32 %v2157, 16
      %v2493 = vrot.slane %v2491, 4
      %v2494 = vor.u32 %v2493, %v2489
      %v2495 = vrot.slane %v2494, 4
      %v2497 = vshll.u32 %v2158, 16
      %v2499 = vrot.slane %v2497, 5
      %v2500 = vsel %vm265, %v2495, %v2499
      %v2502 = vshrl.u32 %v2159, 16
      %v2504 = vrot.slane %v2502, 4
      %v2505 = vshll.u32 %v2159, 16
      %v2507 = vrot.slane %v2505, 5
      %v2508 = vor.u32 %v2504, %v2507
      %v2509 = vrot.slane %v2508, 4
      %v2511 = vshll.u32 %v2160, 16
      %v2513 = vrot.slane %v2511, 5
      %v2514 = vsel %vm265, %v2509, %v2513
      %v2515 = vshrl.u32 %v2160, 16
      %v2517 = vrot.slane %v2515, 4
      %v2518 = vor.u32 %v2517, %v2513
      %v2519 = vrot.slane %v2518, 4
      %v2521 = vshll.u32 %v2161, 16
      %v2523 = vrot.slane %v2521, 5
      %v2524 = vsel %vm265, %v2519, %v2523
      %v2526 = vshrl.u32 %v2162, 16
      %v2528 = vrot.slane %v2526, 4
      %v2529 = vshll.u32 %v2162, 16
      %v2531 = vrot.slane %v2529, 5
      %v2532 = vor.u32 %v2528, %v2531
      %v2533 = vrot.slane %v2532, 4
      %v2535 = vshll.u32 %v2163, 16
      %v2537 = vrot.slane %v2535, 5
      %v2538 = vsel %vm265, %v2533, %v2537
      %v2539 = vshrl.u32 %v2163, 16
      %v2541 = vrot.slane %v2539, 4
      %v2542 = vor.u32 %v2541, %v2537
      %v2543 = vrot.slane %v2542, 4
      %v2545 = vshll.u32 %v2164, 16
      %v2547 = vrot.slane %v2545, 5
      %v2548 = vsel %vm265, %v2543, %v2547
      %v2549 = vld [vmem:[%s1 + $0x100] sm:$0xf]
      %v2550 = vld [vmem:[%s1 + $0x104] sm:$0xf]
      %v2551 = vld [vmem:[%s1 + $0x108] sm:$0xf]
      %v2552 = vld [vmem:[%s1 + $0x10c] sm:$0xf]
      %v2553 = vld [vmem:[%s1 + $0x110] sm:$0xf]
      %v2554 = vld [vmem:[%s1 + $0x114] sm:$0xf]
      %v2555 = vld [vmem:[%s1 + $0x118] sm:$0xf]
      %v2556 = vld [vmem:[%s1 + $0x11c] sm:$0xf]
      %v2557 = vld [vmem:[%s1 + $0x120] sm:$0xf]
      %v2558 = vld [vmem:[%s1 + $0x124] sm:$0xf]
      %v2559 = vld [vmem:[%s1 + $0x128] sm:$0xf]
      %v2560 = vld [vmem:[%s1 + $0x12c] sm:$0xf]
      %v2561 = vld [vmem:[%s1 + $0x130] sm:$0xf]
      %v2562 = vld [vmem:[%s1 + $0x134] sm:$0xf]
      %v2563 = vld [vmem:[%s1 + $0x138] sm:$0xf]
      %v2564 = vld [vmem:[%s1 + $0x13c] sm:$0xf]
      %v2565 = vunpack.c.l.b16 %v2178
      %v2566 = vunpack.c.l.b16 %v2188
      %v2567 = vunpack.c.l.b16 %v2202
      %v2568 = vunpack.c.l.b16 %v2212
      %v2569 = vunpack.c.l.b16 %v2226
      %v2570 = vunpack.c.l.b16 %v2236
      %v2571 = vunpack.c.l.b16 %v2250
      %v2572 = vunpack.c.l.b16 %v2260
      %v2573 = vunpack.c.l.b16 %v2274
      %v2574 = vunpack.c.l.b16 %v2284
      %v2575 = vunpack.c.l.b16 %v2298
      %v2576 = vunpack.c.l.b16 %v2308
      %v2577 = vunpack.c.l.b16 %v2322
      %v2578 = vunpack.c.l.b16 %v2332
      %v2579 = vunpack.c.l.b16 %v2346
      %v2580 = vunpack.c.l.b16 %v2356
      %v2581 = vunpack.c.l.b16 %v2370
      %v2582 = vunpack.c.l.b16 %v2380
      %v2583 = vunpack.c.l.b16 %v2394
      %v2584 = vunpack.c.l.b16 %v2404
      %v2585 = vunpack.c.l.b16 %v2418
      %v2586 = vunpack.c.l.b16 %v2428
      %v2587 = vunpack.c.l.b16 %v2442
      %v2588 = vunpack.c.l.b16 %v2452
      %v2589 = vunpack.c.l.b16 %v2466
      %v2590 = vunpack.c.l.b16 %v2476
      %v2591 = vunpack.c.l.b16 %v2490
      %v2592 = vunpack.c.l.b16 %v2500
      %v2593 = vunpack.c.l.b16 %v2514
      %v2594 = vunpack.c.l.b16 %v2524
      %v2595 = vunpack.c.l.b16 %v2538
      %v2596 = vunpack.c.l.b16 %v2548
      %v2597 = vpack.c.b16 %v2566, %v2565
      %v2598 = vpack.c.b16 %v2568, %v2567
      %v2599 = vpack.c.b16 %v2570, %v2569
      %v2600 = vpack.c.b16 %v2572, %v2571
      %v2601 = vpack.c.b16 %v2574, %v2573
      %v2602 = vpack.c.b16 %v2576, %v2575
      %v2603 = vpack.c.b16 %v2578, %v2577
      %v2604 = vpack.c.b16 %v2580, %v2579
      %v2605 = vpack.c.b16 %v2582, %v2581
      %v2606 = vpack.c.b16 %v2584, %v2583
      %v2607 = vpack.c.b16 %v2586, %v2585
      %v2608 = vpack.c.b16 %v2588, %v2587
      %v2609 = vpack.c.b16 %v2590, %v2589
      %v2610 = vpack.c.b16 %v2592, %v2591
      %v2611 = vpack.c.b16 %v2594, %v2593
      %v2612 = vpack.c.b16 %v2596, %v2595
      %v2645 = vunpack.c.l.b16 %v2549
      %v2646 = vunpack.c.l.b16 %v2550
      %v2647 = vunpack.c.l.b16 %v2551
      %v2648 = vunpack.c.l.b16 %v2552
      %v2649 = vunpack.c.l.b16 %v2553
      %v2650 = vunpack.c.l.b16 %v2554
      %v2651 = vunpack.c.l.b16 %v2555
      %v2652 = vunpack.c.l.b16 %v2556
      %v2653 = vunpack.c.l.b16 %v2557
      %v2654 = vunpack.c.l.b16 %v2558
      %v2655 = vunpack.c.l.b16 %v2559
      %v2656 = vunpack.c.l.b16 %v2560
      %v2657 = vunpack.c.l.b16 %v2561
      %v2658 = vunpack.c.l.b16 %v2562
      %v2659 = vunpack.c.l.b16 %v2563
      %v2660 = vunpack.c.l.b16 %v2564
      %v2661 = vpack.c.b16 %v2646, %v2645
      %v2662 = vpack.c.b16 %v2648, %v2647
      %v2663 = vpack.c.b16 %v2650, %v2649
      %v2664 = vpack.c.b16 %v2652, %v2651
      %v2665 = vpack.c.b16 %v2654, %v2653
      %v2666 = vpack.c.b16 %v2656, %v2655
      %v2667 = vpack.c.b16 %v2658, %v2657
      %v2668 = vpack.c.b16 %v2660, %v2659
      %2677 = vmatprep.subr.bf16.mxu0 0
      %2678 = vmatpush1.bf16.msra.mxu0 %v2661
      %2679 = vmatprep.subr.bf16.mxu0 0
      %2680 = vmatpush1.bf16.msra.mxu0 %v2662
      %2681 = vmatprep.subr.bf16.mxu0 0
      %2682 = vmatpush1.bf16.msra.mxu0 %v2663
      %2683 = vmatprep.subr.bf16.mxu0 0
      %2684 = vmatpush1.bf16.msra.mxu0 %v2664
      %2685 = vmatprep.subr.bf16.mxu0 0
      %2686 = vmatpush1.bf16.msra.mxu0 %v2665
      %2687 = vmatprep.subr.bf16.mxu0 0
      %2688 = vmatpush1.bf16.msra.mxu0 %v2666
      %2689 = vmatprep.subr.bf16.mxu0 0
      %2690 = vmatpush1.bf16.msra.mxu0 %v2667
      %2691 = vmatprep.subr.bf16.mxu0 0
      %2692 = vmatpush1.bf16.msra.mxu0 %v2668
      %2693 = vmatprep.subr.bf16.mxu0 0
      %2694 = vmatpush1.bf16.msra.mxu0 0
      %2695 = vmatprep.subr.bf16.mxu0 0
      %2696 = vmatpush1.bf16.msra.mxu0 0
      %2697 = vmatprep.subr.bf16.mxu0 0
      %2698 = vmatpush1.bf16.msra.mxu0 0
      %2699 = vmatprep.subr.bf16.mxu0 0
      %2700 = vmatpush1.bf16.msra.mxu0 0
      %2701 = vmatprep.subr.bf16.mxu0 0
      %2702 = vmatpush1.bf16.msra.mxu0 0
      %2703 = vmatprep.subr.bf16.mxu0 0
      %2704 = vmatpush1.bf16.msra.mxu0 0
      %2705 = vmatprep.subr.bf16.mxu0 0
      %2706 = vmatpush1.bf16.msra.mxu0 0
      %2707 = vmatprep.subr.bf16.mxu0 0
      %2708 = vmatpush1.bf16.msra.mxu0 0
      %2709 = vmatprep.mubr.bf16.mxu0 0
      %2710 = vmatmul.mubr.bf16.gmra.mrb[0].mxu0 %v2597
      %v2711 = vpop.f32.mrb[0].mxu0
      %v2712 = vadd.f32 0.0, %v2711
      %v2713 = vpop.f32.mrb[0].mxu0
      %v2714 = vpop.f32.mrb[0].mxu0
      %v2715 = vadd.f32 0.0, %v2714
      %v2716 = vpop.f32.mrb[0].mxu0
      %2717 = vmatprep.mubr.bf16.mxu0 0
      %2718 = vmatmul.mubr.bf16.gmra.mrb[0].mxu0 %v2598
      %v2719 = vpop.f32.mrb[0].mxu0
      %v2720 = vadd.f32 0.0, %v2719
      %v2721 = vpop.f32.mrb[0].mxu0
      %v2722 = vpop.f32.mrb[0].mxu0
      %v2723 = vadd.f32 0.0, %v2722
      %v2724 = vpop.f32.mrb[0].mxu0
      %2725 = vmatprep.mubr.bf16.mxu0 0
      %2726 = vmatmul.mubr.bf16.gmra.mrb[0].mxu0 %v2599
      %v2727 = vpop.f32.mrb[0].mxu0
      %v2728 = vadd.f32 0.0, %v2727
      %v2729 = vpop.f32.mrb[0].mxu0
      %v2730 = vpop.f32.mrb[0].mxu0
      %v2731 = vadd.f32 0.0, %v2730
      %v2732 = vpop.f32.mrb[0].mxu0
      %2733 = vmatprep.mubr.bf16.mxu0 0
      %2734 = vmatmul.mubr.bf16.gmra.mrb[0].mxu0 %v2600
      %v2735 = vpop.f32.mrb[0].mxu0
      %v2736 = vadd.f32 0.0, %v2735
      %v2737 = vpop.f32.mrb[0].mxu0
      %v2738 = vpop.f32.mrb[0].mxu0
      %v2739 = vadd.f32 0.0, %v2738
      %v2740 = vpop.f32.mrb[0].mxu0
      %2741 = vmatprep.mubr.bf16.mxu0 0
      %2742 = vmatmul.mubr.bf16.gmra.mrb[0].mxu0 %v2601
      %v2743 = vpop.f32.mrb[0].mxu0
      %v2744 = vadd.f32 0.0, %v2743
      %v2745 = vpop.f32.mrb[0].mxu0
      %v2746 = vpop.f32.mrb[0].mxu0
      %v2747 = vadd.f32 0.0, %v2746
      %v2748 = vpop.f32.mrb[0].mxu0
      %2749 = vmatprep.mubr.bf16.mxu0 0
      %2750 = vmatmul.mubr.bf16.gmra.mrb[0].mxu0 %v2602
      %v2751 = vpop.f32.mrb[0].mxu0
      %v2752 = vadd.f32 0.0, %v2751
      %v2753 = vpop.f32.mrb[0].mxu0
      %v2754 = vpop.f32.mrb[0].mxu0
      %v2755 = vadd.f32 0.0, %v2754
      %v2756 = vpop.f32.mrb[0].mxu0
      %2757 = vmatprep.mubr.bf16.mxu0 0
      %2758 = vmatmul.mubr.bf16.gmra.mrb[0].mxu0 %v2603
      %v2759 = vpop.f32.mrb[0].mxu0
      %v2760 = vadd.f32 0.0, %v2759
      %v2761 = vpop.f32.mrb[0].mxu0
      %v2762 = vpop.f32.mrb[0].mxu0
      %v2763 = vadd.f32 0.0, %v2762
      %v2764 = vpop.f32.mrb[0].mxu0
      %2765 = vmatprep.mubr.bf16.mxu0 0
      %2766 = vmatmul.mubr.bf16.gmra.mrb[0].mxu0 %v2604
      %v2767 = vpop.f32.mrb[0].mxu0
      %v2768 = vadd.f32 0.0, %v2767
      %v2769 = vpop.f32.mrb[0].mxu0
      %v2770 = vpop.f32.mrb[0].mxu0
      %v2771 = vadd.f32 0.0, %v2770
      %v2772 = vpop.f32.mrb[0].mxu0
      %2773 = vmatprep.mubr.bf16.mxu0 0
      %2774 = vmatmul.mubr.bf16.gmra.mrb[0].mxu0 %v2605
      %v2775 = vpop.f32.mrb[0].mxu0
      %v2776 = vadd.f32 0.0, %v2775
      %v2777 = vpop.f32.mrb[0].mxu0
      %v2778 = vpop.f32.mrb[0].mxu0
      %v2779 = vadd.f32 0.0, %v2778
      %v2780 = vpop.f32.mrb[0].mxu0
      %2781 = vmatprep.mubr.bf16.mxu0 0
      %2782 = vmatmul.mubr.bf16.gmra.mrb[0].mxu0 %v2606
      %v2783 = vpop.f32.mrb[0].mxu0
      %v2784 = vadd.f32 0.0, %v2783
      %v2785 = vpop.f32.mrb[0].mxu0
      %v2786 = vpop.f32.mrb[0].mxu0
      %v2787 = vadd.f32 0.0, %v2786
      %v2788 = vpop.f32.mrb[0].mxu0
      %2789 = vmatprep.mubr.bf16.mxu0 0
      %2790 = vmatmul.mubr.bf16.gmra.mrb[0].mxu0 %v2607
      %v2791 = vpop.f32.mrb[0].mxu0
      %v2792 = vadd.f32 0.0, %v2791
      %v2793 = vpop.f32.mrb[0].mxu0
      %v2794 = vpop.f32.mrb[0].mxu0
      %v2795 = vadd.f32 0.0, %v2794
      %v2796 = vpop.f32.mrb[0].mxu0
      %2797 = vmatprep.mubr.bf16.mxu0 0
      %2798 = vmatmul.mubr.bf16.gmra.mrb[0].mxu0 %v2608
      %v2799 = vpop.f32.mrb[0].mxu0
      %v2800 = vadd.f32 0.0, %v2799
      %v2801 = vpop.f32.mrb[0].mxu0
      %v2802 = vpop.f32.mrb[0].mxu0
      %v2803 = vadd.f32 0.0, %v2802
      %v2804 = vpop.f32.mrb[0].mxu0
      %2805 = vmatprep.mubr.bf16.mxu0 0
      %2806 = vmatmul.mubr.bf16.gmra.mrb[0].mxu0 %v2609
      %v2807 = vpop.f32.mrb[0].mxu0
      %v2808 = vadd.f32 0.0, %v2807
      %v2809 = vpop.f32.mrb[0].mxu0
      %v2810 = vpop.f32.mrb[0].mxu0
      %v2811 = vadd.f32 0.0, %v2810
      %v2812 = vpop.f32.mrb[0].mxu0
      %2813 = vmatprep.mubr.bf16.mxu0 0
      %2814 = vmatmul.mubr.bf16.gmra.mrb[0].mxu0 %v2610
      %v2815 = vpop.f32.mrb[0].mxu0
      %v2816 = vadd.f32 0.0, %v2815
      %v2817 = vpop.f32.mrb[0].mxu0
      %v2818 = vpop.f32.mrb[0].mxu0
      %v2819 = vadd.f32 0.0, %v2818
      %v2820 = vpop.f32.mrb[0].mxu0
      %2821 = vmatprep.mubr.bf16.mxu0 0
      %2822 = vmatmul.mubr.bf16.gmra.mrb[0].mxu0 %v2611
      %v2823 = vpop.f32.mrb[0].mxu0
      %v2824 = vadd.f32 0.0, %v2823
      %v2825 = vpop.f32.mrb[0].mxu0
      %v2826 = vpop.f32.mrb[0].mxu0
      %v2827 = vadd.f32 0.0, %v2826
      %v2828 = vpop.f32.mrb[0].mxu0
      %2829 = vmatprep.mubr.bf16.mxu0 0
      %2830 = vmatmul.mubr.bf16.gmra.mrb[0].mxu0 %v2612
      %v2831 = vpop.f32.mrb[0].mxu0
      %v2832 = vadd.f32 0.0, %v2831
      %v2833 = vpop.f32.mrb[0].mxu0
      %v2834 = vpop.f32.mrb[0].mxu0
      %v2835 = vadd.f32 0.0, %v2834
      %v2836 = vpop.f32.mrb[0].mxu0
      %2837 = vdwg.mxu0
      %v2838 = vadd.f32 %v2085, %v2712
      %v2839 = vadd.f32 %v2086, %v2715
      %v2840 = vadd.f32 %v2087, %v2720
      %v2841 = vadd.f32 %v2088, %v2723
      %v2842 = vadd.f32 %v2089, %v2728
      %v2843 = vadd.f32 %v2090, %v2731
      %v2844 = vadd.f32 %v2091, %v2736
      %v2845 = vadd.f32 %v2092, %v2739
      %v2846 = vadd.f32 %v2093, %v2744
      %v2847 = vadd.f32 %v2094, %v2747
      %v2848 = vadd.f32 %v2095, %v2752
      %v2849 = vadd.f32 %v2096, %v2755
      %v2850 = vadd.f32 %v2097, %v2760
      %v2851 = vadd.f32 %v2098, %v2763
      %v2852 = vadd.f32 %v2099, %v2768
      %v2853 = vadd.f32 %v2100, %v2771
      %v2854 = vadd.f32 %v2101, %v2776
      %v2855 = vadd.f32 %v2102, %v2779
      %v2856 = vadd.f32 %v2103, %v2784
      %v2857 = vadd.f32 %v2104, %v2787
      %v2858 = vadd.f32 %v2105, %v2792
      %v2859 = vadd.f32 %v2106, %v2795
      %v2860 = vadd.f32 %v2107, %v2800
      %v2861 = vadd.f32 %v2108, %v2803
      %v2862 = vadd.f32 %v2109, %v2808
      %v2863 = vadd.f32 %v2110, %v2811
      %v2864 = vadd.f32 %v2111, %v2816
      %v2865 = vadd.f32 %v2112, %v2819
      %v2866 = vadd.f32 %v2113, %v2824
      %v2867 = vadd.f32 %v2114, %v2827
      %v2868 = vadd.f32 %v2115, %v2832
      %v2869 = vadd.f32 %v2116, %v2835
      %v2870 = vld [vmem:[%s1731] sm:$0xe]
      %v2871 = vld [vmem:[%s1731 + $0xc] sm:$0xe]
      %v2872 = vld [vmem:[%s1731 + $0x18] sm:$0xe]
      %v2873 = vld [vmem:[%s1731 + $0x24] sm:$0xe]
      %v2874 = vld [vmem:[%s1731 + $0x30] sm:$0xe]
      %v2875 = vld [vmem:[%s1731 + $0x3c] sm:$0xe]
      %v2876 = vld [vmem:[%s1731 + $0x48] sm:$0xe]
      %v2877 = vld [vmem:[%s1731 + $0x54] sm:$0xe]
      %v2878 = vld [vmem:[%s1731 + $0x60] sm:$0xe]
      %v2879 = vld [vmem:[%s1731 + $0x6c] sm:$0xe]
      %v2880 = vld [vmem:[%s1731 + $0x78] sm:$0xe]
      %v2881 = vld [vmem:[%s1731 + $0x84] sm:$0xe]
      %v2882 = vld [vmem:[%s1731 + $0x90] sm:$0xe]
      %v2883 = vld [vmem:[%s1731 + $0x9c] sm:$0xe]
      %v2884 = vld [vmem:[%s1731 + $0xa8] sm:$0xe]
      %v2885 = vld [vmem:[%s1731 + $0xb4] sm:$0xe]
      %v2934 = vrot.slane %v2870, 5
      %v2935 = vrot.slane %v2934, 4
      %v2936 = vrot.slane %v2118, 5
      %v2937 = vsel %vm1294, %v2935, %v2936
      %v2938 = vrot.slane %v2936, 4
      %v2939 = vrot.slane %v2119, 5
      %v2940 = vsel %vm1294, %v2938, %v2939
      %v2941 = vrot.slane %v2871, 5
      %v2942 = vrot.slane %v2941, 4
      %v2943 = vrot.slane %v2121, 5
      %v2944 = vsel %vm1294, %v2942, %v2943
      %v2945 = vrot.slane %v2943, 4
      %v2946 = vrot.slane %v2122, 5
      %v2947 = vsel %vm1294, %v2945, %v2946
      %v2948 = vrot.slane %v2872, 5
      %v2949 = vrot.slane %v2948, 4
      %v2950 = vrot.slane %v2124, 5
      %v2951 = vsel %vm1294, %v2949, %v2950
      %v2952 = vrot.slane %v2950, 4
      %v2953 = vrot.slane %v2125, 5
      %v2954 = vsel %vm1294, %v2952, %v2953
      %v2955 = vrot.slane %v2873, 5
      %v2956 = vrot.slane %v2955, 4
      %v2957 = vrot.slane %v2127, 5
      %v2958 = vsel %vm1294, %v2956, %v2957
      %v2959 = vrot.slane %v2957, 4
      %v2960 = vrot.slane %v2128, 5
      %v2961 = vsel %vm1294, %v2959, %v2960
      %v2962 = vrot.slane %v2874, 5
      %v2963 = vrot.slane %v2962, 4
      %v2964 = vrot.slane %v2130, 5
      %v2965 = vsel %vm1294, %v2963, %v2964
      %v2966 = vrot.slane %v2964, 4
      %v2967 = vrot.slane %v2131, 5
      %v2968 = vsel %vm1294, %v2966, %v2967
      %v2969 = vrot.slane %v2875, 5
      %v2970 = vrot.slane %v2969, 4
      %v2971 = vrot.slane %v2133, 5
      %v2972 = vsel %vm1294, %v2970, %v2971
      %v2973 = vrot.slane %v2971, 4
      %v2974 = vrot.slane %v2134, 5
      %v2975 = vsel %vm1294, %v2973, %v2974
      %v2976 = vrot.slane %v2876, 5
      %v2977 = vrot.slane %v2976, 4
      %v2978 = vrot.slane %v2136, 5
      %v2979 = vsel %vm1294, %v2977, %v2978
      %v2980 = vrot.slane %v2978, 4
      %v2981 = vrot.slane %v2137, 5
      %v2982 = vsel %vm1294, %v2980, %v2981
      %v2983 = vrot.slane %v2877, 5
      %v2984 = vrot.slane %v2983, 4
      %v2985 = vrot.slane %v2139, 5
      %v2986 = vsel %vm1294, %v2984, %v2985
      %v2987 = vrot.slane %v2985, 4
      %v2988 = vrot.slane %v2140, 5
      %v2989 = vsel %vm1294, %v2987, %v2988
      %v2990 = vrot.slane %v2878, 5
      %v2991 = vrot.slane %v2990, 4
      %v2992 = vrot.slane %v2142, 5
      %v2993 = vsel %vm1294, %v2991, %v2992
      %v2994 = vrot.slane %v2992, 4
      %v2995 = vrot.slane %v2143, 5
      %v2996 = vsel %vm1294, %v2994, %v2995
      %v2997 = vrot.slane %v2879, 5
      %v2998 = vrot.slane %v2997, 4
      %v2999 = vrot.slane %v2145, 5
      %v3000 = vsel %vm1294, %v2998, %v2999
      %v3001 = vrot.slane %v2999, 4
      %v3002 = vrot.slane %v2146, 5
      %v3003 = vsel %vm1294, %v3001, %v3002
      %v3004 = vrot.slane %v2880, 5
      %v3005 = vrot.slane %v3004, 4
      %v3006 = vrot.slane %v2148, 5
      %v3007 = vsel %vm1294, %v3005, %v3006
      %v3008 = vrot.slane %v3006, 4
      %v3009 = vrot.slane %v2149, 5
      %v3010 = vsel %vm1294, %v3008, %v3009
      %v3011 = vrot.slane %v2881, 5
      %v3012 = vrot.slane %v3011, 4
      %v3013 = vrot.slane %v2151, 5
      %v3014 = vsel %vm1294, %v3012, %v3013
      %v3015 = vrot.slane %v3013, 4
      %v3016 = vrot.slane %v2152, 5
      %v3017 = vsel %vm1294, %v3015, %v3016
      %v3018 = vrot.slane %v2882, 5
      %v3019 = vrot.slane %v3018, 4
      %v3020 = vrot.slane %v2154, 5
      %v3021 = vsel %vm1294, %v3019, %v3020
      %v3022 = vrot.slane %v3020, 4
      %v3023 = vrot.slane %v2155, 5
      %v3024 = vsel %vm1294, %v3022, %v3023
      %v3025 = vrot.slane %v2883, 5
      %v3026 = vrot.slane %v3025, 4
      %v3027 = vrot.slane %v2157, 5
      %v3028 = vsel %vm1294, %v3026, %v3027
      %v3029 = vrot.slane %v3027, 4
      %v3030 = vrot.slane %v2158, 5
      %v3031 = vsel %vm1294, %v3029, %v3030
      %v3032 = vrot.slane %v2884, 5
      %v3033 = vrot.slane %v3032, 4
      %v3034 = vrot.slane %v2160, 5
      %v3035 = vsel %vm1294, %v3033, %v3034
      %v3036 = vrot.slane %v3034, 4
      %v3037 = vrot.slane %v2161, 5
      %v3038 = vsel %vm1294, %v3036, %v3037
      %v3039 = vrot.slane %v2885, 5
      %v3040 = vrot.slane %v3039, 4
      %v3041 = vrot.slane %v2163, 5
      %v3042 = vsel %vm1294, %v3040, %v3041
      %v3043 = vrot.slane %v3041, 4
      %v3044 = vrot.slane %v2164, 5
      %v3045 = vsel %vm1294, %v3043, %v3044
      %v3046 = vld [vmem:[%s1 + $0x140] sm:$0xf]
      %v3047 = vld [vmem:[%s1 + $0x144] sm:$0xf]
      %v3048 = vld [vmem:[%s1 + $0x148] sm:$0xf]
      %v3049 = vld [vmem:[%s1 + $0x14c] sm:$0xf]
      %v3050 = vld [vmem:[%s1 + $0x150] sm:$0xf]
      %v3051 = vld [vmem:[%s1 + $0x154] sm:$0xf]
      %v3052 = vld [vmem:[%s1 + $0x158] sm:$0xf]
      %v3053 = vld [vmem:[%s1 + $0x15c] sm:$0xf]
      %v3054 = vld [vmem:[%s1 + $0x160] sm:$0xf]
      %v3055 = vld [vmem:[%s1 + $0x164] sm:$0xf]
      %v3056 = vld [vmem:[%s1 + $0x168] sm:$0xf]
      %v3057 = vld [vmem:[%s1 + $0x16c] sm:$0xf]
      %v3058 = vld [vmem:[%s1 + $0x170] sm:$0xf]
      %v3059 = vld [vmem:[%s1 + $0x174] sm:$0xf]
      %v3060 = vld [vmem:[%s1 + $0x178] sm:$0xf]
      %v3061 = vld [vmem:[%s1 + $0x17c] sm:$0xf]
      %v3062 = vunpack.c.l.b16 %v2937
      %v3063 = vunpack.c.l.b16 %v2940
      %v3064 = vunpack.c.l.b16 %v2944
      %v3065 = vunpack.c.l.b16 %v2947
      %v3066 = vunpack.c.l.b16 %v2951
      %v3067 = vunpack.c.l.b16 %v2954
      %v3068 = vunpack.c.l.b16 %v2958
      %v3069 = vunpack.c.l.b16 %v2961
      %v3070 = vunpack.c.l.b16 %v2965
      %v3071 = vunpack.c.l.b16 %v2968
      %v3072 = vunpack.c.l.b16 %v2972
      %v3073 = vunpack.c.l.b16 %v2975
      %v3074 = vunpack.c.l.b16 %v2979
      %v3075 = vunpack.c.l.b16 %v2982
      %v3076 = vunpack.c.l.b16 %v2986
      %v3077 = vunpack.c.l.b16 %v2989
      %v3078 = vunpack.c.l.b16 %v2993
      %v3079 = vunpack.c.l.b16 %v2996
      %v3080 = vunpack.c.l.b16 %v3000
      %v3081 = vunpack.c.l.b16 %v3003
      %v3082 = vunpack.c.l.b16 %v3007
      %v3083 = vunpack.c.l.b16 %v3010
      %v3084 = vunpack.c.l.b16 %v3014
      %v3085 = vunpack.c.l.b16 %v3017
      %v3086 = vunpack.c.l.b16 %v3021
      %v3087 = vunpack.c.l.b16 %v3024
      %v3088 = vunpack.c.l.b16 %v3028
      %v3089 = vunpack.c.l.b16 %v3031
      %v3090 = vunpack.c.l.b16 %v3035
      %v3091 = vunpack.c.l.b16 %v3038
      %v3092 = vunpack.c.l.b16 %v3042
      %v3093 = vunpack.c.l.b16 %v3045
      %v3094 = vpack.c.b16 %v3063, %v3062
      %v3095 = vpack.c.b16 %v3065, %v3064
      %v3096 = vpack.c.b16 %v3067, %v3066
      %v3097 = vpack.c.b16 %v3069, %v3068
      %v3098 = vpack.c.b16 %v3071, %v3070
      %v3099 = vpack.c.b16 %v3073, %v3072
      %v3100 = vpack.c.b16 %v3075, %v3074
      %v3101 = vpack.c.b16 %v3077, %v3076
      %v3102 = vpack.c.b16 %v3079, %v3078
      %v3103 = vpack.c.b16 %v3081, %v3080
      %v3104 = vpack.c.b16 %v3083, %v3082
      %v3105 = vpack.c.b16 %v3085, %v3084
      %v3106 = vpack.c.b16 %v3087, %v3086
      %v3107 = vpack.c.b16 %v3089, %v3088
      %v3108 = vpack.c.b16 %v3091, %v3090
      %v3109 = vpack.c.b16 %v3093, %v3092
      %v3142 = vunpack.c.l.b16 %v3046
      %v3143 = vunpack.c.l.b16 %v3047
      %v3144 = vunpack.c.l.b16 %v3048
      %v3145 = vunpack.c.l.b16 %v3049
      %v3146 = vunpack.c.l.b16 %v3050
      %v3147 = vunpack.c.l.b16 %v3051
      %v3148 = vunpack.c.l.b16 %v3052
      %v3149 = vunpack.c.l.b16 %v3053
      %v3150 = vunpack.c.l.b16 %v3054
      %v3151 = vunpack.c.l.b16 %v3055
      %v3152 = vunpack.c.l.b16 %v3056
      %v3153 = vunpack.c.l.b16 %v3057
      %v3154 = vunpack.c.l.b16 %v3058
      %v3155 = vunpack.c.l.b16 %v3059
      %v3156 = vunpack.c.l.b16 %v3060
      %v3157 = vunpack.c.l.b16 %v3061
      %v3158 = vpack.c.b16 %v3143, %v3142
      %v3159 = vpack.c.b16 %v3145, %v3144
      %v3160 = vpack.c.b16 %v3147, %v3146
      %v3161 = vpack.c.b16 %v3149, %v3148
      %v3162 = vpack.c.b16 %v3151, %v3150
      %v3163 = vpack.c.b16 %v3153, %v3152
      %v3164 = vpack.c.b16 %v3155, %v3154
      %v3165 = vpack.c.b16 %v3157, %v3156
      %3174 = vmatprep.subr.bf16.mxu0 0
      %3175 = vmatpush1.bf16.msra.mxu0 %v3158
      %3176 = vmatprep.subr.bf16.mxu0 0
      %3177 = vmatpush1.bf16.msra.mxu0 %v3159
      %3178 = vmatprep.subr.bf16.mxu0 0
      %3179 = vmatpush1.bf16.msra.mxu0 %v3160
      %3180 = vmatprep.subr.bf16.mxu0 0
      %3181 = vmatpush1.bf16.msra.mxu0 %v3161
      %3182 = vmatprep.subr.bf16.mxu0 0
      %3183 = vmatpush1.bf16.msra.mxu0 %v3162
      %3184 = vmatprep.subr.bf16.mxu0 0
      %3185 = vmatpush1.bf16.msra.mxu0 %v3163
      %3186 = vmatprep.subr.bf16.mxu0 0
      %3187 = vmatpush1.bf16.msra.mxu0 %v3164
      %3188 = vmatprep.subr.bf16.mxu0 0
      %3189 = vmatpush1.bf16.msra.mxu0 %v3165
      %3190 = vmatprep.subr.bf16.mxu0 0
      %3191 = vmatpush1.bf16.msra.mxu0 0
      %3192 = vmatprep.subr.bf16.mxu0 0
      %3193 = vmatpush1.bf16.msra.mxu0 0
      %3194 = vmatprep.subr.bf16.mxu0 0
      %3195 = vmatpush1.bf16.msra.mxu0 0
      %3196 = vmatprep.subr.bf16.mxu0 0
      %3197 = vmatpush1.bf16.msra.mxu0 0
      %3198 = vmatprep.subr.bf16.mxu0 0
      %3199 = vmatpush1.bf16.msra.mxu0 0
      %3200 = vmatprep.subr.bf16.mxu0 0
      %3201 = vmatpush1.bf16.msra.mxu0 0
      %3202 = vmatprep.subr.bf16.mxu0 0
      %3203 = vmatpush1.bf16.msra.mxu0 0
      %3204 = vmatprep.subr.bf16.mxu0 0
      %3205 = vmatpush1.bf16.msra.mxu0 0
      %3206 = vmatprep.mubr.bf16.mxu0 0
      %3207 = vmatmul.mubr.bf16.gmra.mrb[0].mxu0 %v3094
      %v3208 = vpop.f32.mrb[0].mxu0
      %v3209 = vadd.f32 0.0, %v3208
      %v3210 = vpop.f32.mrb[0].mxu0
      %v3211 = vpop.f32.mrb[0].mxu0
      %v3212 = vadd.f32 0.0, %v3211
      %v3213 = vpop.f32.mrb[0].mxu0
      %3214 = vmatprep.mubr.bf16.mxu0 0
      %3215 = vmatmul.mubr.bf16.gmra.mrb[0].mxu0 %v3095
      %v3216 = vpop.f32.mrb[0].mxu0
      %v3217 = vadd.f32 0.0, %v3216
      %v3218 = vpop.f32.mrb[0].mxu0
      %v3219 = vpop.f32.mrb[0].mxu0
      %v3220 = vadd.f32 0.0, %v3219
      %v3221 = vpop.f32.mrb[0].mxu0
      %3222 = vmatprep.mubr.bf16.mxu0 0
      %3223 = vmatmul.mubr.bf16.gmra.mrb[0].mxu0 %v3096
      %v3224 = vpop.f32.mrb[0].mxu0
      %v3225 = vadd.f32 0.0, %v3224
      %v3226 = vpop.f32.mrb[0].mxu0
      %v3227 = vpop.f32.mrb[0].mxu0
      %v3228 = vadd.f32 0.0, %v3227
      %v3229 = vpop.f32.mrb[0].mxu0
      %3230 = vmatprep.mubr.bf16.mxu0 0
      %3231 = vmatmul.mubr.bf16.gmra.mrb[0].mxu0 %v3097
      %v3232 = vpop.f32.mrb[0].mxu0
      %v3233 = vadd.f32 0.0, %v3232
      %v3234 = vpop.f32.mrb[0].mxu0
      %v3235 = vpop.f32.mrb[0].mxu0
      %v3236 = vadd.f32 0.0, %v3235
      %v3237 = vpop.f32.mrb[0].mxu0
      %3238 = vmatprep.mubr.bf16.mxu0 0
      %3239 = vmatmul.mubr.bf16.gmra.mrb[0].mxu0 %v3098
      %v3240 = vpop.f32.mrb[0].mxu0
      %v3241 = vadd.f32 0.0, %v3240
      %v3242 = vpop.f32.mrb[0].mxu0
      %v3243 = vpop.f32.mrb[0].mxu0
      %v3244 = vadd.f32 0.0, %v3243
      %v3245 = vpop.f32.mrb[0].mxu0
      %3246 = vmatprep.mubr.bf16.mxu0 0
      %3247 = vmatmul.mubr.bf16.gmra.mrb[0].mxu0 %v3099
      %v3248 = vpop.f32.mrb[0].mxu0
      %v3249 = vadd.f32 0.0, %v3248
      %v3250 = vpop.f32.mrb[0].mxu0
      %v3251 = vpop.f32.mrb[0].mxu0
      %v3252 = vadd.f32 0.0, %v3251
      %v3253 = vpop.f32.mrb[0].mxu0
      %3254 = vmatprep.mubr.bf16.mxu0 0
      %3255 = vmatmul.mubr.bf16.gmra.mrb[0].mxu0 %v3100
      %v3256 = vpop.f32.mrb[0].mxu0
      %v3257 = vadd.f32 0.0, %v3256
      %v3258 = vpop.f32.mrb[0].mxu0
      %v3259 = vpop.f32.mrb[0].mxu0
      %v3260 = vadd.f32 0.0, %v3259
      %v3261 = vpop.f32.mrb[0].mxu0
      %3262 = vmatprep.mubr.bf16.mxu0 0
      %3263 = vmatmul.mubr.bf16.gmra.mrb[0].mxu0 %v3101
      %v3264 = vpop.f32.mrb[0].mxu0
      %v3265 = vadd.f32 0.0, %v3264
      %v3266 = vpop.f32.mrb[0].mxu0
      %v3267 = vpop.f32.mrb[0].mxu0
      %v3268 = vadd.f32 0.0, %v3267
      %v3269 = vpop.f32.mrb[0].mxu0
      %3270 = vmatprep.mubr.bf16.mxu0 0
      %3271 = vmatmul.mubr.bf16.gmra.mrb[0].mxu0 %v3102
      %v3272 = vpop.f32.mrb[0].mxu0
      %v3273 = vadd.f32 0.0, %v3272
      %v3274 = vpop.f32.mrb[0].mxu0
      %v3275 = vpop.f32.mrb[0].mxu0
      %v3276 = vadd.f32 0.0, %v3275
      %v3277 = vpop.f32.mrb[0].mxu0
      %3278 = vmatprep.mubr.bf16.mxu0 0
      %3279 = vmatmul.mubr.bf16.gmra.mrb[0].mxu0 %v3103
      %v3280 = vpop.f32.mrb[0].mxu0
      %v3281 = vadd.f32 0.0, %v3280
      %v3282 = vpop.f32.mrb[0].mxu0
      %v3283 = vpop.f32.mrb[0].mxu0
      %v3284 = vadd.f32 0.0, %v3283
      %v3285 = vpop.f32.mrb[0].mxu0
      %3286 = vmatprep.mubr.bf16.mxu0 0
      %3287 = vmatmul.mubr.bf16.gmra.mrb[0].mxu0 %v3104
      %v3288 = vpop.f32.mrb[0].mxu0
      %v3289 = vadd.f32 0.0, %v3288
      %v3290 = vpop.f32.mrb[0].mxu0
      %v3291 = vpop.f32.mrb[0].mxu0
      %v3292 = vadd.f32 0.0, %v3291
      %v3293 = vpop.f32.mrb[0].mxu0
      %3294 = vmatprep.mubr.bf16.mxu0 0
      %3295 = vmatmul.mubr.bf16.gmra.mrb[0].mxu0 %v3105
      %v3296 = vpop.f32.mrb[0].mxu0
      %v3297 = vadd.f32 0.0, %v3296
      %v3298 = vpop.f32.mrb[0].mxu0
      %v3299 = vpop.f32.mrb[0].mxu0
      %v3300 = vadd.f32 0.0, %v3299
      %v3301 = vpop.f32.mrb[0].mxu0
      %3302 = vmatprep.mubr.bf16.mxu0 0
      %3303 = vmatmul.mubr.bf16.gmra.mrb[0].mxu0 %v3106
      %v3304 = vpop.f32.mrb[0].mxu0
      %v3305 = vadd.f32 0.0, %v3304
      %v3306 = vpop.f32.mrb[0].mxu0
      %v3307 = vpop.f32.mrb[0].mxu0
      %v3308 = vadd.f32 0.0, %v3307
      %v3309 = vpop.f32.mrb[0].mxu0
      %3310 = vmatprep.mubr.bf16.mxu0 0
      %3311 = vmatmul.mubr.bf16.gmra.mrb[0].mxu0 %v3107
      %v3312 = vpop.f32.mrb[0].mxu0
      %v3313 = vadd.f32 0.0, %v3312
      %v3314 = vpop.f32.mrb[0].mxu0
      %v3315 = vpop.f32.mrb[0].mxu0
      %v3316 = vadd.f32 0.0, %v3315
      %v3317 = vpop.f32.mrb[0].mxu0
      %3318 = vmatprep.mubr.bf16.mxu0 0
      %3319 = vmatmul.mubr.bf16.gmra.mrb[0].mxu0 %v3108
      %v3320 = vpop.f32.mrb[0].mxu0
      %v3321 = vadd.f32 0.0, %v3320
      %v3322 = vpop.f32.mrb[0].mxu0
      %v3323 = vpop.f32.mrb[0].mxu0
      %v3324 = vadd.f32 0.0, %v3323
      %v3325 = vpop.f32.mrb[0].mxu0
      %3326 = vmatprep.mubr.bf16.mxu0 0
      %3327 = vmatmul.mubr.bf16.gmra.mrb[0].mxu0 %v3109
      %v3328 = vpop.f32.mrb[0].mxu0
      %v3329 = vadd.f32 0.0, %v3328
      %v3330 = vpop.f32.mrb[0].mxu0
      %v3331 = vpop.f32.mrb[0].mxu0
      %v3332 = vadd.f32 0.0, %v3331
      %v3333 = vpop.f32.mrb[0].mxu0
      %3334 = vdwg.mxu0
      %v3335 = vadd.f32 %v2838, %v3209
      %v3336 = vadd.f32 %v2839, %v3212
      %v3337 = vadd.f32 %v2840, %v3217
      %v3338 = vadd.f32 %v2841, %v3220
      %v3339 = vadd.f32 %v2842, %v3225
      %v3340 = vadd.f32 %v2843, %v3228
      %v3341 = vadd.f32 %v2844, %v3233
      %v3342 = vadd.f32 %v2845, %v3236
      %v3343 = vadd.f32 %v2846, %v3241
      %v3344 = vadd.f32 %v2847, %v3244
      %v3345 = vadd.f32 %v2848, %v3249
      %v3346 = vadd.f32 %v2849, %v3252
      %v3347 = vadd.f32 %v2850, %v3257
      %v3348 = vadd.f32 %v2851, %v3260
      %v3349 = vadd.f32 %v2852, %v3265
      %v3350 = vadd.f32 %v2853, %v3268
      %v3351 = vadd.f32 %v2854, %v3273
      %v3352 = vadd.f32 %v2855, %v3276
      %v3353 = vadd.f32 %v2856, %v3281
      %v3354 = vadd.f32 %v2857, %v3284
      %v3355 = vadd.f32 %v2858, %v3289
      %v3356 = vadd.f32 %v2859, %v3292
      %v3357 = vadd.f32 %v2860, %v3297
      %v3358 = vadd.f32 %v2861, %v3300
      %v3359 = vadd.f32 %v2862, %v3305
      %v3360 = vadd.f32 %v2863, %v3308
      %v3361 = vadd.f32 %v2864, %v3313
      %v3362 = vadd.f32 %v2865, %v3316
      %v3363 = vadd.f32 %v2866, %v3321
      %v3364 = vadd.f32 %v2867, %v3324
      %v3365 = vadd.f32 %v2868, %v3329
      %v3366 = vadd.f32 %v2869, %v3332
      %s3367 = sadd.s32 %s195, 2
      %s3368 = smul.u32 %s3367, 3
      %s3369 = smul.addr %s3368, 4
      %s3370 = scalar_lea.vmem %s178, %s3369
      %v3371 = vld [vmem:[%s3370] sm:$0xf]
      %v3372 = vld [vmem:[%s3370 + $0x4] sm:$0xf]
      %v3373 = vld [vmem:[%s3370 + $0xc] sm:$0xf]
      %v3374 = vld [vmem:[%s3370 + $0x10] sm:$0xf]
      %v3375 = vld [vmem:[%s3370 + $0x18] sm:$0xf]
      %v3376 = vld [vmem:[%s3370 + $0x1c] sm:$0xf]
      %v3377 = vld [vmem:[%s3370 + $0x24] sm:$0xf]
      %v3378 = vld [vmem:[%s3370 + $0x28] sm:$0xf]
      %v3379 = vld [vmem:[%s3370 + $0x30] sm:$0xf]
      %v3380 = vld [vmem:[%s3370 + $0x34] sm:$0xf]
      %v3381 = vld [vmem:[%s3370 + $0x3c] sm:$0xf]
      %v3382 = vld [vmem:[%s3370 + $0x40] sm:$0xf]
      %v3383 = vld [vmem:[%s3370 + $0x48] sm:$0xf]
      %v3384 = vld [vmem:[%s3370 + $0x4c] sm:$0xf]
      %v3385 = vld [vmem:[%s3370 + $0x54] sm:$0xf]
      %v3386 = vld [vmem:[%s3370 + $0x58] sm:$0xf]
      %v3387 = vld [vmem:[%s3370 + $0x60] sm:$0xf]
      %v3388 = vld [vmem:[%s3370 + $0x64] sm:$0xf]
      %v3389 = vld [vmem:[%s3370 + $0x6c] sm:$0xf]
      %v3390 = vld [vmem:[%s3370 + $0x70] sm:$0xf]
      %v3391 = vld [vmem:[%s3370 + $0x78] sm:$0xf]
      %v3392 = vld [vmem:[%s3370 + $0x7c] sm:$0xf]
      %v3393 = vld [vmem:[%s3370 + $0x84] sm:$0xf]
      %v3394 = vld [vmem:[%s3370 + $0x88] sm:$0xf]
      %v3395 = vld [vmem:[%s3370 + $0x90] sm:$0xf]
      %v3396 = vld [vmem:[%s3370 + $0x94] sm:$0xf]
      %v3397 = vld [vmem:[%s3370 + $0x9c] sm:$0xf]
      %v3398 = vld [vmem:[%s3370 + $0xa0] sm:$0xf]
      %v3399 = vld [vmem:[%s3370 + $0xa8] sm:$0xf]
      %v3400 = vld [vmem:[%s3370 + $0xac] sm:$0xf]
      %v3401 = vld [vmem:[%s3370 + $0xb4] sm:$0xf]
      %v3402 = vld [vmem:[%s3370 + $0xb8] sm:$0xf]
      %v3403 = vld [vmem:[%s1 + $0x180] sm:$0xf]
      %v3404 = vld [vmem:[%s1 + $0x184] sm:$0xf]
      %v3405 = vld [vmem:[%s1 + $0x188] sm:$0xf]
      %v3406 = vld [vmem:[%s1 + $0x18c] sm:$0xf]
      %v3407 = vld [vmem:[%s1 + $0x190] sm:$0xf]
      %v3408 = vld [vmem:[%s1 + $0x194] sm:$0xf]
      %v3409 = vld [vmem:[%s1 + $0x198] sm:$0xf]
      %v3410 = vld [vmem:[%s1 + $0x19c] sm:$0xf]
      %v3411 = vld [vmem:[%s1 + $0x1a0] sm:$0xf]
      %v3412 = vld [vmem:[%s1 + $0x1a4] sm:$0xf]
      %v3413 = vld [vmem:[%s1 + $0x1a8] sm:$0xf]
      %v3414 = vld [vmem:[%s1 + $0x1ac] sm:$0xf]
      %v3415 = vld [vmem:[%s1 + $0x1b0] sm:$0xf]
      %v3416 = vld [vmem:[%s1 + $0x1b4] sm:$0xf]
      %v3417 = vld [vmem:[%s1 + $0x1b8] sm:$0xf]
      %v3418 = vld [vmem:[%s1 + $0x1bc] sm:$0xf]
      %v3451 = vunpack.c.l.b16 %v3371
      %v3452 = vunpack.c.l.b16 %v3372
      %v3453 = vunpack.c.l.b16 %v3373
      %v3454 = vunpack.c.l.b16 %v3374
      %v3455 = vunpack.c.l.b16 %v3375
      %v3456 = vunpack.c.l.b16 %v3376
      %v3457 = vunpack.c.l.b16 %v3377
      %v3458 = vunpack.c.l.b16 %v3378
      %v3459 = vunpack.c.l.b16 %v3379
      %v3460 = vunpack.c.l.b16 %v3380
      %v3461 = vunpack.c.l.b16 %v3381
      %v3462 = vunpack.c.l.b16 %v3382
      %v3463 = vunpack.c.l.b16 %v3383
      %v3464 = vunpack.c.l.b16 %v3384
      %v3465 = vunpack.c.l.b16 %v3385
      %v3466 = vunpack.c.l.b16 %v3386
      %v3467 = vunpack.c.l.b16 %v3387
      %v3468 = vunpack.c.l.b16 %v3388
      %v3469 = vunpack.c.l.b16 %v3389
      %v3470 = vunpack.c.l.b16 %v3390
      %v3471 = vunpack.c.l.b16 %v3391
      %v3472 = vunpack.c.l.b16 %v3392
      %v3473 = vunpack.c.l.b16 %v3393
      %v3474 = vunpack.c.l.b16 %v3394
      %v3475 = vunpack.c.l.b16 %v3395
      %v3476 = vunpack.c.l.b16 %v3396
      %v3477 = vunpack.c.l.b16 %v3397
      %v3478 = vunpack.c.l.b16 %v3398
      %v3479 = vunpack.c.l.b16 %v3399
      %v3480 = vunpack.c.l.b16 %v3400
      %v3481 = vunpack.c.l.b16 %v3401
      %v3482 = vunpack.c.l.b16 %v3402
      %v3483 = vpack.c.b16 %v3452, %v3451
      %v3484 = vpack.c.b16 %v3454, %v3453
      %v3485 = vpack.c.b16 %v3456, %v3455
      %v3486 = vpack.c.b16 %v3458, %v3457
      %v3487 = vpack.c.b16 %v3460, %v3459
      %v3488 = vpack.c.b16 %v3462, %v3461
      %v3489 = vpack.c.b16 %v3464, %v3463
      %v3490 = vpack.c.b16 %v3466, %v3465
      %v3491 = vpack.c.b16 %v3468, %v3467
      %v3492 = vpack.c.b16 %v3470, %v3469
      %v3493 = vpack.c.b16 %v3472, %v3471
      %v3494 = vpack.c.b16 %v3474, %v3473
      %v3495 = vpack.c.b16 %v3476, %v3475
      %v3496 = vpack.c.b16 %v3478, %v3477
      %v3497 = vpack.c.b16 %v3480, %v3479
      %v3498 = vpack.c.b16 %v3482, %v3481
      %v3531 = vunpack.c.l.b16 %v3403
      %v3532 = vunpack.c.l.b16 %v3404
      %v3533 = vunpack.c.l.b16 %v3405
      %v3534 = vunpack.c.l.b16 %v3406
      %v3535 = vunpack.c.l.b16 %v3407
      %v3536 = vunpack.c.l.b16 %v3408
      %v3537 = vunpack.c.l.b16 %v3409
      %v3538 = vunpack.c.l.b16 %v3410
      %v3539 = vunpack.c.l.b16 %v3411
      %v3540 = vunpack.c.l.b16 %v3412
      %v3541 = vunpack.c.l.b16 %v3413
      %v3542 = vunpack.c.l.b16 %v3414
      %v3543 = vunpack.c.l.b16 %v3415
      %v3544 = vunpack.c.l.b16 %v3416
      %v3545 = vunpack.c.l.b16 %v3417
      %v3546 = vunpack.c.l.b16 %v3418
      %v3547 = vpack.c.b16 %v3532, %v3531
      %v3548 = vpack.c.b16 %v3534, %v3533
      %v3549 = vpack.c.b16 %v3536, %v3535
      %v3550 = vpack.c.b16 %v3538, %v3537
      %v3551 = vpack.c.b16 %v3540, %v3539
      %v3552 = vpack.c.b16 %v3542, %v3541
      %v3553 = vpack.c.b16 %v3544, %v3543
      %v3554 = vpack.c.b16 %v3546, %v3545
      %3563 = vmatprep.subr.bf16.mxu0 0
      %3564 = vmatpush1.bf16.msra.mxu0 %v3547
      %3565 = vmatprep.subr.bf16.mxu0 0
      %3566 = vmatpush1.bf16.msra.mxu0 %v3548
      %3567 = vmatprep.subr.bf16.mxu0 0
      %3568 = vmatpush1.bf16.msra.mxu0 %v3549
      %3569 = vmatprep.subr.bf16.mxu0 0
      %3570 = vmatpush1.bf16.msra.mxu0 %v3550
      %3571 = vmatprep.subr.bf16.mxu0 0
      %3572 = vmatpush1.bf16.msra.mxu0 %v3551
      %3573 = vmatprep.subr.bf16.mxu0 0
      %3574 = vmatpush1.bf16.msra.mxu0 %v3552
      %3575 = vmatprep.subr.bf16.mxu0 0
      %3576 = vmatpush1.bf16.msra.mxu0 %v3553
      %3577 = vmatprep.subr.bf16.mxu0 0
      %3578 = vmatpush1.bf16.msra.mxu0 %v3554
      %3579 = vmatprep.subr.bf16.mxu0 0
      %3580 = vmatpush1.bf16.msra.mxu0 0
      %3581 = vmatprep.subr.bf16.mxu0 0
      %3582 = vmatpush1.bf16.msra.mxu0 0
      %3583 = vmatprep.subr.bf16.mxu0 0
      %3584 = vmatpush1.bf16.msra.mxu0 0
      %3585 = vmatprep.subr.bf16.mxu0 0
      %3586 = vmatpush1.bf16.msra.mxu0 0
      %3587 = vmatprep.subr.bf16.mxu0 0
      %3588 = vmatpush1.bf16.msra.mxu0 0
      %3589 = vmatprep.subr.bf16.mxu0 0
      %3590 = vmatpush1.bf16.msra.mxu0 0
      %3591 = vmatprep.subr.bf16.mxu0 0
      %3592 = vmatpush1.bf16.msra.mxu0 0
      %3593 = vmatprep.subr.bf16.mxu0 0
      %3594 = vmatpush1.bf16.msra.mxu0 0
      %3595 = vmatprep.mubr.bf16.mxu0 0
      %3596 = vmatmul.mubr.bf16.gmra.mrb[0].mxu0 %v3483
      %v3597 = vpop.f32.mrb[0].mxu0
      %v3598 = vadd.f32 0.0, %v3597
      %v3599 = vpop.f32.mrb[0].mxu0
      %v3600 = vpop.f32.mrb[0].mxu0
      %v3601 = vadd.f32 0.0, %v3600
      %v3602 = vpop.f32.mrb[0].mxu0
      %3603 = vmatprep.mubr.bf16.mxu0 0
      %3604 = vmatmul.mubr.bf16.gmra.mrb[0].mxu0 %v3484
      %v3605 = vpop.f32.mrb[0].mxu0
      %v3606 = vadd.f32 0.0, %v3605
      %v3607 = vpop.f32.mrb[0].mxu0
      %v3608 = vpop.f32.mrb[0].mxu0
      %v3609 = vadd.f32 0.0, %v3608
      %v3610 = vpop.f32.mrb[0].mxu0
      %3611 = vmatprep.mubr.bf16.mxu0 0
      %3612 = vmatmul.mubr.bf16.gmra.mrb[0].mxu0 %v3485
      %v3613 = vpop.f32.mrb[0].mxu0
      %v3614 = vadd.f32 0.0, %v3613
      %v3615 = vpop.f32.mrb[0].mxu0
      %v3616 = vpop.f32.mrb[0].mxu0
      %v3617 = vadd.f32 0.0, %v3616
      %v3618 = vpop.f32.mrb[0].mxu0
      %3619 = vmatprep.mubr.bf16.mxu0 0
      %3620 = vmatmul.mubr.bf16.gmra.mrb[0].mxu0 %v3486
      %v3621 = vpop.f32.mrb[0].mxu0
      %v3622 = vadd.f32 0.0, %v3621
      %v3623 = vpop.f32.mrb[0].mxu0
      %v3624 = vpop.f32.mrb[0].mxu0
      %v3625 = vadd.f32 0.0, %v3624
      %v3626 = vpop.f32.mrb[0].mxu0
      %3627 = vmatprep.mubr.bf16.mxu0 0
      %3628 = vmatmul.mubr.bf16.gmra.mrb[0].mxu0 %v3487
      %v3629 = vpop.f32.mrb[0].mxu0
      %v3630 = vadd.f32 0.0, %v3629
      %v3631 = vpop.f32.mrb[0].mxu0
      %v3632 = vpop.f32.mrb[0].mxu0
      %v3633 = vadd.f32 0.0, %v3632
      %v3634 = vpop.f32.mrb[0].mxu0
      %3635 = vmatprep.mubr.bf16.mxu0 0
      %3636 = vmatmul.mubr.bf16.gmra.mrb[0].mxu0 %v3488
      %v3637 = vpop.f32.mrb[0].mxu0
      %v3638 = vadd.f32 0.0, %v3637
      %v3639 = vpop.f32.mrb[0].mxu0
      %v3640 = vpop.f32.mrb[0].mxu0
      %v3641 = vadd.f32 0.0, %v3640
      %v3642 = vpop.f32.mrb[0].mxu0
      %3643 = vmatprep.mubr.bf16.mxu0 0
      %3644 = vmatmul.mubr.bf16.gmra.mrb[0].mxu0 %v3489
      %v3645 = vpop.f32.mrb[0].mxu0
      %v3646 = vadd.f32 0.0, %v3645
      %v3647 = vpop.f32.mrb[0].mxu0
      %v3648 = vpop.f32.mrb[0].mxu0
      %v3649 = vadd.f32 0.0, %v3648
      %v3650 = vpop.f32.mrb[0].mxu0
      %3651 = vmatprep.mubr.bf16.mxu0 0
      %3652 = vmatmul.mubr.bf16.gmra.mrb[0].mxu0 %v3490
      %v3653 = vpop.f32.mrb[0].mxu0
      %v3654 = vadd.f32 0.0, %v3653
      %v3655 = vpop.f32.mrb[0].mxu0
      %v3656 = vpop.f32.mrb[0].mxu0
      %v3657 = vadd.f32 0.0, %v3656
      %v3658 = vpop.f32.mrb[0].mxu0
      %3659 = vmatprep.mubr.bf16.mxu0 0
      %3660 = vmatmul.mubr.bf16.gmra.mrb[0].mxu0 %v3491
      %v3661 = vpop.f32.mrb[0].mxu0
      %v3662 = vadd.f32 0.0, %v3661
      %v3663 = vpop.f32.mrb[0].mxu0
      %v3664 = vpop.f32.mrb[0].mxu0
      %v3665 = vadd.f32 0.0, %v3664
      %v3666 = vpop.f32.mrb[0].mxu0
      %3667 = vmatprep.mubr.bf16.mxu0 0
      %3668 = vmatmul.mubr.bf16.gmra.mrb[0].mxu0 %v3492
      %v3669 = vpop.f32.mrb[0].mxu0
      %v3670 = vadd.f32 0.0, %v3669
      %v3671 = vpop.f32.mrb[0].mxu0
      %v3672 = vpop.f32.mrb[0].mxu0
      %v3673 = vadd.f32 0.0, %v3672
      %v3674 = vpop.f32.mrb[0].mxu0
      %3675 = vmatprep.mubr.bf16.mxu0 0
      %3676 = vmatmul.mubr.bf16.gmra.mrb[0].mxu0 %v3493
      %v3677 = vpop.f32.mrb[0].mxu0
      %v3678 = vadd.f32 0.0, %v3677
      %v3679 = vpop.f32.mrb[0].mxu0
      %v3680 = vpop.f32.mrb[0].mxu0
      %v3681 = vadd.f32 0.0, %v3680
      %v3682 = vpop.f32.mrb[0].mxu0
      %3683 = vmatprep.mubr.bf16.mxu0 0
      %3684 = vmatmul.mubr.bf16.gmra.mrb[0].mxu0 %v3494
      %v3685 = vpop.f32.mrb[0].mxu0
      %v3686 = vadd.f32 0.0, %v3685
      %v3687 = vpop.f32.mrb[0].mxu0
      %v3688 = vpop.f32.mrb[0].mxu0
      %v3689 = vadd.f32 0.0, %v3688
      %v3690 = vpop.f32.mrb[0].mxu0
      %3691 = vmatprep.mubr.bf16.mxu0 0
      %3692 = vmatmul.mubr.bf16.gmra.mrb[0].mxu0 %v3495
      %v3693 = vpop.f32.mrb[0].mxu0
      %v3694 = vadd.f32 0.0, %v3693
      %v3695 = vpop.f32.mrb[0].mxu0
      %v3696 = vpop.f32.mrb[0].mxu0
      %v3697 = vadd.f32 0.0, %v3696
      %v3698 = vpop.f32.mrb[0].mxu0
      %3699 = vmatprep.mubr.bf16.mxu0 0
      %3700 = vmatmul.mubr.bf16.gmra.mrb[0].mxu0 %v3496
      %v3701 = vpop.f32.mrb[0].mxu0
      %v3702 = vadd.f32 0.0, %v3701
      %v3703 = vpop.f32.mrb[0].mxu0
      %v3704 = vpop.f32.mrb[0].mxu0
      %v3705 = vadd.f32 0.0, %v3704
      %v3706 = vpop.f32.mrb[0].mxu0
      %3707 = vmatprep.mubr.bf16.mxu0 0
      %3708 = vmatmul.mubr.bf16.gmra.mrb[0].mxu0 %v3497
      %v3709 = vpop.f32.mrb[0].mxu0
      %v3710 = vadd.f32 0.0, %v3709
      %v3711 = vpop.f32.mrb[0].mxu0
      %v3712 = vpop.f32.mrb[0].mxu0
      %v3713 = vadd.f32 0.0, %v3712
      %v3714 = vpop.f32.mrb[0].mxu0
      %3715 = vmatprep.mubr.bf16.mxu0 0
      %3716 = vmatmul.mubr.bf16.gmra.mrb[0].mxu0 %v3498
      %v3717 = vpop.f32.mrb[0].mxu0
      %v3718 = vadd.f32 0.0, %v3717
      %v3719 = vpop.f32.mrb[0].mxu0
      %v3720 = vpop.f32.mrb[0].mxu0
      %v3721 = vadd.f32 0.0, %v3720
      %v3722 = vpop.f32.mrb[0].mxu0
      %3723 = vdwg.mxu0
      %v3724 = vadd.f32 %v3335, %v3598
      %v3725 = vadd.f32 %v3336, %v3601
      %v3726 = vadd.f32 %v3337, %v3606
      %v3727 = vadd.f32 %v3338, %v3609
      %v3728 = vadd.f32 %v3339, %v3614
      %v3729 = vadd.f32 %v3340, %v3617
      %v3730 = vadd.f32 %v3341, %v3622
      %v3731 = vadd.f32 %v3342, %v3625
      %v3732 = vadd.f32 %v3343, %v3630
      %v3733 = vadd.f32 %v3344, %v3633
      %v3734 = vadd.f32 %v3345, %v3638
      %v3735 = vadd.f32 %v3346, %v3641
      %v3736 = vadd.f32 %v3347, %v3646
      %v3737 = vadd.f32 %v3348, %v3649
      %v3738 = vadd.f32 %v3349, %v3654
      %v3739 = vadd.f32 %v3350, %v3657
      %v3740 = vadd.f32 %v3351, %v3662
      %v3741 = vadd.f32 %v3352, %v3665
      %v3742 = vadd.f32 %v3353, %v3670
      %v3743 = vadd.f32 %v3354, %v3673
      %v3744 = vadd.f32 %v3355, %v3678
      %v3745 = vadd.f32 %v3356, %v3681
      %v3746 = vadd.f32 %v3357, %v3686
      %v3747 = vadd.f32 %v3358, %v3689
      %v3748 = vadd.f32 %v3359, %v3694
      %v3749 = vadd.f32 %v3360, %v3697
      %v3750 = vadd.f32 %v3361, %v3702
      %v3751 = vadd.f32 %v3362, %v3705
      %v3752 = vadd.f32 %v3363, %v3710
      %v3753 = vadd.f32 %v3364, %v3713
      %v3754 = vadd.f32 %v3365, %v3718
      %v3755 = vadd.f32 %v3366, %v3721
      %v3756 = vld [vmem:[%s3370] sm:$0xf]
      %v3757 = vld [vmem:[%s3370 + $0x4] sm:$0xf]
      %v3758 = vld [vmem:[%s3370 + $0x8] sm:$0x1]
      %v3759 = vld [vmem:[%s3370 + $0xc] sm:$0xf]
      %v3760 = vld [vmem:[%s3370 + $0x10] sm:$0xf]
      %v3761 = vld [vmem:[%s3370 + $0x14] sm:$0x1]
      %v3762 = vld [vmem:[%s3370 + $0x18] sm:$0xf]
      %v3763 = vld [vmem:[%s3370 + $0x1c] sm:$0xf]
      %v3764 = vld [vmem:[%s3370 + $0x20] sm:$0x1]
      %v3765 = vld [vmem:[%s3370 + $0x24] sm:$0xf]
      %v3766 = vld [vmem:[%s3370 + $0x28] sm:$0xf]
      %v3767 = vld [vmem:[%s3370 + $0x2c] sm:$0x1]
      %v3768 = vld [vmem:[%s3370 + $0x30] sm:$0xf]
      %v3769 = vld [vmem:[%s3370 + $0x34] sm:$0xf]
      %v3770 = vld [vmem:[%s3370 + $0x38] sm:$0x1]
      %v3771 = vld [vmem:[%s3370 + $0x3c] sm:$0xf]
      %v3772 = vld [vmem:[%s3370 + $0x40] sm:$0xf]
      %v3773 = vld [vmem:[%s3370 + $0x44] sm:$0x1]
      %v3774 = vld [vmem:[%s3370 + $0x48] sm:$0xf]
      %v3775 = vld [vmem:[%s3370 + $0x4c] sm:$0xf]
      %v3776 = vld [vmem:[%s3370 + $0x50] sm:$0x1]
      %v3777 = vld [vmem:[%s3370 + $0x54] sm:$0xf]
      %v3778 = vld [vmem:[%s3370 + $0x58] sm:$0xf]
      %v3779 = vld [vmem:[%s3370 + $0x5c] sm:$0x1]
      %v3780 = vld [vmem:[%s3370 + $0x60] sm:$0xf]
      %v3781 = vld [vmem:[%s3370 + $0x64] sm:$0xf]
      %v3782 = vld [vmem:[%s3370 + $0x68] sm:$0x1]
      %v3783 = vld [vmem:[%s3370 + $0x6c] sm:$0xf]
      %v3784 = vld [vmem:[%s3370 + $0x70] sm:$0xf]
      %v3785 = vld [vmem:[%s3370 + $0x74] sm:$0x1]
      %v3786 = vld [vmem:[%s3370 + $0x78] sm:$0xf]
      %v3787 = vld [vmem:[%s3370 + $0x7c] sm:$0xf]
      %v3788 = vld [vmem:[%s3370 + $0x80] sm:$0x1]
      %v3789 = vld [vmem:[%s3370 + $0x84] sm:$0xf]
      %v3790 = vld [vmem:[%s3370 + $0x88] sm:$0xf]
      %v3791 = vld [vmem:[%s3370 + $0x8c] sm:$0x1]
      %v3792 = vld [vmem:[%s3370 + $0x90] sm:$0xf]
      %v3793 = vld [vmem:[%s3370 + $0x94] sm:$0xf]
      %v3794 = vld [vmem:[%s3370 + $0x98] sm:$0x1]
      %v3795 = vld [vmem:[%s3370 + $0x9c] sm:$0xf]
      %v3796 = vld [vmem:[%s3370 + $0xa0] sm:$0xf]
      %v3797 = vld [vmem:[%s3370 + $0xa4] sm:$0x1]
      %v3798 = vld [vmem:[%s3370 + $0xa8] sm:$0xf]
      %v3799 = vld [vmem:[%s3370 + $0xac] sm:$0xf]
      %v3800 = vld [vmem:[%s3370 + $0xb0] sm:$0x1]
      %v3801 = vld [vmem:[%s3370 + $0xb4] sm:$0xf]
      %v3802 = vld [vmem:[%s3370 + $0xb8] sm:$0xf]
      %v3803 = vld [vmem:[%s3370 + $0xbc] sm:$0x1]
      %v3805 = vshrl.u32 %v3756, 16
      %v3807 = vrot.slane %v3805, 4
      %v3808 = vshll.u32 %v3756, 16
      %v3810 = vrot.slane %v3808, 5
      %v3811 = vor.u32 %v3807, %v3810
      %v3812 = vrot.slane %v3811, 4
      %v3814 = vshll.u32 %v3757, 16
      %v3816 = vrot.slane %v3814, 5
      %v3817 = vsel %vm265, %v3812, %v3816
      %v3818 = vshrl.u32 %v3757, 16
      %v3820 = vrot.slane %v3818, 4
      %v3821 = vor.u32 %v3820, %v3816
      %v3822 = vrot.slane %v3821, 4
      %v3824 = vshll.u32 %v3758, 16
      %v3826 = vrot.slane %v3824, 5
      %v3827 = vsel %vm265, %v3822, %v3826
      %v3829 = vshrl.u32 %v3759, 16
      %v3831 = vrot.slane %v3829, 4
      %v3832 = vshll.u32 %v3759, 16
      %v3834 = vrot.slane %v3832, 5
      %v3835 = vor.u32 %v3831, %v3834
      %v3836 = vrot.slane %v3835, 4
      %v3838 = vshll.u32 %v3760, 16
      %v3840 = vrot.slane %v3838, 5
      %v3841 = vsel %vm265, %v3836, %v3840
      %v3842 = vshrl.u32 %v3760, 16
      %v3844 = vrot.slane %v3842, 4
      %v3845 = vor.u32 %v3844, %v3840
      %v3846 = vrot.slane %v3845, 4
      %v3848 = vshll.u32 %v3761, 16
      %v3850 = vrot.slane %v3848, 5
      %v3851 = vsel %vm265, %v3846, %v3850
      %v3853 = vshrl.u32 %v3762, 16
      %v3855 = vrot.slane %v3853, 4
      %v3856 = vshll.u32 %v3762, 16
      %v3858 = vrot.slane %v3856, 5
      %v3859 = vor.u32 %v3855, %v3858
      %v3860 = vrot.slane %v3859, 4
      %v3862 = vshll.u32 %v3763, 16
      %v3864 = vrot.slane %v3862, 5
      %v3865 = vsel %vm265, %v3860, %v3864
      %v3866 = vshrl.u32 %v3763, 16
      %v3868 = vrot.slane %v3866, 4
      %v3869 = vor.u32 %v3868, %v3864
      %v3870 = vrot.slane %v3869, 4
      %v3872 = vshll.u32 %v3764, 16
      %v3874 = vrot.slane %v3872, 5
      %v3875 = vsel %vm265, %v3870, %v3874
      %v3877 = vshrl.u32 %v3765, 16
      %v3879 = vrot.slane %v3877, 4
      %v3880 = vshll.u32 %v3765, 16
      %v3882 = vrot.slane %v3880, 5
      %v3883 = vor.u32 %v3879, %v3882
      %v3884 = vrot.slane %v3883, 4
      %v3886 = vshll.u32 %v3766, 16
      %v3888 = vrot.slane %v3886, 5
      %v3889 = vsel %vm265, %v3884, %v3888
      %v3890 = vshrl.u32 %v3766, 16
      %v3892 = vrot.slane %v3890, 4
      %v3893 = vor.u32 %v3892, %v3888
      %v3894 = vrot.slane %v3893, 4
      %v3896 = vshll.u32 %v3767, 16
      %v3898 = vrot.slane %v3896, 5
      %v3899 = vsel %vm265, %v3894, %v3898
      %v3901 = vshrl.u32 %v3768, 16
      %v3903 = vrot.slane %v3901, 4
      %v3904 = vshll.u32 %v3768, 16
      %v3906 = vrot.slane %v3904, 5
      %v3907 = vor.u32 %v3903, %v3906
      %v3908 = vrot.slane %v3907, 4
      %v3910 = vshll.u32 %v3769, 16
      %v3912 = vrot.slane %v3910, 5
      %v3913 = vsel %vm265, %v3908, %v3912
      %v3914 = vshrl.u32 %v3769, 16
      %v3916 = vrot.slane %v3914, 4
      %v3917 = vor.u32 %v3916, %v3912
      %v3918 = vrot.slane %v3917, 4
      %v3920 = vshll.u32 %v3770, 16
      %v3922 = vrot.slane %v3920, 5
      %v3923 = vsel %vm265, %v3918, %v3922
      %v3925 = vshrl.u32 %v3771, 16
      %v3927 = vrot.slane %v3925, 4
      %v3928 = vshll.u32 %v3771, 16
      %v3930 = vrot.slane %v3928, 5
      %v3931 = vor.u32 %v3927, %v3930
      %v3932 = vrot.slane %v3931, 4
      %v3934 = vshll.u32 %v3772, 16
      %v3936 = vrot.slane %v3934, 5
      %v3937 = vsel %vm265, %v3932, %v3936
      %v3938 = vshrl.u32 %v3772, 16
      %v3940 = vrot.slane %v3938, 4
      %v3941 = vor.u32 %v3940, %v3936
      %v3942 = vrot.slane %v3941, 4
      %v3944 = vshll.u32 %v3773, 16
      %v3946 = vrot.slane %v3944, 5
      %v3947 = vsel %vm265, %v3942, %v3946
      %v3949 = vshrl.u32 %v3774, 16
      %v3951 = vrot.slane %v3949, 4
      %v3952 = vshll.u32 %v3774, 16
      %v3954 = vrot.slane %v3952, 5
      %v3955 = vor.u32 %v3951, %v3954
      %v3956 = vrot.slane %v3955, 4
      %v3958 = vshll.u32 %v3775, 16
      %v3960 = vrot.slane %v3958, 5
      %v3961 = vsel %vm265, %v3956, %v3960
      %v3962 = vshrl.u32 %v3775, 16
      %v3964 = vrot.slane %v3962, 4
      %v3965 = vor.u32 %v3964, %v3960
      %v3966 = vrot.slane %v3965, 4
      %v3968 = vshll.u32 %v3776, 16
      %v3970 = vrot.slane %v3968, 5
      %v3971 = vsel %vm265, %v3966, %v3970
      %v3973 = vshrl.u32 %v3777, 16
      %v3975 = vrot.slane %v3973, 4
      %v3976 = vshll.u32 %v3777, 16
      %v3978 = vrot.slane %v3976, 5
      %v3979 = vor.u32 %v3975, %v3978
      %v3980 = vrot.slane %v3979, 4
      %v3982 = vshll.u32 %v3778, 16
      %v3984 = vrot.slane %v3982, 5
      %v3985 = vsel %vm265, %v3980, %v3984
      %v3986 = vshrl.u32 %v3778, 16
      %v3988 = vrot.slane %v3986, 4
      %v3989 = vor.u32 %v3988, %v3984
      %v3990 = vrot.slane %v3989, 4
      %v3992 = vshll.u32 %v3779, 16
      %v3994 = vrot.slane %v3992, 5
      %v3995 = vsel %vm265, %v3990, %v3994
      %v3997 = vshrl.u32 %v3780, 16
      %v3999 = vrot.slane %v3997, 4
      %v4000 = vshll.u32 %v3780, 16
      %v4002 = vrot.slane %v4000, 5
      %v4003 = vor.u32 %v3999, %v4002
      %v4004 = vrot.slane %v4003, 4
      %v4006 = vshll.u32 %v3781, 16
      %v4008 = vrot.slane %v4006, 5
      %v4009 = vsel %vm265, %v4004, %v4008
      %v4010 = vshrl.u32 %v3781, 16
      %v4012 = vrot.slane %v4010, 4
      %v4013 = vor.u32 %v4012, %v4008
      %v4014 = vrot.slane %v4013, 4
      %v4016 = vshll.u32 %v3782, 16
      %v4018 = vrot.slane %v4016, 5
      %v4019 = vsel %vm265, %v4014, %v4018
      %v4021 = vshrl.u32 %v3783, 16
      %v4023 = vrot.slane %v4021, 4
      %v4024 = vshll.u32 %v3783, 16
      %v4026 = vrot.slane %v4024, 5
      %v4027 = vor.u32 %v4023, %v4026
      %v4028 = vrot.slane %v4027, 4
      %v4030 = vshll.u32 %v3784, 16
      %v4032 = vrot.slane %v4030, 5
      %v4033 = vsel %vm265, %v4028, %v4032
      %v4034 = vshrl.u32 %v3784, 16
      %v4036 = vrot.slane %v4034, 4
      %v4037 = vor.u32 %v4036, %v4032
      %v4038 = vrot.slane %v4037, 4
      %v4040 = vshll.u32 %v3785, 16
      %v4042 = vrot.slane %v4040, 5
      %v4043 = vsel %vm265, %v4038, %v4042
      %v4045 = vshrl.u32 %v3786, 16
      %v4047 = vrot.slane %v4045, 4
      %v4048 = vshll.u32 %v3786, 16
      %v4050 = vrot.slane %v4048, 5
      %v4051 = vor.u32 %v4047, %v4050
      %v4052 = vrot.slane %v4051, 4
      %v4054 = vshll.u32 %v3787, 16
      %v4056 = vrot.slane %v4054, 5
      %v4057 = vsel %vm265, %v4052, %v4056
      %v4058 = vshrl.u32 %v3787, 16
      %v4060 = vrot.slane %v4058, 4
      %v4061 = vor.u32 %v4060, %v4056
      %v4062 = vrot.slane %v4061, 4
      %v4064 = vshll.u32 %v3788, 16
      %v4066 = vrot.slane %v4064, 5
      %v4067 = vsel %vm265, %v4062, %v4066
      %v4069 = vshrl.u32 %v3789, 16
      %v4071 = vrot.slane %v4069, 4
      %v4072 = vshll.u32 %v3789, 16
      %v4074 = vrot.slane %v4072, 5
      %v4075 = vor.u32 %v4071, %v4074
      %v4076 = vrot.slane %v4075, 4
      %v4078 = vshll.u32 %v3790, 16
      %v4080 = vrot.slane %v4078, 5
      %v4081 = vsel %vm265, %v4076, %v4080
      %v4082 = vshrl.u32 %v3790, 16
      %v4084 = vrot.slane %v4082, 4
      %v4085 = vor.u32 %v4084, %v4080
      %v4086 = vrot.slane %v4085, 4
      %v4088 = vshll.u32 %v3791, 16
      %v4090 = vrot.slane %v4088, 5
      %v4091 = vsel %vm265, %v4086, %v4090
      %v4093 = vshrl.u32 %v3792, 16
      %v4095 = vrot.slane %v4093, 4
      %v4096 = vshll.u32 %v3792, 16
      %v4098 = vrot.slane %v4096, 5
      %v4099 = vor.u32 %v4095, %v4098
      %v4100 = vrot.slane %v4099, 4
      %v4102 = vshll.u32 %v3793, 16
      %v4104 = vrot.slane %v4102, 5
      %v4105 = vsel %vm265, %v4100, %v4104
      %v4106 = vshrl.u32 %v3793, 16
      %v4108 = vrot.slane %v4106, 4
      %v4109 = vor.u32 %v4108, %v4104
      %v4110 = vrot.slane %v4109, 4
      %v4112 = vshll.u32 %v3794, 16
      %v4114 = vrot.slane %v4112, 5
      %v4115 = vsel %vm265, %v4110, %v4114
      %v4117 = vshrl.u32 %v3795, 16
      %v4119 = vrot.slane %v4117, 4
      %v4120 = vshll.u32 %v3795, 16
      %v4122 = vrot.slane %v4120, 5
      %v4123 = vor.u32 %v4119, %v4122
      %v4124 = vrot.slane %v4123, 4
      %v4126 = vshll.u32 %v3796, 16
      %v4128 = vrot.slane %v4126, 5
      %v4129 = vsel %vm265, %v4124, %v4128
      %v4130 = vshrl.u32 %v3796, 16
      %v4132 = vrot.slane %v4130, 4
      %v4133 = vor.u32 %v4132, %v4128
      %v4134 = vrot.slane %v4133, 4
      %v4136 = vshll.u32 %v3797, 16
      %v4138 = vrot.slane %v4136, 5
      %v4139 = vsel %vm265, %v4134, %v4138
      %v4141 = vshrl.u32 %v3798, 16
      %v4143 = vrot.slane %v4141, 4
      %v4144 = vshll.u32 %v3798, 16
      %v4146 = vrot.slane %v4144, 5
      %v4147 = vor.u32 %v4143, %v4146
      %v4148 = vrot.slane %v4147, 4
      %v4150 = vshll.u32 %v3799, 16
      %v4152 = vrot.slane %v4150, 5
      %v4153 = vsel %vm265, %v4148, %v4152
      %v4154 = vshrl.u32 %v3799, 16
      %v4156 = vrot.slane %v4154, 4
      %v4157 = vor.u32 %v4156, %v4152
      %v4158 = vrot.slane %v4157, 4
      %v4160 = vshll.u32 %v3800, 16
      %v4162 = vrot.slane %v4160, 5
      %v4163 = vsel %vm265, %v4158, %v4162
      %v4165 = vshrl.u32 %v3801, 16
      %v4167 = vrot.slane %v4165, 4
      %v4168 = vshll.u32 %v3801, 16
      %v4170 = vrot.slane %v4168, 5
      %v4171 = vor.u32 %v4167, %v4170
      %v4172 = vrot.slane %v4171, 4
      %v4174 = vshll.u32 %v3802, 16
      %v4176 = vrot.slane %v4174, 5
      %v4177 = vsel %vm265, %v4172, %v4176
      %v4178 = vshrl.u32 %v3802, 16
      %v4180 = vrot.slane %v4178, 4
      %v4181 = vor.u32 %v4180, %v4176
      %v4182 = vrot.slane %v4181, 4
      %v4184 = vshll.u32 %v3803, 16
      %v4186 = vrot.slane %v4184, 5
      %v4187 = vsel %vm265, %v4182, %v4186
      %v4188 = vld [vmem:[%s1 + $0x1c0] sm:$0xf]
      %v4189 = vld [vmem:[%s1 + $0x1c4] sm:$0xf]
      %v4190 = vld [vmem:[%s1 + $0x1c8] sm:$0xf]
      %v4191 = vld [vmem:[%s1 + $0x1cc] sm:$0xf]
      %v4192 = vld [vmem:[%s1 + $0x1d0] sm:$0xf]
      %v4193 = vld [vmem:[%s1 + $0x1d4] sm:$0xf]
      %v4194 = vld [vmem:[%s1 + $0x1d8] sm:$0xf]
      %v4195 = vld [vmem:[%s1 + $0x1dc] sm:$0xf]
      %v4196 = vld [vmem:[%s1 + $0x1e0] sm:$0xf]
      %v4197 = vld [vmem:[%s1 + $0x1e4] sm:$0xf]
      %v4198 = vld [vmem:[%s1 + $0x1e8] sm:$0xf]
      %v4199 = vld [vmem:[%s1 + $0x1ec] sm:$0xf]
      %v4200 = vld [vmem:[%s1 + $0x1f0] sm:$0xf]
      %v4201 = vld [vmem:[%s1 + $0x1f4] sm:$0xf]
      %v4202 = vld [vmem:[%s1 + $0x1f8] sm:$0xf]
      %v4203 = vld [vmem:[%s1 + $0x1fc] sm:$0xf]
      %v4204 = vunpack.c.l.b16 %v3817
      %v4205 = vunpack.c.l.b16 %v3827
      %v4206 = vunpack.c.l.b16 %v3841
      %v4207 = vunpack.c.l.b16 %v3851
      %v4208 = vunpack.c.l.b16 %v3865
      %v4209 = vunpack.c.l.b16 %v3875
      %v4210 = vunpack.c.l.b16 %v3889
      %v4211 = vunpack.c.l.b16 %v3899
      %v4212 = vunpack.c.l.b16 %v3913
      %v4213 = vunpack.c.l.b16 %v3923
      %v4214 = vunpack.c.l.b16 %v3937
      %v4215 = vunpack.c.l.b16 %v3947
      %v4216 = vunpack.c.l.b16 %v3961
      %v4217 = vunpack.c.l.b16 %v3971
      %v4218 = vunpack.c.l.b16 %v3985
      %v4219 = vunpack.c.l.b16 %v3995
      %v4220 = vunpack.c.l.b16 %v4009
      %v4221 = vunpack.c.l.b16 %v4019
      %v4222 = vunpack.c.l.b16 %v4033
      %v4223 = vunpack.c.l.b16 %v4043
      %v4224 = vunpack.c.l.b16 %v4057
      %v4225 = vunpack.c.l.b16 %v4067
      %v4226 = vunpack.c.l.b16 %v4081
      %v4227 = vunpack.c.l.b16 %v4091
      %v4228 = vunpack.c.l.b16 %v4105
      %v4229 = vunpack.c.l.b16 %v4115
      %v4230 = vunpack.c.l.b16 %v4129
      %v4231 = vunpack.c.l.b16 %v4139
      %v4232 = vunpack.c.l.b16 %v4153
      %v4233 = vunpack.c.l.b16 %v4163
      %v4234 = vunpack.c.l.b16 %v4177
      %v4235 = vunpack.c.l.b16 %v4187
      %v4236 = vpack.c.b16 %v4205, %v4204
      %v4237 = vpack.c.b16 %v4207, %v4206
      %v4238 = vpack.c.b16 %v4209, %v4208
      %v4239 = vpack.c.b16 %v4211, %v4210
      %v4240 = vpack.c.b16 %v4213, %v4212
      %v4241 = vpack.c.b16 %v4215, %v4214
      %v4242 = vpack.c.b16 %v4217, %v4216
      %v4243 = vpack.c.b16 %v4219, %v4218
      %v4244 = vpack.c.b16 %v4221, %v4220
      %v4245 = vpack.c.b16 %v4223, %v4222
      %v4246 = vpack.c.b16 %v4225, %v4224
      %v4247 = vpack.c.b16 %v4227, %v4226
      %v4248 = vpack.c.b16 %v4229, %v4228
      %v4249 = vpack.c.b16 %v4231, %v4230
      %v4250 = vpack.c.b16 %v4233, %v4232
      %v4251 = vpack.c.b16 %v4235, %v4234
      %v4284 = vunpack.c.l.b16 %v4188
      %v4285 = vunpack.c.l.b16 %v4189
      %v4286 = vunpack.c.l.b16 %v4190
      %v4287 = vunpack.c.l.b16 %v4191
      %v4288 = vunpack.c.l.b16 %v4192
      %v4289 = vunpack.c.l.b16 %v4193
      %v4290 = vunpack.c.l.b16 %v4194
      %v4291 = vunpack.c.l.b16 %v4195
      %v4292 = vunpack.c.l.b16 %v4196
      %v4293 = vunpack.c.l.b16 %v4197
      %v4294 = vunpack.c.l.b16 %v4198
      %v4295 = vunpack.c.l.b16 %v4199
      %v4296 = vunpack.c.l.b16 %v4200
      %v4297 = vunpack.c.l.b16 %v4201
      %v4298 = vunpack.c.l.b16 %v4202
      %v4299 = vunpack.c.l.b16 %v4203
      %v4300 = vpack.c.b16 %v4285, %v4284
      %v4301 = vpack.c.b16 %v4287, %v4286
      %v4302 = vpack.c.b16 %v4289, %v4288
      %v4303 = vpack.c.b16 %v4291, %v4290
      %v4304 = vpack.c.b16 %v4293, %v4292
      %v4305 = vpack.c.b16 %v4295, %v4294
      %v4306 = vpack.c.b16 %v4297, %v4296
      %v4307 = vpack.c.b16 %v4299, %v4298
      %4316 = vmatprep.subr.bf16.mxu0 0
      %4317 = vmatpush1.bf16.msra.mxu0 %v4300
      %4318 = vmatprep.subr.bf16.mxu0 0
      %4319 = vmatpush1.bf16.msra.mxu0 %v4301
      %4320 = vmatprep.subr.bf16.mxu0 0
      %4321 = vmatpush1.bf16.msra.mxu0 %v4302
      %4322 = vmatprep.subr.bf16.mxu0 0
      %4323 = vmatpush1.bf16.msra.mxu0 %v4303
      %4324 = vmatprep.subr.bf16.mxu0 0
      %4325 = vmatpush1.bf16.msra.mxu0 %v4304
      %4326 = vmatprep.subr.bf16.mxu0 0
      %4327 = vmatpush1.bf16.msra.mxu0 %v4305
      %4328 = vmatprep.subr.bf16.mxu0 0
      %4329 = vmatpush1.bf16.msra.mxu0 %v4306
      %4330 = vmatprep.subr.bf16.mxu0 0
      %4331 = vmatpush1.bf16.msra.mxu0 %v4307
      %4332 = vmatprep.subr.bf16.mxu0 0
      %4333 = vmatpush1.bf16.msra.mxu0 0
      %4334 = vmatprep.subr.bf16.mxu0 0
      %4335 = vmatpush1.bf16.msra.mxu0 0
      %4336 = vmatprep.subr.bf16.mxu0 0
      %4337 = vmatpush1.bf16.msra.mxu0 0
      %4338 = vmatprep.subr.bf16.mxu0 0
      %4339 = vmatpush1.bf16.msra.mxu0 0
      %4340 = vmatprep.subr.bf16.mxu0 0
      %4341 = vmatpush1.bf16.msra.mxu0 0
      %4342 = vmatprep.subr.bf16.mxu0 0
      %4343 = vmatpush1.bf16.msra.mxu0 0
      %4344 = vmatprep.subr.bf16.mxu0 0
      %4345 = vmatpush1.bf16.msra.mxu0 0
      %4346 = vmatprep.subr.bf16.mxu0 0
      %4347 = vmatpush1.bf16.msra.mxu0 0
      %4348 = vmatprep.mubr.bf16.mxu0 0
      %4349 = vmatmul.mubr.bf16.gmra.mrb[0].mxu0 %v4236
      %v4350 = vpop.f32.mrb[0].mxu0
      %v4351 = vadd.f32 0.0, %v4350
      %v4352 = vpop.f32.mrb[0].mxu0
      %v4353 = vpop.f32.mrb[0].mxu0
      %v4354 = vadd.f32 0.0, %v4353
      %v4355 = vpop.f32.mrb[0].mxu0
      %4356 = vmatprep.mubr.bf16.mxu0 0
      %4357 = vmatmul.mubr.bf16.gmra.mrb[0].mxu0 %v4237
      %v4358 = vpop.f32.mrb[0].mxu0
      %v4359 = vadd.f32 0.0, %v4358
      %v4360 = vpop.f32.mrb[0].mxu0
      %v4361 = vpop.f32.mrb[0].mxu0
      %v4362 = vadd.f32 0.0, %v4361
      %v4363 = vpop.f32.mrb[0].mxu0
      %4364 = vmatprep.mubr.bf16.mxu0 0
      %4365 = vmatmul.mubr.bf16.gmra.mrb[0].mxu0 %v4238
      %v4366 = vpop.f32.mrb[0].mxu0
      %v4367 = vadd.f32 0.0, %v4366
      %v4368 = vpop.f32.mrb[0].mxu0
      %v4369 = vpop.f32.mrb[0].mxu0
      %v4370 = vadd.f32 0.0, %v4369
      %v4371 = vpop.f32.mrb[0].mxu0
      %4372 = vmatprep.mubr.bf16.mxu0 0
      %4373 = vmatmul.mubr.bf16.gmra.mrb[0].mxu0 %v4239
      %v4374 = vpop.f32.mrb[0].mxu0
      %v4375 = vadd.f32 0.0, %v4374
      %v4376 = vpop.f32.mrb[0].mxu0
      %v4377 = vpop.f32.mrb[0].mxu0
      %v4378 = vadd.f32 0.0, %v4377
      %v4379 = vpop.f32.mrb[0].mxu0
      %4380 = vmatprep.mubr.bf16.mxu0 0
      %4381 = vmatmul.mubr.bf16.gmra.mrb[0].mxu0 %v4240
      %v4382 = vpop.f32.mrb[0].mxu0
      %v4383 = vadd.f32 0.0, %v4382
      %v4384 = vpop.f32.mrb[0].mxu0
      %v4385 = vpop.f32.mrb[0].mxu0
      %v4386 = vadd.f32 0.0, %v4385
      %v4387 = vpop.f32.mrb[0].mxu0
      %4388 = vmatprep.mubr.bf16.mxu0 0
      %4389 = vmatmul.mubr.bf16.gmra.mrb[0].mxu0 %v4241
      %v4390 = vpop.f32.mrb[0].mxu0
      %v4391 = vadd.f32 0.0, %v4390
      %v4392 = vpop.f32.mrb[0].mxu0
      %v4393 = vpop.f32.mrb[0].mxu0
      %v4394 = vadd.f32 0.0, %v4393
      %v4395 = vpop.f32.mrb[0].mxu0
      %4396 = vmatprep.mubr.bf16.mxu0 0
      %4397 = vmatmul.mubr.bf16.gmra.mrb[0].mxu0 %v4242
      %v4398 = vpop.f32.mrb[0].mxu0
      %v4399 = vadd.f32 0.0, %v4398
      %v4400 = vpop.f32.mrb[0].mxu0
      %v4401 = vpop.f32.mrb[0].mxu0
      %v4402 = vadd.f32 0.0, %v4401
      %v4403 = vpop.f32.mrb[0].mxu0
      %4404 = vmatprep.mubr.bf16.mxu0 0
      %4405 = vmatmul.mubr.bf16.gmra.mrb[0].mxu0 %v4243
      %v4406 = vpop.f32.mrb[0].mxu0
      %v4407 = vadd.f32 0.0, %v4406
      %v4408 = vpop.f32.mrb[0].mxu0
      %v4409 = vpop.f32.mrb[0].mxu0
      %v4410 = vadd.f32 0.0, %v4409
      %v4411 = vpop.f32.mrb[0].mxu0
      %4412 = vmatprep.mubr.bf16.mxu0 0
      %4413 = vmatmul.mubr.bf16.gmra.mrb[0].mxu0 %v4244
      %v4414 = vpop.f32.mrb[0].mxu0
      %v4415 = vadd.f32 0.0, %v4414
      %v4416 = vpop.f32.mrb[0].mxu0
      %v4417 = vpop.f32.mrb[0].mxu0
      %v4418 = vadd.f32 0.0, %v4417
      %v4419 = vpop.f32.mrb[0].mxu0
      %4420 = vmatprep.mubr.bf16.mxu0 0
      %4421 = vmatmul.mubr.bf16.gmra.mrb[0].mxu0 %v4245
      %v4422 = vpop.f32.mrb[0].mxu0
      %v4423 = vadd.f32 0.0, %v4422
      %v4424 = vpop.f32.mrb[0].mxu0
      %v4425 = vpop.f32.mrb[0].mxu0
      %v4426 = vadd.f32 0.0, %v4425
      %v4427 = vpop.f32.mrb[0].mxu0
      %4428 = vmatprep.mubr.bf16.mxu0 0
      %4429 = vmatmul.mubr.bf16.gmra.mrb[0].mxu0 %v4246
      %v4430 = vpop.f32.mrb[0].mxu0
      %v4431 = vadd.f32 0.0, %v4430
      %v4432 = vpop.f32.mrb[0].mxu0
      %v4433 = vpop.f32.mrb[0].mxu0
      %v4434 = vadd.f32 0.0, %v4433
      %v4435 = vpop.f32.mrb[0].mxu0
      %4436 = vmatprep.mubr.bf16.mxu0 0
      %4437 = vmatmul.mubr.bf16.gmra.mrb[0].mxu0 %v4247
      %v4438 = vpop.f32.mrb[0].mxu0
      %v4439 = vadd.f32 0.0, %v4438
      %v4440 = vpop.f32.mrb[0].mxu0
      %v4441 = vpop.f32.mrb[0].mxu0
      %v4442 = vadd.f32 0.0, %v4441
      %v4443 = vpop.f32.mrb[0].mxu0
      %4444 = vmatprep.mubr.bf16.mxu0 0
      %4445 = vmatmul.mubr.bf16.gmra.mrb[0].mxu0 %v4248
      %v4446 = vpop.f32.mrb[0].mxu0
      %v4447 = vadd.f32 0.0, %v4446
      %v4448 = vpop.f32.mrb[0].mxu0
      %v4449 = vpop.f32.mrb[0].mxu0
      %v4450 = vadd.f32 0.0, %v4449
      %v4451 = vpop.f32.mrb[0].mxu0
      %4452 = vmatprep.mubr.bf16.mxu0 0
      %4453 = vmatmul.mubr.bf16.gmra.mrb[0].mxu0 %v4249
      %v4454 = vpop.f32.mrb[0].mxu0
      %v4455 = vadd.f32 0.0, %v4454
      %v4456 = vpop.f32.mrb[0].mxu0
      %v4457 = vpop.f32.mrb[0].mxu0
      %v4458 = vadd.f32 0.0, %v4457
      %v4459 = vpop.f32.mrb[0].mxu0
      %4460 = vmatprep.mubr.bf16.mxu0 0
      %4461 = vmatmul.mubr.bf16.gmra.mrb[0].mxu0 %v4250
      %v4462 = vpop.f32.mrb[0].mxu0
      %v4463 = vadd.f32 0.0, %v4462
      %v4464 = vpop.f32.mrb[0].mxu0
      %v4465 = vpop.f32.mrb[0].mxu0
      %v4466 = vadd.f32 0.0, %v4465
      %v4467 = vpop.f32.mrb[0].mxu0
      %4468 = vmatprep.mubr.bf16.mxu0 0
      %4469 = vmatmul.mubr.bf16.gmra.mrb[0].mxu0 %v4251
      %v4470 = vpop.f32.mrb[0].mxu0
      %v4471 = vadd.f32 0.0, %v4470
      %v4472 = vpop.f32.mrb[0].mxu0
      %v4473 = vpop.f32.mrb[0].mxu0
      %v4474 = vadd.f32 0.0, %v4473
      %v4475 = vpop.f32.mrb[0].mxu0
      %4476 = vdwg.mxu0
      %v4477 = vadd.f32 %v3724, %v4351
      %v4478 = vadd.f32 %v3725, %v4354
      %v4479 = vadd.f32 %v3726, %v4359
      %v4480 = vadd.f32 %v3727, %v4362
      %v4481 = vadd.f32 %v3728, %v4367
      %v4482 = vadd.f32 %v3729, %v4370
      %v4483 = vadd.f32 %v3730, %v4375
      %v4484 = vadd.f32 %v3731, %v4378
      %v4485 = vadd.f32 %v3732, %v4383
      %v4486 = vadd.f32 %v3733, %v4386
      %v4487 = vadd.f32 %v3734, %v4391
      %v4488 = vadd.f32 %v3735, %v4394
      %v4489 = vadd.f32 %v3736, %v4399
      %v4490 = vadd.f32 %v3737, %v4402
      %v4491 = vadd.f32 %v3738, %v4407
      %v4492 = vadd.f32 %v3739, %v4410
      %v4493 = vadd.f32 %v3740, %v4415
      %v4494 = vadd.f32 %v3741, %v4418
      %v4495 = vadd.f32 %v3742, %v4423
      %v4496 = vadd.f32 %v3743, %v4426
      %v4497 = vadd.f32 %v3744, %v4431
      %v4498 = vadd.f32 %v3745, %v4434
      %v4499 = vadd.f32 %v3746, %v4439
      %v4500 = vadd.f32 %v3747, %v4442
      %v4501 = vadd.f32 %v3748, %v4447
      %v4502 = vadd.f32 %v3749, %v4450
      %v4503 = vadd.f32 %v3750, %v4455
      %v4504 = vadd.f32 %v3751, %v4458
      %v4505 = vadd.f32 %v3752, %v4463
      %v4506 = vadd.f32 %v3753, %v4466
      %v4507 = vadd.f32 %v3754, %v4471
      %v4508 = vadd.f32 %v3755, %v4474
      %v4509 = vld [vmem:[%s3370] sm:$0xe]
      %v4510 = vld [vmem:[%s3370 + $0xc] sm:$0xe]
      %v4511 = vld [vmem:[%s3370 + $0x18] sm:$0xe]
      %v4512 = vld [vmem:[%s3370 + $0x24] sm:$0xe]
      %v4513 = vld [vmem:[%s3370 + $0x30] sm:$0xe]
      %v4514 = vld [vmem:[%s3370 + $0x3c] sm:$0xe]
      %v4515 = vld [vmem:[%s3370 + $0x48] sm:$0xe]
      %v4516 = vld [vmem:[%s3370 + $0x54] sm:$0xe]
      %v4517 = vld [vmem:[%s3370 + $0x60] sm:$0xe]
      %v4518 = vld [vmem:[%s3370 + $0x6c] sm:$0xe]
      %v4519 = vld [vmem:[%s3370 + $0x78] sm:$0xe]
      %v4520 = vld [vmem:[%s3370 + $0x84] sm:$0xe]
      %v4521 = vld [vmem:[%s3370 + $0x90] sm:$0xe]
      %v4522 = vld [vmem:[%s3370 + $0x9c] sm:$0xe]
      %v4523 = vld [vmem:[%s3370 + $0xa8] sm:$0xe]
      %v4524 = vld [vmem:[%s3370 + $0xb4] sm:$0xe]
      %v4573 = vrot.slane %v4509, 5
      %v4574 = vrot.slane %v4573, 4
      %v4575 = vrot.slane %v3757, 5
      %v4576 = vsel %vm1294, %v4574, %v4575
      %v4577 = vrot.slane %v4575, 4
      %v4578 = vrot.slane %v3758, 5
      %v4579 = vsel %vm1294, %v4577, %v4578
      %v4580 = vrot.slane %v4510, 5
      %v4581 = vrot.slane %v4580, 4
      %v4582 = vrot.slane %v3760, 5
      %v4583 = vsel %vm1294, %v4581, %v4582
      %v4584 = vrot.slane %v4582, 4
      %v4585 = vrot.slane %v3761, 5
      %v4586 = vsel %vm1294, %v4584, %v4585
      %v4587 = vrot.slane %v4511, 5
      %v4588 = vrot.slane %v4587, 4
      %v4589 = vrot.slane %v3763, 5
      %v4590 = vsel %vm1294, %v4588, %v4589
      %v4591 = vrot.slane %v4589, 4
      %v4592 = vrot.slane %v3764, 5
      %v4593 = vsel %vm1294, %v4591, %v4592
      %v4594 = vrot.slane %v4512, 5
      %v4595 = vrot.slane %v4594, 4
      %v4596 = vrot.slane %v3766, 5
      %v4597 = vsel %vm1294, %v4595, %v4596
      %v4598 = vrot.slane %v4596, 4
      %v4599 = vrot.slane %v3767, 5
      %v4600 = vsel %vm1294, %v4598, %v4599
      %v4601 = vrot.slane %v4513, 5
      %v4602 = vrot.slane %v4601, 4
      %v4603 = vrot.slane %v3769, 5
      %v4604 = vsel %vm1294, %v4602, %v4603
      %v4605 = vrot.slane %v4603, 4
      %v4606 = vrot.slane %v3770, 5
      %v4607 = vsel %vm1294, %v4605, %v4606
      %v4608 = vrot.slane %v4514, 5
      %v4609 = vrot.slane %v4608, 4
      %v4610 = vrot.slane %v3772, 5
      %v4611 = vsel %vm1294, %v4609, %v4610
      %v4612 = vrot.slane %v4610, 4
      %v4613 = vrot.slane %v3773, 5
      %v4614 = vsel %vm1294, %v4612, %v4613
      %v4615 = vrot.slane %v4515, 5
      %v4616 = vrot.slane %v4615, 4
      %v4617 = vrot.slane %v3775, 5
      %v4618 = vsel %vm1294, %v4616, %v4617
      %v4619 = vrot.slane %v4617, 4
      %v4620 = vrot.slane %v3776, 5
      %v4621 = vsel %vm1294, %v4619, %v4620
      %v4622 = vrot.slane %v4516, 5
      %v4623 = vrot.slane %v4622, 4
      %v4624 = vrot.slane %v3778, 5
      %v4625 = vsel %vm1294, %v4623, %v4624
      %v4626 = vrot.slane %v4624, 4
      %v4627 = vrot.slane %v3779, 5
      %v4628 = vsel %vm1294, %v4626, %v4627
      %v4629 = vrot.slane %v4517, 5
      %v4630 = vrot.slane %v4629, 4
      %v4631 = vrot.slane %v3781, 5
      %v4632 = vsel %vm1294, %v4630, %v4631
      %v4633 = vrot.slane %v4631, 4
      %v4634 = vrot.slane %v3782, 5
      %v4635 = vsel %vm1294, %v4633, %v4634
      %v4636 = vrot.slane %v4518, 5
      %v4637 = vrot.slane %v4636, 4
      %v4638 = vrot.slane %v3784, 5
      %v4639 = vsel %vm1294, %v4637, %v4638
      %v4640 = vrot.slane %v4638, 4
      %v4641 = vrot.slane %v3785, 5
      %v4642 = vsel %vm1294, %v4640, %v4641
      %v4643 = vrot.slane %v4519, 5
      %v4644 = vrot.slane %v4643, 4
      %v4645 = vrot.slane %v3787, 5
      %v4646 = vsel %vm1294, %v4644, %v4645
      %v4647 = vrot.slane %v4645, 4
      %v4648 = vrot.slane %v3788, 5
      %v4649 = vsel %vm1294, %v4647, %v4648
      %v4650 = vrot.slane %v4520, 5
      %v4651 = vrot.slane %v4650, 4
      %v4652 = vrot.slane %v3790, 5
      %v4653 = vsel %vm1294, %v4651, %v4652
      %v4654 = vrot.slane %v4652, 4
      %v4655 = vrot.slane %v3791, 5
      %v4656 = vsel %vm1294, %v4654, %v4655
      %v4657 = vrot.slane %v4521, 5
      %v4658 = vrot.slane %v4657, 4
      %v4659 = vrot.slane %v3793, 5
      %v4660 = vsel %vm1294, %v4658, %v4659
      %v4661 = vrot.slane %v4659, 4
      %v4662 = vrot.slane %v3794, 5
      %v4663 = vsel %vm1294, %v4661, %v4662
      %v4664 = vrot.slane %v4522, 5
      %v4665 = vrot.slane %v4664, 4
      %v4666 = vrot.slane %v3796, 5
      %v4667 = vsel %vm1294, %v4665, %v4666
      %v4668 = vrot.slane %v4666, 4
      %v4669 = vrot.slane %v3797, 5
      %v4670 = vsel %vm1294, %v4668, %v4669
      %v4671 = vrot.slane %v4523, 5
      %v4672 = vrot.slane %v4671, 4
      %v4673 = vrot.slane %v3799, 5
      %v4674 = vsel %vm1294, %v4672, %v4673
      %v4675 = vrot.slane %v4673, 4
      %v4676 = vrot.slane %v3800, 5
      %v4677 = vsel %vm1294, %v4675, %v4676
      %v4678 = vrot.slane %v4524, 5
      %v4679 = vrot.slane %v4678, 4
      %v4680 = vrot.slane %v3802, 5
      %v4681 = vsel %vm1294, %v4679, %v4680
      %v4682 = vrot.slane %v4680, 4
      %v4683 = vrot.slane %v3803, 5
      %v4684 = vsel %vm1294, %v4682, %v4683
      %v4685 = vld [vmem:[%s1 + $0x200] sm:$0xf]
      %v4686 = vld [vmem:[%s1 + $0x204] sm:$0xf]
      %v4687 = vld [vmem:[%s1 + $0x208] sm:$0xf]
      %v4688 = vld [vmem:[%s1 + $0x20c] sm:$0xf]
      %v4689 = vld [vmem:[%s1 + $0x210] sm:$0xf]
      %v4690 = vld [vmem:[%s1 + $0x214] sm:$0xf]
      %v4691 = vld [vmem:[%s1 + $0x218] sm:$0xf]
      %v4692 = vld [vmem:[%s1 + $0x21c] sm:$0xf]
      %v4693 = vld [vmem:[%s1 + $0x220] sm:$0xf]
      %v4694 = vld [vmem:[%s1 + $0x224] sm:$0xf]
      %v4695 = vld [vmem:[%s1 + $0x228] sm:$0xf]
      %v4696 = vld [vmem:[%s1 + $0x22c] sm:$0xf]
      %v4697 = vld [vmem:[%s1 + $0x230] sm:$0xf]
      %v4698 = vld [vmem:[%s1 + $0x234] sm:$0xf]
      %v4699 = vld [vmem:[%s1 + $0x238] sm:$0xf]
      %v4700 = vld [vmem:[%s1 + $0x23c] sm:$0xf]
      %v4701 = vunpack.c.l.b16 %v4576
      %v4702 = vunpack.c.l.b16 %v4579
      %v4703 = vunpack.c.l.b16 %v4583
      %v4704 = vunpack.c.l.b16 %v4586
      %v4705 = vunpack.c.l.b16 %v4590
      %v4706 = vunpack.c.l.b16 %v4593
      %v4707 = vunpack.c.l.b16 %v4597
      %v4708 = vunpack.c.l.b16 %v4600
      %v4709 = vunpack.c.l.b16 %v4604
      %v4710 = vunpack.c.l.b16 %v4607
      %v4711 = vunpack.c.l.b16 %v4611
      %v4712 = vunpack.c.l.b16 %v4614
      %v4713 = vunpack.c.l.b16 %v4618
      %v4714 = vunpack.c.l.b16 %v4621
      %v4715 = vunpack.c.l.b16 %v4625
      %v4716 = vunpack.c.l.b16 %v4628
      %v4717 = vunpack.c.l.b16 %v4632
      %v4718 = vunpack.c.l.b16 %v4635
      %v4719 = vunpack.c.l.b16 %v4639
      %v4720 = vunpack.c.l.b16 %v4642
      %v4721 = vunpack.c.l.b16 %v4646
      %v4722 = vunpack.c.l.b16 %v4649
      %v4723 = vunpack.c.l.b16 %v4653
      %v4724 = vunpack.c.l.b16 %v4656
      %v4725 = vunpack.c.l.b16 %v4660
      %v4726 = vunpack.c.l.b16 %v4663
      %v4727 = vunpack.c.l.b16 %v4667
      %v4728 = vunpack.c.l.b16 %v4670
      %v4729 = vunpack.c.l.b16 %v4674
      %v4730 = vunpack.c.l.b16 %v4677
      %v4731 = vunpack.c.l.b16 %v4681
      %v4732 = vunpack.c.l.b16 %v4684
      %v4733 = vpack.c.b16 %v4702, %v4701
      %v4734 = vpack.c.b16 %v4704, %v4703
      %v4735 = vpack.c.b16 %v4706, %v4705
      %v4736 = vpack.c.b16 %v4708, %v4707
      %v4737 = vpack.c.b16 %v4710, %v4709
      %v4738 = vpack.c.b16 %v4712, %v4711
      %v4739 = vpack.c.b16 %v4714, %v4713
      %v4740 = vpack.c.b16 %v4716, %v4715
      %v4741 = vpack.c.b16 %v4718, %v4717
      %v4742 = vpack.c.b16 %v4720, %v4719
      %v4743 = vpack.c.b16 %v4722, %v4721
      %v4744 = vpack.c.b16 %v4724, %v4723
      %v4745 = vpack.c.b16 %v4726, %v4725
      %v4746 = vpack.c.b16 %v4728, %v4727
      %v4747 = vpack.c.b16 %v4730, %v4729
      %v4748 = vpack.c.b16 %v4732, %v4731
      %v4781 = vunpack.c.l.b16 %v4685
      %v4782 = vunpack.c.l.b16 %v4686
      %v4783 = vunpack.c.l.b16 %v4687
      %v4784 = vunpack.c.l.b16 %v4688
      %v4785 = vunpack.c.l.b16 %v4689
      %v4786 = vunpack.c.l.b16 %v4690
      %v4787 = vunpack.c.l.b16 %v4691
      %v4788 = vunpack.c.l.b16 %v4692
      %v4789 = vunpack.c.l.b16 %v4693
      %v4790 = vunpack.c.l.b16 %v4694
      %v4791 = vunpack.c.l.b16 %v4695
      %v4792 = vunpack.c.l.b16 %v4696
      %v4793 = vunpack.c.l.b16 %v4697
      %v4794 = vunpack.c.l.b16 %v4698
      %v4795 = vunpack.c.l.b16 %v4699
      %v4796 = vunpack.c.l.b16 %v4700
      %v4797 = vpack.c.b16 %v4782, %v4781
      %v4798 = vpack.c.b16 %v4784, %v4783
      %v4799 = vpack.c.b16 %v4786, %v4785
      %v4800 = vpack.c.b16 %v4788, %v4787
      %v4801 = vpack.c.b16 %v4790, %v4789
      %v4802 = vpack.c.b16 %v4792, %v4791
      %v4803 = vpack.c.b16 %v4794, %v4793
      %v4804 = vpack.c.b16 %v4796, %v4795
      %4813 = vmatprep.subr.bf16.mxu0 0
      %4814 = vmatpush1.bf16.msra.mxu0 %v4797
      %4815 = vmatprep.subr.bf16.mxu0 0
      %4816 = vmatpush1.bf16.msra.mxu0 %v4798
      %4817 = vmatprep.subr.bf16.mxu0 0
      %4818 = vmatpush1.bf16.msra.mxu0 %v4799
      %4819 = vmatprep.subr.bf16.mxu0 0
      %4820 = vmatpush1.bf16.msra.mxu0 %v4800
      %4821 = vmatprep.subr.bf16.mxu0 0
      %4822 = vmatpush1.bf16.msra.mxu0 %v4801
      %4823 = vmatprep.subr.bf16.mxu0 0
      %4824 = vmatpush1.bf16.msra.mxu0 %v4802
      %4825 = vmatprep.subr.bf16.mxu0 0
      %4826 = vmatpush1.bf16.msra.mxu0 %v4803
      %4827 = vmatprep.subr.bf16.mxu0 0
      %4828 = vmatpush1.bf16.msra.mxu0 %v4804
      %4829 = vmatprep.subr.bf16.mxu0 0
      %4830 = vmatpush1.bf16.msra.mxu0 0
      %4831 = vmatprep.subr.bf16.mxu0 0
      %4832 = vmatpush1.bf16.msra.mxu0 0
      %4833 = vmatprep.subr.bf16.mxu0 0
      %4834 = vmatpush1.bf16.msra.mxu0 0
      %4835 = vmatprep.subr.bf16.mxu0 0
      %4836 = vmatpush1.bf16.msra.mxu0 0
      %4837 = vmatprep.subr.bf16.mxu0 0
      %4838 = vmatpush1.bf16.msra.mxu0 0
      %4839 = vmatprep.subr.bf16.mxu0 0
      %4840 = vmatpush1.bf16.msra.mxu0 0
      %4841 = vmatprep.subr.bf16.mxu0 0
      %4842 = vmatpush1.bf16.msra.mxu0 0
      %4843 = vmatprep.subr.bf16.mxu0 0
      %4844 = vmatpush1.bf16.msra.mxu0 0
      %4845 = vmatprep.mubr.bf16.mxu0 0
      %4846 = vmatmul.mubr.bf16.gmra.mrb[0].mxu0 %v4733
      %v4847 = vpop.f32.mrb[0].mxu0
      %v4848 = vadd.f32 0.0, %v4847
      %v4849 = vpop.f32.mrb[0].mxu0
      %v4850 = vpop.f32.mrb[0].mxu0
      %v4851 = vadd.f32 0.0, %v4850
      %v4852 = vpop.f32.mrb[0].mxu0
      %4853 = vmatprep.mubr.bf16.mxu0 0
      %4854 = vmatmul.mubr.bf16.gmra.mrb[0].mxu0 %v4734
      %v4855 = vpop.f32.mrb[0].mxu0
      %v4856 = vadd.f32 0.0, %v4855
      %v4857 = vpop.f32.mrb[0].mxu0
      %v4858 = vpop.f32.mrb[0].mxu0
      %v4859 = vadd.f32 0.0, %v4858
      %v4860 = vpop.f32.mrb[0].mxu0
      %4861 = vmatprep.mubr.bf16.mxu0 0
      %4862 = vmatmul.mubr.bf16.gmra.mrb[0].mxu0 %v4735
      %v4863 = vpop.f32.mrb[0].mxu0
      %v4864 = vadd.f32 0.0, %v4863
      %v4865 = vpop.f32.mrb[0].mxu0
      %v4866 = vpop.f32.mrb[0].mxu0
      %v4867 = vadd.f32 0.0, %v4866
      %v4868 = vpop.f32.mrb[0].mxu0
      %4869 = vmatprep.mubr.bf16.mxu0 0
      %4870 = vmatmul.mubr.bf16.gmra.mrb[0].mxu0 %v4736
      %v4871 = vpop.f32.mrb[0].mxu0
      %v4872 = vadd.f32 0.0, %v4871
      %v4873 = vpop.f32.mrb[0].mxu0
      %v4874 = vpop.f32.mrb[0].mxu0
      %v4875 = vadd.f32 0.0, %v4874
      %v4876 = vpop.f32.mrb[0].mxu0
      %4877 = vmatprep.mubr.bf16.mxu0 0
      %4878 = vmatmul.mubr.bf16.gmra.mrb[0].mxu0 %v4737
      %v4879 = vpop.f32.mrb[0].mxu0
      %v4880 = vadd.f32 0.0, %v4879
      %v4881 = vpop.f32.mrb[0].mxu0
      %v4882 = vpop.f32.mrb[0].mxu0
      %v4883 = vadd.f32 0.0, %v4882
      %v4884 = vpop.f32.mrb[0].mxu0
      %4885 = vmatprep.mubr.bf16.mxu0 0
      %4886 = vmatmul.mubr.bf16.gmra.mrb[0].mxu0 %v4738
      %v4887 = vpop.f32.mrb[0].mxu0
      %v4888 = vadd.f32 0.0, %v4887
      %v4889 = vpop.f32.mrb[0].mxu0
      %v4890 = vpop.f32.mrb[0].mxu0
      %v4891 = vadd.f32 0.0, %v4890
      %v4892 = vpop.f32.mrb[0].mxu0
      %4893 = vmatprep.mubr.bf16.mxu0 0
      %4894 = vmatmul.mubr.bf16.gmra.mrb[0].mxu0 %v4739
      %v4895 = vpop.f32.mrb[0].mxu0
      %v4896 = vadd.f32 0.0, %v4895
      %v4897 = vpop.f32.mrb[0].mxu0
      %v4898 = vpop.f32.mrb[0].mxu0
      %v4899 = vadd.f32 0.0, %v4898
      %v4900 = vpop.f32.mrb[0].mxu0
      %4901 = vmatprep.mubr.bf16.mxu0 0
      %4902 = vmatmul.mubr.bf16.gmra.mrb[0].mxu0 %v4740
      %v4903 = vpop.f32.mrb[0].mxu0
      %v4904 = vadd.f32 0.0, %v4903
      %v4905 = vpop.f32.mrb[0].mxu0
      %v4906 = vpop.f32.mrb[0].mxu0
      %v4907 = vadd.f32 0.0, %v4906
      %v4908 = vpop.f32.mrb[0].mxu0
      %4909 = vmatprep.mubr.bf16.mxu0 0
      %4910 = vmatmul.mubr.bf16.gmra.mrb[0].mxu0 %v4741
      %v4911 = vpop.f32.mrb[0].mxu0
      %v4912 = vadd.f32 0.0, %v4911
      %v4913 = vpop.f32.mrb[0].mxu0
      %v4914 = vpop.f32.mrb[0].mxu0
      %v4915 = vadd.f32 0.0, %v4914
      %v4916 = vpop.f32.mrb[0].mxu0
      %4917 = vmatprep.mubr.bf16.mxu0 0
      %4918 = vmatmul.mubr.bf16.gmra.mrb[0].mxu0 %v4742
      %v4919 = vpop.f32.mrb[0].mxu0
      %v4920 = vadd.f32 0.0, %v4919
      %v4921 = vpop.f32.mrb[0].mxu0
      %v4922 = vpop.f32.mrb[0].mxu0
      %v4923 = vadd.f32 0.0, %v4922
      %v4924 = vpop.f32.mrb[0].mxu0
      %4925 = vmatprep.mubr.bf16.mxu0 0
      %4926 = vmatmul.mubr.bf16.gmra.mrb[0].mxu0 %v4743
      %v4927 = vpop.f32.mrb[0].mxu0
      %v4928 = vadd.f32 0.0, %v4927
      %v4929 = vpop.f32.mrb[0].mxu0
      %v4930 = vpop.f32.mrb[0].mxu0
      %v4931 = vadd.f32 0.0, %v4930
      %v4932 = vpop.f32.mrb[0].mxu0
      %4933 = vmatprep.mubr.bf16.mxu0 0
      %4934 = vmatmul.mubr.bf16.gmra.mrb[0].mxu0 %v4744
      %v4935 = vpop.f32.mrb[0].mxu0
      %v4936 = vadd.f32 0.0, %v4935
      %v4937 = vpop.f32.mrb[0].mxu0
      %v4938 = vpop.f32.mrb[0].mxu0
      %v4939 = vadd.f32 0.0, %v4938
      %v4940 = vpop.f32.mrb[0].mxu0
      %4941 = vmatprep.mubr.bf16.mxu0 0
      %4942 = vmatmul.mubr.bf16.gmra.mrb[0].mxu0 %v4745
      %v4943 = vpop.f32.mrb[0].mxu0
      %v4944 = vadd.f32 0.0, %v4943
      %v4945 = vpop.f32.mrb[0].mxu0
      %v4946 = vpop.f32.mrb[0].mxu0
      %v4947 = vadd.f32 0.0, %v4946
      %v4948 = vpop.f32.mrb[0].mxu0
      %4949 = vmatprep.mubr.bf16.mxu0 0
      %4950 = vmatmul.mubr.bf16.gmra.mrb[0].mxu0 %v4746
      %v4951 = vpop.f32.mrb[0].mxu0
      %v4952 = vadd.f32 0.0, %v4951
      %v4953 = vpop.f32.mrb[0].mxu0
      %v4954 = vpop.f32.mrb[0].mxu0
      %v4955 = vadd.f32 0.0, %v4954
      %v4956 = vpop.f32.mrb[0].mxu0
      %4957 = vmatprep.mubr.bf16.mxu0 0
      %4958 = vmatmul.mubr.bf16.gmra.mrb[0].mxu0 %v4747
      %v4959 = vpop.f32.mrb[0].mxu0
      %v4960 = vadd.f32 0.0, %v4959
      %v4961 = vpop.f32.mrb[0].mxu0
      %v4962 = vpop.f32.mrb[0].mxu0
      %v4963 = vadd.f32 0.0, %v4962
      %v4964 = vpop.f32.mrb[0].mxu0
      %4965 = vmatprep.mubr.bf16.mxu0 0
      %4966 = vmatmul.mubr.bf16.gmra.mrb[0].mxu0 %v4748
      %v4967 = vpop.f32.mrb[0].mxu0
      %v4968 = vadd.f32 0.0, %v4967
      %v4969 = vpop.f32.mrb[0].mxu0
      %v4970 = vpop.f32.mrb[0].mxu0
      %v4971 = vadd.f32 0.0, %v4970
      %v4972 = vpop.f32.mrb[0].mxu0
      %4973 = vdwg.mxu0
      %v4974 = vadd.f32 %v4477, %v4848
      %v4975 = vadd.f32 %v4478, %v4851
      %v4976 = vadd.f32 %v4479, %v4856
      %v4977 = vadd.f32 %v4480, %v4859
      %v4978 = vadd.f32 %v4481, %v4864
      %v4979 = vadd.f32 %v4482, %v4867
      %v4980 = vadd.f32 %v4483, %v4872
      %v4981 = vadd.f32 %v4484, %v4875
      %v4982 = vadd.f32 %v4485, %v4880
      %v4983 = vadd.f32 %v4486, %v4883
      %v4984 = vadd.f32 %v4487, %v4888
      %v4985 = vadd.f32 %v4488, %v4891
      %v4986 = vadd.f32 %v4489, %v4896
      %v4987 = vadd.f32 %v4490, %v4899
      %v4988 = vadd.f32 %v4491, %v4904
      %v4989 = vadd.f32 %v4492, %v4907
      %v4990 = vadd.f32 %v4493, %v4912
      %v4991 = vadd.f32 %v4494, %v4915
      %v4992 = vadd.f32 %v4495, %v4920
      %v4993 = vadd.f32 %v4496, %v4923
      %v4994 = vadd.f32 %v4497, %v4928
      %v4995 = vadd.f32 %v4498, %v4931
      %v4996 = vadd.f32 %v4499, %v4936
      %v4997 = vadd.f32 %v4500, %v4939
      %v4998 = vadd.f32 %v4501, %v4944
      %v4999 = vadd.f32 %v4502, %v4947
      %v5000 = vadd.f32 %v4503, %v4952
      %v5001 = vadd.f32 %v4504, %v4955
      %v5002 = vadd.f32 %v4505, %v4960
      %v5003 = vadd.f32 %v4506, %v4963
      %v5004 = vadd.f32 %v4507, %v4968
      %v5005 = vadd.f32 %v4508, %v4971
      %v5006 = vpack.c.bf16 %v4975, %v4974
      %v5007 = vpack.c.bf16 %v4977, %v4976
      %v5008 = vpack.c.bf16 %v4979, %v4978
      %v5009 = vpack.c.bf16 %v4981, %v4980
      %v5010 = vpack.c.bf16 %v4983, %v4982
      %v5011 = vpack.c.bf16 %v4985, %v4984
      %v5012 = vpack.c.bf16 %v4987, %v4986
      %v5013 = vpack.c.bf16 %v4989, %v4988
      %v5014 = vpack.c.bf16 %v4991, %v4990
      %v5015 = vpack.c.bf16 %v4993, %v4992
      %v5016 = vpack.c.bf16 %v4995, %v4994
      %v5017 = vpack.c.bf16 %v4997, %v4996
      %v5018 = vpack.c.bf16 %v4999, %v4998
      %v5019 = vpack.c.bf16 %v5001, %v5000
      %v5020 = vpack.c.bf16 %v5003, %v5002
      %v5021 = vpack.c.bf16 %v5005, %v5004
      %v5038 = vunpack.c.l.b16 %v5006
      %v5039 = vunpack.c.h.b16 %v5006
      %v5040 = vunpack.c.l.b16 %v5007
      %v5041 = vunpack.c.h.b16 %v5007
      %v5042 = vunpack.c.l.b16 %v5008
      %v5043 = vunpack.c.h.b16 %v5008
      %v5044 = vunpack.c.l.b16 %v5009
      %v5045 = vunpack.c.h.b16 %v5009
      %v5046 = vunpack.c.l.b16 %v5010
      %v5047 = vunpack.c.h.b16 %v5010
      %v5048 = vunpack.c.l.b16 %v5011
      %v5049 = vunpack.c.h.b16 %v5011
      %v5050 = vunpack.c.l.b16 %v5012
      %v5051 = vunpack.c.h.b16 %v5012
      %v5052 = vunpack.c.l.b16 %v5013
      %v5053 = vunpack.c.h.b16 %v5013
      %v5054 = vunpack.c.l.b16 %v5014
      %v5055 = vunpack.c.h.b16 %v5014
      %v5056 = vunpack.c.l.b16 %v5015
      %v5057 = vunpack.c.h.b16 %v5015
      %v5058 = vunpack.c.l.b16 %v5016
      %v5059 = vunpack.c.h.b16 %v5016
      %v5060 = vunpack.c.l.b16 %v5017
      %v5061 = vunpack.c.h.b16 %v5017
      %v5062 = vunpack.c.l.b16 %v5018
      %v5063 = vunpack.c.h.b16 %v5018
      %v5064 = vunpack.c.l.b16 %v5019
      %v5065 = vunpack.c.h.b16 %v5019
      %v5066 = vunpack.c.l.b16 %v5020
      %v5067 = vunpack.c.h.b16 %v5020
      %v5068 = vunpack.c.l.b16 %v5021
      %v5069 = vunpack.c.h.b16 %v5021
      %v5070 = vpack.c.b16 %v5038, %v5038
      %v5071 = vpack.c.b16 %v5039, %v5039
      %v5072 = vpack.c.b16 %v5040, %v5040
      %v5073 = vpack.c.b16 %v5041, %v5041
      %v5074 = vpack.c.b16 %v5042, %v5042
      %v5075 = vpack.c.b16 %v5043, %v5043
      %v5076 = vpack.c.b16 %v5044, %v5044
      %v5077 = vpack.c.b16 %v5045, %v5045
      %v5078 = vpack.c.b16 %v5046, %v5046
      %v5079 = vpack.c.b16 %v5047, %v5047
      %v5080 = vpack.c.b16 %v5048, %v5048
      %v5081 = vpack.c.b16 %v5049, %v5049
      %v5082 = vpack.c.b16 %v5050, %v5050
      %v5083 = vpack.c.b16 %v5051, %v5051
      %v5084 = vpack.c.b16 %v5052, %v5052
      %v5085 = vpack.c.b16 %v5053, %v5053
      %v5086 = vpack.c.b16 %v5054, %v5054
      %v5087 = vpack.c.b16 %v5055, %v5055
      %v5088 = vpack.c.b16 %v5056, %v5056
      %v5089 = vpack.c.b16 %v5057, %v5057
      %v5090 = vpack.c.b16 %v5058, %v5058
      %v5091 = vpack.c.b16 %v5059, %v5059
      %v5092 = vpack.c.b16 %v5060, %v5060
      %v5093 = vpack.c.b16 %v5061, %v5061
      %v5094 = vpack.c.b16 %v5062, %v5062
      %v5095 = vpack.c.b16 %v5063, %v5063
      %v5096 = vpack.c.b16 %v5064, %v5064
      %v5097 = vpack.c.b16 %v5065, %v5065
      %v5098 = vpack.c.b16 %v5066, %v5066
      %v5099 = vpack.c.b16 %v5067, %v5067
      %v5100 = vpack.c.b16 %v5068, %v5068
      %v5101 = vpack.c.b16 %v5069, %v5069
      %5134 = vst [vmem:[%s184] sm:$0xf] %v5070
      %5135 = vst [vmem:[%s184 + $0x4] sm:$0xf] %v5071
      %5136 = vst [vmem:[%s184 + $0x8] sm:$0xf] %v5072
      %5137 = vst [vmem:[%s184 + $0xc] sm:$0xf] %v5073
      %5138 = vst [vmem:[%s184 + $0x10] sm:$0xf] %v5074
      %5139 = vst [vmem:[%s184 + $0x14] sm:$0xf] %v5075
      %5140 = vst [vmem:[%s184 + $0x18] sm:$0xf] %v5076
      %5141 = vst [vmem:[%s184 + $0x1c] sm:$0xf] %v5077
      %5142 = vst [vmem:[%s184 + $0x20] sm:$0xf] %v5078
      %5143 = vst [vmem:[%s184 + $0x24] sm:$0xf] %v5079
      %5144 = vst [vmem:[%s184 + $0x28] sm:$0xf] %v5080
      %5145 = vst [vmem:[%s184 + $0x2c] sm:$0xf] %v5081
      %5146 = vst [vmem:[%s184 + $0x30] sm:$0xf] %v5082
      %5147 = vst [vmem:[%s184 + $0x34] sm:$0xf] %v5083
      %5148 = vst [vmem:[%s184 + $0x38] sm:$0xf] %v5084
      %5149 = vst [vmem:[%s184 + $0x3c] sm:$0xf] %v5085
      %5150 = vst [vmem:[%s184 + $0x40] sm:$0xf] %v5086
      %5151 = vst [vmem:[%s184 + $0x44] sm:$0xf] %v5087
      %5152 = vst [vmem:[%s184 + $0x48] sm:$0xf] %v5088
      %5153 = vst [vmem:[%s184 + $0x4c] sm:$0xf] %v5089
      %5154 = vst [vmem:[%s184 + $0x50] sm:$0xf] %v5090
      %5155 = vst [vmem:[%s184 + $0x54] sm:$0xf] %v5091
      %5156 = vst [vmem:[%s184 + $0x58] sm:$0xf] %v5092
      %5157 = vst [vmem:[%s184 + $0x5c] sm:$0xf] %v5093
      %5158 = vst [vmem:[%s184 + $0x60] sm:$0xf] %v5094
      %5159 = vst [vmem:[%s184 + $0x64] sm:$0xf] %v5095
      %5160 = vst [vmem:[%s184 + $0x68] sm:$0xf] %v5096
      %5161 = vst [vmem:[%s184 + $0x6c] sm:$0xf] %v5097
      %5162 = vst [vmem:[%s184 + $0x70] sm:$0xf] %v5098
      %5163 = vst [vmem:[%s184 + $0x74] sm:$0xf] %v5099
      %5164 = vst [vmem:[%s184 + $0x78] sm:$0xf] %v5100
      %5165 = vst [vmem:[%s184 + $0x7c] sm:$0xf] %v5101
      %v5166 = vadd.f32 %v4974, %v4975
      %v5167 = vadd.f32 %v5166, %v4976
      %v5168 = vadd.f32 %v5167, %v4977
      %v5169 = vadd.f32 %v5168, %v4978
      %v5170 = vadd.f32 %v5169, %v4979
      %v5171 = vadd.f32 %v5170, %v4980
      %v5172 = vadd.f32 %v5171, %v4981
      %v5173 = vadd.f32 %v5172, %v4982
      %v5174 = vadd.f32 %v5173, %v4983
      %v5175 = vadd.f32 %v5174, %v4984
      %v5176 = vadd.f32 %v5175, %v4985
      %v5177 = vadd.f32 %v5176, %v4986
      %v5178 = vadd.f32 %v5177, %v4987
      %v5179 = vadd.f32 %v5178, %v4988
      %v5180 = vadd.f32 %v5179, %v4989
      %v5181 = vadd.f32 %v5180, %v4990
      %v5182 = vadd.f32 %v5181, %v4991
      %v5183 = vadd.f32 %v5182, %v4992
      %v5184 = vadd.f32 %v5183, %v4993
      %v5185 = vadd.f32 %v5184, %v4994
      %v5186 = vadd.f32 %v5185, %v4995
      %v5187 = vadd.f32 %v5186, %v4996
      %v5188 = vadd.f32 %v5187, %v4997
      %v5189 = vadd.f32 %v5188, %v4998
      %v5190 = vadd.f32 %v5189, %v4999
      %v5191 = vadd.f32 %v5190, %v5000
      %v5192 = vadd.f32 %v5191, %v5001
      %v5193 = vadd.f32 %v5192, %v5002
      %v5194 = vadd.f32 %v5193, %v5003
      %v5195 = vadd.f32 %v5194, %v5004
      %v5196 = vadd.f32 %v5195, %v5005
      %v5197 = vrot.slane %v5196, 4
      %v5198 = vadd.f32 %v5196, %v5197
      %v5199 = vrot.slane %v5198, 2
      %v5200 = vadd.f32 %v5198, %v5199
      %v5201 = vrot.slane %v5200, 1
      %v5202 = vadd.f32 %v5200, %v5201
      %v5203 = vmul.f32 %v4974, %v4974
      %v5204 = vmul.f32 %v4975, %v4975
      %v5205 = vmul.f32 %v4976, %v4976
      %v5206 = vmul.f32 %v4977, %v4977
      %v5207 = vmul.f32 %v4978, %v4978
      %v5208 = vmul.f32 %v4979, %v4979
      %v5209 = vmul.f32 %v4980, %v4980
      %v5210 = vmul.f32 %v4981, %v4981
      %v5211 = vmul.f32 %v4982, %v4982
      %v5212 = vmul.f32 %v4983, %v4983
      %v5213 = vmul.f32 %v4984, %v4984
      %v5214 = vmul.f32 %v4985, %v4985
      %v5215 = vmul.f32 %v4986, %v4986
      %v5216 = vmul.f32 %v4987, %v4987
      %v5217 = vmul.f32 %v4988, %v4988
      %v5218 = vmul.f32 %v4989, %v4989
      %v5219 = vmul.f32 %v4990, %v4990
      %v5220 = vmul.f32 %v4991, %v4991
      %v5221 = vmul.f32 %v4992, %v4992
      %v5222 = vmul.f32 %v4993, %v4993
      %v5223 = vmul.f32 %v4994, %v4994
      %v5224 = vmul.f32 %v4995, %v4995
      %v5225 = vmul.f32 %v4996, %v4996
      %v5226 = vmul.f32 %v4997, %v4997
      %v5227 = vmul.f32 %v4998, %v4998
      %v5228 = vmul.f32 %v4999, %v4999
      %v5229 = vmul.f32 %v5000, %v5000
      %v5230 = vmul.f32 %v5001, %v5001
      %v5231 = vmul.f32 %v5002, %v5002
      %v5232 = vmul.f32 %v5003, %v5003
      %v5233 = vmul.f32 %v5004, %v5004
      %v5234 = vmul.f32 %v5005, %v5005
      %v5235 = vadd.f32 %v5203, %v5204
      %v5236 = vadd.f32 %v5235, %v5205
      %v5237 = vadd.f32 %v5236, %v5206
      %v5238 = vadd.f32 %v5237, %v5207
      %v5239 = vadd.f32 %v5238, %v5208
      %v5240 = vadd.f32 %v5239, %v5209
      %v5241 = vadd.f32 %v5240, %v5210
      %v5242 = vadd.f32 %v5241, %v5211
      %v5243 = vadd.f32 %v5242, %v5212
      %v5244 = vadd.f32 %v5243, %v5213
      %v5245 = vadd.f32 %v5244, %v5214
      %v5246 = vadd.f32 %v5245, %v5215
      %v5247 = vadd.f32 %v5246, %v5216
      %v5248 = vadd.f32 %v5247, %v5217
      %v5249 = vadd.f32 %v5248, %v5218
      %v5250 = vadd.f32 %v5249, %v5219
      %v5251 = vadd.f32 %v5250, %v5220
      %v5252 = vadd.f32 %v5251, %v5221
      %v5253 = vadd.f32 %v5252, %v5222
      %v5254 = vadd.f32 %v5253, %v5223
      %v5255 = vadd.f32 %v5254, %v5224
      %v5256 = vadd.f32 %v5255, %v5225
      %v5257 = vadd.f32 %v5256, %v5226
      %v5258 = vadd.f32 %v5257, %v5227
      %v5259 = vadd.f32 %v5258, %v5228
      %v5260 = vadd.f32 %v5259, %v5229
      %v5261 = vadd.f32 %v5260, %v5230
      %v5262 = vadd.f32 %v5261, %v5231
      %v5263 = vadd.f32 %v5262, %v5232
      %v5264 = vadd.f32 %v5263, %v5233
      %v5265 = vadd.f32 %v5264, %v5234
      %v5266 = vrot.slane %v5265, 4
      %v5267 = vadd.f32 %v5265, %v5266
      %v5268 = vrot.slane %v5267, 2
      %v5269 = vadd.f32 %v5267, %v5268
      %v5270 = vrot.slane %v5269, 1
      %v5271 = vadd.f32 %v5269, %v5270
      %vm5272 = vcmask 1040384
      %v5273 = vsel %vm5272, %v5202, %v5271
      %v5274 = vld [vmem:[%s3] sm:$0x3]
      %v5275 = vadd.f32 %v5274, %v5273
      %5276 = vst [vmem:[%s3] sm:$0x3] %v5275
      %s5277 = sadd.s32 %s19, %s20
      %s5278 = smul.u32 32, %s5277
      %p5279 = scmp.lt.s32.totalorder %s5278, 63
      %s5280 = scalar_select %p5279, %s5278, 63
      %s5281 = smul.addr %s5280, 4
      %s5282 = scalar_lea.vmem %s2, %s5281
      // Predicated region
      $region33: #{vgg_block.4} parent=27 // pred_check
        %p5283 = pneg %p94
      $region34: #{vgg_block.4} parent=27 // pred_check_branch
        %5285 = sbr.rel (%p5283) target = $region36
      $region35: #{vgg_block.4} parent=27 // pred_region
        %s5286 = sadd.s32 %s19, %s20
        %s5287 = smul.u32 32, %s5286
      $region36: #{vgg_block.4} parent=27 // pred_fallthru
        _
      // Predicated region
      $region37: #{vgg_block.4} parent=27 // pred_check
        %p5288 = pneg %p115
      $region38: #{vgg_block.4} parent=27 // pred_check_branch
        %5290 = sbr.rel (%p5288) target = $region40
      $region39: #{vgg_block.4} parent=27 // pred_region
        _
      $region40: #{vgg_block.4} parent=27 // pred_fallthru
        _
      // Predicated region
      $region41: #{vgg_block.4} parent=27 // pred_check
        %p5291 = pneg %p115
      $region42: #{vgg_block.4} parent=27 // pred_check_branch
        %5293 = sbr.rel (%p5291) target = $region44
      $region43: #{vgg_block.4} parent=27 // pred_region
        _
      $region44: #{vgg_block.4} parent=27 // pred_fallthru
        _
    $region28: #{vgg_block.4} parent=5 // pred_fallthru
      _
    %p5294 = scmp.le.s32.totalorder 2, %s10
    // Predicated region
    $region45: #{vgg_block.4} parent=5 // pred_check
      %p5295 = pneg %p5294
    $region46: #{vgg_block.4} parent=5 // pred_check_branch
      %5297 = sbr.rel (%p5295) target = $region48
    $region47: #{vgg_block.4} parent=5 // pred_region
      %s5298 = ssub.s32 %s10, 2
      // Predicated region
      $region49: #{vgg_block.4} parent=47 // pred_check
        %p5299 = pneg %p100
      $region50: #{vgg_block.4} parent=47 // pred_check_branch
        %5301 = sbr.rel (%p5299) target = $region52
      $region51: #{vgg_block.4} parent=47 // pred_region
        %s5302 = sadd.s32 %s21, %s22
        %s5303 = smul.u32 32, %s5302
        %p5304 = scmp.lt.s32.totalorder %s5303, 63
        %s5305 = scalar_select %p5304, %s5303, 63
        %s5306 = smul.addr %s5305, 4
        %s5307 = scalar_lea.vmem %s2, %s5306
      $region52: #{vgg_block.4} parent=47 // pred_fallthru
        _
    $region48: #{vgg_block.4} parent=5 // pred_fallthru
      _
  $region6: #{vgg_block.4} parent=0 // loop_footer
    %s14 = sadd.s32 1, %s10
  $region7: #{vgg_block.4} parent=0 // loop_footer_branch
    %9 = sbr.rel target = $region3
  $region8: #{vgg_block.4} parent=0 // loop_exit
    _

</llo_original>
